<compile_context>
chip_gen: v6e
topology: v6e:2x2x1
jax: 0.10.0
libtpu: 0.0.40
codegen_flags: <defaults>
</compile_context>

<pallas_src>
import functools

import jax
import jax.numpy as jnp
from jax.experimental import pallas as pl
from jax.experimental.pallas import tpu as pltpu


# ----------------------------- Pallas kernel --------------------------------
def lstm_direction_kernel(x_ref, len_ref, wih_ref, whh_ref, b_ref,
                          h0_ref, c0_ref, y_ref, hn_ref, cn_ref, gates_scr):
    """One direction (grid axis 0: 0=fwd, 1=bwd) of a bidirectional LSTM layer.

    x_ref    : (T, B, Din)   time-major layer input (same block for both dirs)
    len_ref  : (B, 1) int32  sequence lengths
    wih_ref  : (Din, 4H)     input weights for this direction, gates [i,f,g,o]
    whh_ref  : (H, 4H)       recurrent weights for this direction
    b_ref    : (1, 4H)       combined bias (b_ih + b_hh) for this direction
    h0_ref   : (B, H)        initial hidden state for this direction
    c0_ref   : (B, H)        initial cell state for this direction
    y_ref    : (T, B, H)     output block for this direction (0 at pads)
    hn_ref   : (B, H)        final hidden state
    cn_ref   : (B, H)        final cell state
    gates_scr: VMEM (T, B, 4H) f32 scratch for the hoisted input projection
    """
    d = pl.program_id(0)                       # 0 = forward, 1 = backward
    T, B, Din = x_ref.shape
    H = hn_ref.shape[-1]

    lens = len_ref[...]                        # (B, 1) int32, loaded once

    # ---- hoisted input projection: one big GEMM off the critical path ------
    w_ih = wih_ref[...]                        # loaded once, stays in vregs
    w_hh = whh_ref[...]
    bias = b_ref[...]                          # (1, 4H)
    x2d = x_ref[...].reshape(T * B, Din)
    gates_scr[...] = (
        jnp.dot(x2d, w_ih, preferred_element_type=jnp.float32) + bias
    ).reshape(T, B, 4 * H)

    # ---- serial recurrence: only h @ W_hh remains per step ------------------
    rev = d == 1

    def body(s, carry):
        h, c = carry
        t = jnp.where(rev, T - 1 - s, s)       # backward walks time in reverse
        g = gates_scr[t] + jnp.dot(h, w_hh, preferred_element_type=jnp.float32)
        i_g = jax.nn.sigmoid(g[:, 0 * H:1 * H])
        f_g = jax.nn.sigmoid(g[:, 1 * H:2 * H])
        g_g = jnp.tanh(g[:, 2 * H:3 * H])
        o_g = jax.nn.sigmoid(g[:, 3 * H:4 * H])
        c_new = f_g * c + i_g * g_g
        h_new = o_g * jnp.tanh(c_new)
        # Packed-sequence semantics: freeze the state past each length.
        mask = t < lens                        # (B, 1)
        c = jnp.where(mask, c_new, c)
        h = jnp.where(mask, h_new, h)
        y_ref[t] = h_new                       # unmasked; zeroed in one pass below
        return h, c

    unroll = True if T <= 32 else 4
    h, c = jax.lax.fori_loop(0, T, body, (h0_ref[...], c0_ref[...]),
                             unroll=unroll)

    # Single-pass zeroing of padded time steps (pad_packed padding_value=0).
    t_iota = jax.lax.broadcasted_iota(jnp.int32, (T, B, 1), 0)
    valid = t_iota < lens[None, :, :]
    y_ref[...] = jnp.where(valid, y_ref[...], 0.0)

    hn_ref[...] = h
    cn_ref[...] = c


def bidir_lstm_layer(x_tbe, lens_b1, w_ih, w_hh, b, h0, c0):
    """Run one bidirectional LSTM layer (grid over the 2 directions).

    x_tbe: (T, B, Din) float32 (time-major); lens_b1: (B, 1) int32.
    w_ih: (2, Din, 4H); w_hh: (2, H, 4H); b: (2, 1, 4H); h0/c0: (2, B, H).
    Returns y (T, B, 2H), h_n (2, B, H), c_n (2, B, H).
    """
    T, B, Din = x_tbe.shape
    H = h0.shape[-1]

    y_dir, hn, cn = pl.pallas_call(
        lstm_direction_kernel,
        grid=(2,),
        in_specs=[
            pl.BlockSpec((T, B, Din), lambda d: (0, 0, 0)),      # x (shared)
            pl.BlockSpec((B, 1), lambda d: (0, 0)),              # lengths
            pl.BlockSpec((None, Din, 4 * H), lambda d: (d, 0, 0)),
            pl.BlockSpec((None, H, 4 * H), lambda d: (d, 0, 0)),
            pl.BlockSpec((None, 1, 4 * H), lambda d: (d, 0, 0)),
            pl.BlockSpec((None, B, H), lambda d: (d, 0, 0)),     # h0
            pl.BlockSpec((None, B, H), lambda d: (d, 0, 0)),     # c0
        ],
        out_specs=(
            pl.BlockSpec((None, T, B, H), lambda d: (d, 0, 0, 0)),  # y per dir
            pl.BlockSpec((None, B, H), lambda d: (d, 0, 0)),        # h_n
            pl.BlockSpec((None, B, H), lambda d: (d, 0, 0)),        # c_n
        ),
        out_shape=(
            jax.ShapeDtypeStruct((2, T, B, H), jnp.float32),
            jax.ShapeDtypeStruct((2, B, H), jnp.float32),
            jax.ShapeDtypeStruct((2, B, H), jnp.float32),
        ),
        scratch_shapes=[pltpu.VMEM((T, B, 4 * H), jnp.float32)],
        compiler_params=pltpu.CompilerParams(
            dimension_semantics=("parallel",),      # dirs -> 2 TCs on v7x
            vmem_limit_bytes=32 * 1024 * 1024),
    )(x_tbe, lens_b1, w_ih, w_hh, b, h0, c0)

    # PyTorch layout: features = [fwd_h_t, bwd_h_t] along the last dim.
    y = jnp.concatenate([y_dir[0], y_dir[1]], axis=-1)           # (T, B, 2H)
    return y, hn, cn


# ------------------------ EncoderRNN forward (glue) --------------------------
def encoder_rnn_forward(params, inputs, token_length, h0, c0, num_layers):
    """inputs: (B, T) int32 token ids; token_length: (B,) int32.

    Returns (unpacked_out (B, T, 2H), (h_n (2*L, B, H), c_n (2*L, B, H))).
    Equivalent to the PyTorch forward: the sort/unsort by length cancels
    because packing is emulated per-sequence via in-kernel length masking.
    """
    B, T = inputs.shape
    emb = jnp.take(params["embedding"], inputs, axis=0)        # (B, T, E)
    # TODO(synk): nn.Dropout / inter-layer LSTM dropout are training-mode only;
    # implemented as identity (eval-mode semantics).
    x = jnp.transpose(emb, (1, 0, 2))                          # (T, B, E)
    lens = token_length.reshape(B, 1).astype(jnp.int32)

    hn_all, cn_all = [], []
    for l in range(num_layers):
        w_ih, w_hh, b = params["lstm"][l]
        y, hn, cn = bidir_lstm_layer(x, lens, w_ih, w_hh, b,
                                     h0[2 * l:2 * l + 2], c0[2 * l:2 * l + 2])
        x = y                                                  # stays time-major
        hn_all.append(hn)
        cn_all.append(cn)

    # Note: pad_packed_sequence trims to max(token_length); test below uses
    # max(token_length) == T so shapes match exactly.
    unpacked_out = jnp.transpose(x, (1, 0, 2))                 # (B, T, 2H)
    h_n = jnp.concatenate(hn_all, axis=0)
    c_n = jnp.concatenate(cn_all, axis=0)
    return unpacked_out, (h_n, c_n)


# ------------------------------ parameter init -------------------------------
def init_params(key, vocab_size, embedding_dim, hidden_size, num_layers):
    k_emb, key = jax.random.split(key)
    emb = 0.1 * jax.random.normal(k_emb, (vocab_size, embedding_dim),
                                  jnp.float32)
    emb = emb.at[0].set(0.0)   # padding_idx=0 row is zero

    scale = 1.0 / (hidden_size ** 0.5)
    layers = []
    for l in range(num_layers):
        in_dim = embedding_dim if l == 0 else 2 * hidden_size
        wih, whh, bb = [], [], []
        for _d in range(2):   # forward, backward
            key, k1, k2, k3, k4 = jax.random.split(key, 5)
            wih.append(jax.random.uniform(k1, (in_dim, 4 * hidden_size),
                                          jnp.float32, -scale, scale))
            whh.append(jax.random.uniform(k2, (hidden_size, 4 * hidden_size),
                                          jnp.float32, -scale, scale))
            b_ih = jax.random.uniform(k3, (1, 4 * hidden_size),
                                      jnp.float32, -scale, scale)
            b_hh = jax.random.uniform(k4, (1, 4 * hidden_size),
                                      jnp.float32, -scale, scale)
            bb.append(b_ih + b_hh)            # combined bias (b_ih + b_hh)
        layers.append((jnp.stack(wih, axis=0),     # (2, in_dim, 4H)
                       jnp.stack(whh, axis=0),     # (2, H, 4H)
                       jnp.stack(bb, axis=0)))     # (2, 1, 4H)
    return {"embedding": emb, "lstm": layers}


# ----------------------------------- main ------------------------------------
if __name__ == "__main__":
    hidden_size = 32
    embedding_dim = 16
    vocab_size = 50
    rnn_layer_num = 2
    batch_size = 4
    seq_len = 8

    key = jax.random.PRNGKey(0)
    k_par, k_tok, k_h, k_c = jax.random.split(key, 4)

    params = init_params(k_par, vocab_size, embedding_dim, hidden_size,
                         rnn_layer_num)

    # Token ids (0 is the padding index); per-sequence lengths with max == T.
    inputs = jax.random.randint(k_tok, (batch_size, seq_len), 1, vocab_size,
                                dtype=jnp.int32)
    token_length = jnp.array([8, 5, 3, 6], dtype=jnp.int32)
    # zero-pad past each sequence's length (as a padded batch would be)
    pad_mask = jnp.arange(seq_len)[None, :] < token_length[:, None]
    inputs = jnp.where(pad_mask, inputs, 0)

    # init_hidden() uses torch.randn; here deterministic via PRNGKey(0) splits.
    h0 = jax.random.normal(k_h, (rnn_layer_num * 2, batch_size, hidden_size),
                           jnp.float32)
    c0 = jax.random.normal(k_c, (rnn_layer_num * 2, batch_size, hidden_size),
                           jnp.float32)

    fwd = jax.jit(functools.partial(encoder_rnn_forward,
                                    num_layers=rnn_layer_num))
    out, (h_n, c_n) = fwd(params, inputs, token_length, h0, c0)
    jax.block_until_ready((out, h_n, c_n))

    assert out.shape == (batch_size, seq_len, 2 * hidden_size)
    assert h_n.shape == (rnn_layer_num * 2, batch_size, hidden_size)
    assert c_n.shape == (rnn_layer_num * 2, batch_size, hidden_size)
    # outputs at padded positions must be exactly 0 (pad_packed padding_value=0)
    assert bool(jnp.all(jnp.where(pad_mask[:, :, None], 0.0, out) == 0.0))

    print("KERNEL_OK")
</pallas_src>

<mosaic_0001>
module attributes {stable_mosaic.version = 11 : i64} {
  func.func @lstm_direction_kernel(%arg0: i32, %arg1: memref<8x4x16xf32, #tpu.memory_space<vmem>>, %arg2: memref<4x1xi32, #tpu.memory_space<vmem>>, %arg3: memref<1x16x128xf32, #tpu.memory_space<vmem>>, %arg4: memref<1x32x128xf32, #tpu.memory_space<vmem>>, %arg5: memref<1x1x128xf32, #tpu.memory_space<vmem>>, %arg6: memref<1x4x32xf32, #tpu.memory_space<vmem>>, %arg7: memref<1x4x32xf32, #tpu.memory_space<vmem>>, %arg8: memref<1x8x4x32xf32, #tpu.memory_space<vmem>>, %arg9: memref<1x4x32xf32, #tpu.memory_space<vmem>>, %arg10: memref<1x4x32xf32, #tpu.memory_space<vmem>>, %arg11: memref<8x4x128xf32, #tpu.memory_space<vmem>>) attributes {dimension_semantics = [#tpu.dimension_semantics<parallel>], iteration_bounds = array<i64: 2>, scalar_prefetch = 0 : i64, scratch_operands = 1 : i64, tpu.core_type = #tpu.core_type<tc>, window_params = [{pipeline_mode = #tpu.pipeline_mode<synchronous>, transform_indices = @transform_0, window_bounds = array<i64: 8, 4, 16>}, {pipeline_mode = #tpu.pipeline_mode<synchronous>, transform_indices = @transform_1, window_bounds = array<i64: 4, 1>}, {transform_indices = @transform_2, window_bounds = array<i64: 1, 16, 128>}, {transform_indices = @transform_3, window_bounds = array<i64: 1, 32, 128>}, {transform_indices = @transform_4, window_bounds = array<i64: 1, 1, 128>}, {transform_indices = @transform_5, window_bounds = array<i64: 1, 4, 32>}, {transform_indices = @transform_6, window_bounds = array<i64: 1, 4, 32>}, {transform_indices = @transform_7, window_bounds = array<i64: 1, 8, 4, 32>}, {transform_indices = @transform_8, window_bounds = array<i64: 1, 4, 32>}, {transform_indices = @transform_9, window_bounds = array<i64: 1, 4, 32>}]} {
    %c0 = arith.constant 0 : index
    %c0_0 = arith.constant 0 : index
    %0 = vector.load %arg2[%c0, %c0_0] : memref<4x1xi32, #tpu.memory_space<vmem>>, vector<4x1xi32>
    %c0_1 = arith.constant 0 : index
    %c0_2 = arith.constant 0 : index
    %c0_3 = arith.constant 0 : index
    %1 = vector.load %arg3[%c0_1, %c0_2, %c0_3] : memref<1x16x128xf32, #tpu.memory_space<vmem>>, vector<1x16x128xf32>
    %2 = vector.shape_cast %1 : vector<1x16x128xf32> to vector<16x128xf32>
    %c0_4 = arith.constant 0 : index
    %c0_5 = arith.constant 0 : index
    %c0_6 = arith.constant 0 : index
    %3 = vector.load %arg4[%c0_4, %c0_5, %c0_6] : memref<1x32x128xf32, #tpu.memory_space<vmem>>, vector<1x32x128xf32>
    %4 = vector.shape_cast %3 : vector<1x32x128xf32> to vector<32x128xf32>
    %c0_7 = arith.constant 0 : index
    %c0_8 = arith.constant 0 : index
    %c0_9 = arith.constant 0 : index
    %5 = vector.load %arg5[%c0_7, %c0_8, %c0_9] : memref<1x1x128xf32, #tpu.memory_space<vmem>>, vector<1x1x128xf32>
    %6 = vector.shape_cast %5 : vector<1x1x128xf32> to vector<1x128xf32>
    %c0_10 = arith.constant 0 : index
    %c0_11 = arith.constant 0 : index
    %c0_12 = arith.constant 0 : index
    %7 = vector.load %arg1[%c0_10, %c0_11, %c0_12] : memref<8x4x16xf32, #tpu.memory_space<vmem>>, vector<8x4x16xf32>
    %8 = vector.shape_cast %7 : vector<8x4x16xf32> to vector<32x16xf32>
    %cst = arith.constant dense<0.000000e+00> : vector<32x128xf32>
    %9 = tpu.matmul %8, %2, %cst {dimension_numbers = #tpu.dot_dimension_numbers<[1], [0], [0], [1], [0, 0, 1, 1], [], []>} : vector<32x16xf32>, vector<16x128xf32>, vector<32x128xf32> -> vector<32x128xf32>
    %10 = vector.broadcast %6 : vector<1x128xf32> to vector<32x128xf32>
    %11 = arith.addf %9, %10 : vector<32x128xf32>
    %12 = vector.shape_cast %11 : vector<32x128xf32> to vector<8x4x128xf32>
    %c0_13 = arith.constant 0 : index
    %c0_14 = arith.constant 0 : index
    %c0_15 = arith.constant 0 : index
    %13 = vector.load %arg11[%c0_13, %c0_14, %c0_15] : memref<8x4x128xf32, #tpu.memory_space<vmem>>, vector<8x4x128xf32>
    tpu.vector_store %arg11[%c0_13, %c0_14, %c0_15], %12 {strides = array<i32>} : memref<8x4x128xf32, #tpu.memory_space<vmem>>, vector<8x4x128xf32>,
    %c1_i32 = arith.constant 1 : i32
    %14 = arith.cmpi eq, %arg0, %c1_i32 : i32
    %c0_16 = arith.constant 0 : index
    %c0_17 = arith.constant 0 : index
    %c0_18 = arith.constant 0 : index
    %15 = vector.load %arg6[%c0_16, %c0_17, %c0_18] : memref<1x4x32xf32, #tpu.memory_space<vmem>>, vector<1x4x32xf32>
    %16 = vector.shape_cast %15 : vector<1x4x32xf32> to vector<4x32xf32>
    %c0_19 = arith.constant 0 : index
    %c0_20 = arith.constant 0 : index
    %c0_21 = arith.constant 0 : index
    %17 = vector.load %arg7[%c0_19, %c0_20, %c0_21] : memref<1x4x32xf32, #tpu.memory_space<vmem>>, vector<1x4x32xf32>
    %18 = vector.shape_cast %17 : vector<1x4x32xf32> to vector<4x32xf32>
    %c0_i32 = arith.constant 0 : i32
    %c7_i32 = arith.constant 7 : i32
    %19 = arith.subi %c7_i32, %c0_i32 : i32
    %20 = arith.select %14, %19, %c0_i32 : i32
    %21 = arith.index_cast %20 : i32 to index
    %c0_22 = arith.constant 0 : index
    %c0_23 = arith.constant 0 : index
    %22 = vector.load %arg11[%21, %c0_22, %c0_23] : memref<8x4x128xf32, #tpu.memory_space<vmem>>, vector<1x4x128xf32>
    %23 = vector.shape_cast %22 : vector<1x4x128xf32> to vector<4x128xf32>
    %cst_24 = arith.constant dense<0.000000e+00> : vector<4x128xf32>
    %24 = tpu.matmul %16, %4, %cst_24 {dimension_numbers = #tpu.dot_dimension_numbers<[1], [0], [0], [1], [0, 0, 1, 1], [], []>} : vector<4x32xf32>, vector<32x128xf32>, vector<4x128xf32> -> vector<4x128xf32>
    %25 = arith.addf %23, %24 : vector<4x128xf32>
    %26 = vector.extract_strided_slice %25 {offsets = [0, 0], sizes = [4, 32], strides = [1, 1]} : vector<4x128xf32> to vector<4x32xf32>
    %27 = arith.negf %26 : vector<4x32xf32>
    %28 = math.exp %27 : vector<4x32xf32>
    %cst_25 = arith.constant 1.000000e+00 : f32
    %29 = vector.broadcast %cst_25 : f32 to vector<4x32xf32>
    %30 = arith.addf %29, %28 : vector<4x32xf32>
    %31 = arith.divf %29, %30 : vector<4x32xf32>
    %32 = vector.extract_strided_slice %25 {offsets = [0, 32], sizes = [4, 32], strides = [1, 1]} : vector<4x128xf32> to vector<4x32xf32>
    %33 = arith.negf %32 : vector<4x32xf32>
    %34 = math.exp %33 : vector<4x32xf32>
    %cst_26 = arith.constant 1.000000e+00 : f32
    %35 = vector.broadcast %cst_26 : f32 to vector<4x32xf32>
    %36 = arith.addf %35, %34 : vector<4x32xf32>
    %37 = arith.divf %35, %36 : vector<4x32xf32>
    %38 = vector.extract_strided_slice %25 {offsets = [0, 64], sizes = [4, 32], strides = [1, 1]} : vector<4x128xf32> to vector<4x32xf32>
    %39 = math.tanh %38 : vector<4x32xf32>
    %40 = vector.extract_strided_slice %25 {offsets = [0, 96], sizes = [4, 32], strides = [1, 1]} : vector<4x128xf32> to vector<4x32xf32>
    %41 = arith.negf %40 : vector<4x32xf32>
    %42 = math.exp %41 : vector<4x32xf32>
    %cst_27 = arith.constant 1.000000e+00 : f32
    %43 = vector.broadcast %cst_27 : f32 to vector<4x32xf32>
    %44 = arith.addf %43, %42 : vector<4x32xf32>
    %45 = arith.divf %43, %44 : vector<4x32xf32>
    %46 = arith.mulf %37, %18 : vector<4x32xf32>
    %47 = arith.mulf %31, %39 : vector<4x32xf32>
    %48 = arith.addf %46, %47 : vector<4x32xf32>
    %49 = math.tanh %48 : vector<4x32xf32>
    %50 = arith.mulf %45, %49 : vector<4x32xf32>
    %51 = vector.broadcast %20 : i32 to vector<4x1xi32>
    %52 = arith.cmpi slt, %51, %0 : vector<4x1xi32>
    %53 = vector.shape_cast %52 : vector<4x1xi1> to vector<4x1xi1>
    %54 = vector.broadcast %53 : vector<4x1xi1> to vector<4x32xi1>
    %55 = arith.select %54, %48, %18 : vector<4x32xi1>, vector<4x32xf32>
    %56 = vector.shape_cast %52 : vector<4x1xi1> to vector<4x1xi1>
    %57 = vector.broadcast %56 : vector<4x1xi1> to vector<4x32xi1>
    %58 = arith.select %57, %50, %16 : vector<4x32xi1>, vector<4x32xf32>
    %c0_28 = arith.constant 0 : index
    %59 = arith.index_cast %20 : i32 to index
    %c0_29 = arith.constant 0 : index
    %c0_30 = arith.constant 0 : index
    %60 = vector.load %arg8[%c0_28, %59, %c0_29, %c0_30] : memref<1x8x4x32xf32, #tpu.memory_space<vmem>>, vector<1x1x4x32xf32>
    %61 = vector.shape_cast %60 : vector<1x1x4x32xf32> to vector<4x32xf32>
    %62 = vector.shape_cast %50 : vector<4x32xf32> to vector<1x1x4x32xf32>
    tpu.vector_store %arg8[%c0_28, %59, %c0_29, %c0_30], %62 {strides = array<i32>} : memref<1x8x4x32xf32, #tpu.memory_space<vmem>>, vector<1x1x4x32xf32>,
    %c1_i32_31 = arith.constant 1 : i32
    %c7_i32_32 = arith.constant 7 : i32
    %63 = arith.subi %c7_i32_32, %c1_i32_31 : i32
    %64 = arith.select %14, %63, %c1_i32_31 : i32
    %65 = arith.index_cast %64 : i32 to index
    %c0_33 = arith.constant 0 : index
    %c0_34 = arith.constant 0 : index
    %66 = vector.load %arg11[%65, %c0_33, %c0_34] : memref<8x4x128xf32, #tpu.memory_space<vmem>>, vector<1x4x128xf32>
    %67 = vector.shape_cast %66 : vector<1x4x128xf32> to vector<4x128xf32>
    %cst_35 = arith.constant dense<0.000000e+00> : vector<4x128xf32>
    %68 = tpu.matmul %58, %4, %cst_35 {dimension_numbers = #tpu.dot_dimension_numbers<[1], [0], [0], [1], [0, 0, 1, 1], [], []>} : vector<4x32xf32>, vector<32x128xf32>, vector<4x128xf32> -> vector<4x128xf32>
    %69 = arith.addf %67, %68 : vector<4x128xf32>
    %70 = vector.extract_strided_slice %69 {offsets = [0, 0], sizes = [4, 32], strides = [1, 1]} : vector<4x128xf32> to vector<4x32xf32>
    %71 = arith.negf %70 : vector<4x32xf32>
    %72 = math.exp %71 : vector<4x32xf32>
    %cst_36 = arith.constant 1.000000e+00 : f32
    %73 = vector.broadcast %cst_36 : f32 to vector<4x32xf32>
    %74 = arith.addf %73, %72 : vector<4x32xf32>
    %75 = arith.divf %73, %74 : vector<4x32xf32>
    %76 = vector.extract_strided_slice %69 {offsets = [0, 32], sizes = [4, 32], strides = [1, 1]} : vector<4x128xf32> to vector<4x32xf32>
    %77 = arith.negf %76 : vector<4x32xf32>
    %78 = math.exp %77 : vector<4x32xf32>
    %cst_37 = arith.constant 1.000000e+00 : f32
    %79 = vector.broadcast %cst_37 : f32 to vector<4x32xf32>
    %80 = arith.addf %79, %78 : vector<4x32xf32>
    %81 = arith.divf %79, %80 : vector<4x32xf32>
    %82 = vector.extract_strided_slice %69 {offsets = [0, 64], sizes = [4, 32], strides = [1, 1]} : vector<4x128xf32> to vector<4x32xf32>
    %83 = math.tanh %82 : vector<4x32xf32>
    %84 = vector.extract_strided_slice %69 {offsets = [0, 96], sizes = [4, 32], strides = [1, 1]} : vector<4x128xf32> to vector<4x32xf32>
    %85 = arith.negf %84 : vector<4x32xf32>
    %86 = math.exp %85 : vector<4x32xf32>
    %cst_38 = arith.constant 1.000000e+00 : f32
    %87 = vector.broadcast %cst_38 : f32 to vector<4x32xf32>
    %88 = arith.addf %87, %86 : vector<4x32xf32>
    %89 = arith.divf %87, %88 : vector<4x32xf32>
    %90 = arith.mulf %81, %55 : vector<4x32xf32>
    %91 = arith.mulf %75, %83 : vector<4x32xf32>
    %92 = arith.addf %90, %91 : vector<4x32xf32>
    %93 = math.tanh %92 : vector<4x32xf32>
    %94 = arith.mulf %89, %93 : vector<4x32xf32>
    %95 = vector.broadcast %64 : i32 to vector<4x1xi32>
    %96 = arith.cmpi slt, %95, %0 : vector<4x1xi32>
    %97 = vector.shape_cast %96 : vector<4x1xi1> to vector<4x1xi1>
    %98 = vector.broadcast %97 : vector<4x1xi1> to vector<4x32xi1>
    %99 = arith.select %98, %92, %55 : vector<4x32xi1>, vector<4x32xf32>
    %100 = vector.shape_cast %96 : vector<4x1xi1> to vector<4x1xi1>
    %101 = vector.broadcast %100 : vector<4x1xi1> to vector<4x32xi1>
    %102 = arith.select %101, %94, %58 : vector<4x32xi1>, vector<4x32xf32>
    %c0_39 = arith.constant 0 : index
    %103 = arith.index_cast %64 : i32 to index
    %c0_40 = arith.constant 0 : index
    %c0_41 = arith.constant 0 : index
    %104 = vector.load %arg8[%c0_39, %103, %c0_40, %c0_41] : memref<1x8x4x32xf32, #tpu.memory_space<vmem>>, vector<1x1x4x32xf32>
    %105 = vector.shape_cast %104 : vector<1x1x4x32xf32> to vector<4x32xf32>
    %106 = vector.shape_cast %94 : vector<4x32xf32> to vector<1x1x4x32xf32>
    tpu.vector_store %arg8[%c0_39, %103, %c0_40, %c0_41], %106 {strides = array<i32>} : memref<1x8x4x32xf32, #tpu.memory_space<vmem>>, vector<1x1x4x32xf32>,
    %c2_i32 = arith.constant 2 : i32
    %c7_i32_42 = arith.constant 7 : i32
    %107 = arith.subi %c7_i32_42, %c2_i32 : i32
    %108 = arith.select %14, %107, %c2_i32 : i32
    %109 = arith.index_cast %108 : i32 to index
    %c0_43 = arith.constant 0 : index
    %c0_44 = arith.constant 0 : index
    %110 = vector.load %arg11[%109, %c0_43, %c0_44] : memref<8x4x128xf32, #tpu.memory_space<vmem>>, vector<1x4x128xf32>
    %111 = vector.shape_cast %110 : vector<1x4x128xf32> to vector<4x128xf32>
    %cst_45 = arith.constant dense<0.000000e+00> : vector<4x128xf32>
    %112 = tpu.matmul %102, %4, %cst_45 {dimension_numbers = #tpu.dot_dimension_numbers<[1], [0], [0], [1], [0, 0, 1, 1], [], []>} : vector<4x32xf32>, vector<32x128xf32>, vector<4x128xf32> -> vector<4x128xf32>
    %113 = arith.addf %111, %112 : vector<4x128xf32>
    %114 = vector.extract_strided_slice %113 {offsets = [0, 0], sizes = [4, 32], strides = [1, 1]} : vector<4x128xf32> to vector<4x32xf32>
    %115 = arith.negf %114 : vector<4x32xf32>
    %116 = math.exp %115 : vector<4x32xf32>
    %cst_46 = arith.constant 1.000000e+00 : f32
    %117 = vector.broadcast %cst_46 : f32 to vector<4x32xf32>
    %118 = arith.addf %117, %116 : vector<4x32xf32>
    %119 = arith.divf %117, %118 : vector<4x32xf32>
    %120 = vector.extract_strided_slice %113 {offsets = [0, 32], sizes = [4, 32], strides = [1, 1]} : vector<4x128xf32> to vector<4x32xf32>
    %121 = arith.negf %120 : vector<4x32xf32>
    %122 = math.exp %121 : vector<4x32xf32>
    %cst_47 = arith.constant 1.000000e+00 : f32
    %123 = vector.broadcast %cst_47 : f32 to vector<4x32xf32>
    %124 = arith.addf %123, %122 : vector<4x32xf32>
    %125 = arith.divf %123, %124 : vector<4x32xf32>
    %126 = vector.extract_strided_slice %113 {offsets = [0, 64], sizes = [4, 32], strides = [1, 1]} : vector<4x128xf32> to vector<4x32xf32>
    %127 = math.tanh %126 : vector<4x32xf32>
    %128 = vector.extract_strided_slice %113 {offsets = [0, 96], sizes = [4, 32], strides = [1, 1]} : vector<4x128xf32> to vector<4x32xf32>
    %129 = arith.negf %128 : vector<4x32xf32>
    %130 = math.exp %129 : vector<4x32xf32>
    %cst_48 = arith.constant 1.000000e+00 : f32
    %131 = vector.broadcast %cst_48 : f32 to vector<4x32xf32>
    %132 = arith.addf %131, %130 : vector<4x32xf32>
    %133 = arith.divf %131, %132 : vector<4x32xf32>
    %134 = arith.mulf %125, %99 : vector<4x32xf32>
    %135 = arith.mulf %119, %127 : vector<4x32xf32>
    %136 = arith.addf %134, %135 : vector<4x32xf32>
    %137 = math.tanh %136 : vector<4x32xf32>
    %138 = arith.mulf %133, %137 : vector<4x32xf32>
    %139 = vector.broadcast %108 : i32 to vector<4x1xi32>
    %140 = arith.cmpi slt, %139, %0 : vector<4x1xi32>
    %141 = vector.shape_cast %140 : vector<4x1xi1> to vector<4x1xi1>
    %142 = vector.broadcast %141 : vector<4x1xi1> to vector<4x32xi1>
    %143 = arith.select %142, %136, %99 : vector<4x32xi1>, vector<4x32xf32>
    %144 = vector.shape_cast %140 : vector<4x1xi1> to vector<4x1xi1>
    %145 = vector.broadcast %144 : vector<4x1xi1> to vector<4x32xi1>
    %146 = arith.select %145, %138, %102 : vector<4x32xi1>, vector<4x32xf32>
    %c0_49 = arith.constant 0 : index
    %147 = arith.index_cast %108 : i32 to index
    %c0_50 = arith.constant 0 : index
    %c0_51 = arith.constant 0 : index
    %148 = vector.load %arg8[%c0_49, %147, %c0_50, %c0_51] : memref<1x8x4x32xf32, #tpu.memory_space<vmem>>, vector<1x1x4x32xf32>
    %149 = vector.shape_cast %148 : vector<1x1x4x32xf32> to vector<4x32xf32>
    %150 = vector.shape_cast %138 : vector<4x32xf32> to vector<1x1x4x32xf32>
    tpu.vector_store %arg8[%c0_49, %147, %c0_50, %c0_51], %150 {strides = array<i32>} : memref<1x8x4x32xf32, #tpu.memory_space<vmem>>, vector<1x1x4x32xf32>,
    %c3_i32 = arith.constant 3 : i32
    %c7_i32_52 = arith.constant 7 : i32
    %151 = arith.subi %c7_i32_52, %c3_i32 : i32
    %152 = arith.select %14, %151, %c3_i32 : i32
    %153 = arith.index_cast %152 : i32 to index
    %c0_53 = arith.constant 0 : index
    %c0_54 = arith.constant 0 : index
    %154 = vector.load %arg11[%153, %c0_53, %c0_54] : memref<8x4x128xf32, #tpu.memory_space<vmem>>, vector<1x4x128xf32>
    %155 = vector.shape_cast %154 : vector<1x4x128xf32> to vector<4x128xf32>
    %cst_55 = arith.constant dense<0.000000e+00> : vector<4x128xf32>
    %156 = tpu.matmul %146, %4, %cst_55 {dimension_numbers = #tpu.dot_dimension_numbers<[1], [0], [0], [1], [0, 0, 1, 1], [], []>} : vector<4x32xf32>, vector<32x128xf32>, vector<4x128xf32> -> vector<4x128xf32>
    %157 = arith.addf %155, %156 : vector<4x128xf32>
    %158 = vector.extract_strided_slice %157 {offsets = [0, 0], sizes = [4, 32], strides = [1, 1]} : vector<4x128xf32> to vector<4x32xf32>
    %159 = arith.negf %158 : vector<4x32xf32>
    %160 = math.exp %159 : vector<4x32xf32>
    %cst_56 = arith.constant 1.000000e+00 : f32
    %161 = vector.broadcast %cst_56 : f32 to vector<4x32xf32>
    %162 = arith.addf %161, %160 : vector<4x32xf32>
    %163 = arith.divf %161, %162 : vector<4x32xf32>
    %164 = vector.extract_strided_slice %157 {offsets = [0, 32], sizes = [4, 32], strides = [1, 1]} : vector<4x128xf32> to vector<4x32xf32>
    %165 = arith.negf %164 : vector<4x32xf32>
    %166 = math.exp %165 : vector<4x32xf32>
    %cst_57 = arith.constant 1.000000e+00 : f32
    %167 = vector.broadcast %cst_57 : f32 to vector<4x32xf32>
    %168 = arith.addf %167, %166 : vector<4x32xf32>
    %169 = arith.divf %167, %168 : vector<4x32xf32>
    %170 = vector.extract_strided_slice %157 {offsets = [0, 64], sizes = [4, 32], strides = [1, 1]} : vector<4x128xf32> to vector<4x32xf32>
    %171 = math.tanh %170 : vector<4x32xf32>
    %172 = vector.extract_strided_slice %157 {offsets = [0, 96], sizes = [4, 32], strides = [1, 1]} : vector<4x128xf32> to vector<4x32xf32>
    %173 = arith.negf %172 : vector<4x32xf32>
    %174 = math.exp %173 : vector<4x32xf32>
    %cst_58 = arith.constant 1.000000e+00 : f32
    %175 = vector.broadcast %cst_58 : f32 to vector<4x32xf32>
    %176 = arith.addf %175, %174 : vector<4x32xf32>
    %177 = arith.divf %175, %176 : vector<4x32xf32>
    %178 = arith.mulf %169, %143 : vector<4x32xf32>
    %179 = arith.mulf %163, %171 : vector<4x32xf32>
    %180 = arith.addf %178, %179 : vector<4x32xf32>
    %181 = math.tanh %180 : vector<4x32xf32>
    %182 = arith.mulf %177, %181 : vector<4x32xf32>
    %183 = vector.broadcast %152 : i32 to vector<4x1xi32>
    %184 = arith.cmpi slt, %183, %0 : vector<4x1xi32>
    %185 = vector.shape_cast %184 : vector<4x1xi1> to vector<4x1xi1>
    %186 = vector.broadcast %185 : vector<4x1xi1> to vector<4x32xi1>
    %187 = arith.select %186, %180, %143 : vector<4x32xi1>, vector<4x32xf32>
    %188 = vector.shape_cast %184 : vector<4x1xi1> to vector<4x1xi1>
    %189 = vector.broadcast %188 : vector<4x1xi1> to vector<4x32xi1>
    %190 = arith.select %189, %182, %146 : vector<4x32xi1>, vector<4x32xf32>
    %c0_59 = arith.constant 0 : index
    %191 = arith.index_cast %152 : i32 to index
    %c0_60 = arith.constant 0 : index
    %c0_61 = arith.constant 0 : index
    %192 = vector.load %arg8[%c0_59, %191, %c0_60, %c0_61] : memref<1x8x4x32xf32, #tpu.memory_space<vmem>>, vector<1x1x4x32xf32>
    %193 = vector.shape_cast %192 : vector<1x1x4x32xf32> to vector<4x32xf32>
    %194 = vector.shape_cast %182 : vector<4x32xf32> to vector<1x1x4x32xf32>
    tpu.vector_store %arg8[%c0_59, %191, %c0_60, %c0_61], %194 {strides = array<i32>} : memref<1x8x4x32xf32, #tpu.memory_space<vmem>>, vector<1x1x4x32xf32>,
    %c4_i32 = arith.constant 4 : i32
    %c7_i32_62 = arith.constant 7 : i32
    %195 = arith.subi %c7_i32_62, %c4_i32 : i32
    %196 = arith.select %14, %195, %c4_i32 : i32
    %197 = arith.index_cast %196 : i32 to index
    %c0_63 = arith.constant 0 : index
    %c0_64 = arith.constant 0 : index
    %198 = vector.load %arg11[%197, %c0_63, %c0_64] : memref<8x4x128xf32, #tpu.memory_space<vmem>>, vector<1x4x128xf32>
    %199 = vector.shape_cast %198 : vector<1x4x128xf32> to vector<4x128xf32>
    %cst_65 = arith.constant dense<0.000000e+00> : vector<4x128xf32>
    %200 = tpu.matmul %190, %4, %cst_65 {dimension_numbers = #tpu.dot_dimension_numbers<[1], [0], [0], [1], [0, 0, 1, 1], [], []>} : vector<4x32xf32>, vector<32x128xf32>, vector<4x128xf32> -> vector<4x128xf32>
    %201 = arith.addf %199, %200 : vector<4x128xf32>
    %202 = vector.extract_strided_slice %201 {offsets = [0, 0], sizes = [4, 32], strides = [1, 1]} : vector<4x128xf32> to vector<4x32xf32>
    %203 = arith.negf %202 : vector<4x32xf32>
    %204 = math.exp %203 : vector<4x32xf32>
    %cst_66 = arith.constant 1.000000e+00 : f32
    %205 = vector.broadcast %cst_66 : f32 to vector<4x32xf32>
    %206 = arith.addf %205, %204 : vector<4x32xf32>
    %207 = arith.divf %205, %206 : vector<4x32xf32>
    %208 = vector.extract_strided_slice %201 {offsets = [0, 32], sizes = [4, 32], strides = [1, 1]} : vector<4x128xf32> to vector<4x32xf32>
    %209 = arith.negf %208 : vector<4x32xf32>
    %210 = math.exp %209 : vector<4x32xf32>
    %cst_67 = arith.constant 1.000000e+00 : f32
    %211 = vector.broadcast %cst_67 : f32 to vector<4x32xf32>
    %212 = arith.addf %211, %210 : vector<4x32xf32>
    %213 = arith.divf %211, %212 : vector<4x32xf32>
    %214 = vector.extract_strided_slice %201 {offsets = [0, 64], sizes = [4, 32], strides = [1, 1]} : vector<4x128xf32> to vector<4x32xf32>
    %215 = math.tanh %214 : vector<4x32xf32>
    %216 = vector.extract_strided_slice %201 {offsets = [0, 96], sizes = [4, 32], strides = [1, 1]} : vector<4x128xf32> to vector<4x32xf32>
    %217 = arith.negf %216 : vector<4x32xf32>
    %218 = math.exp %217 : vector<4x32xf32>
    %cst_68 = arith.constant 1.000000e+00 : f32
    %219 = vector.broadcast %cst_68 : f32 to vector<4x32xf32>
    %220 = arith.addf %219, %218 : vector<4x32xf32>
    %221 = arith.divf %219, %220 : vector<4x32xf32>
    %222 = arith.mulf %213, %187 : vector<4x32xf32>
    %223 = arith.mulf %207, %215 : vector<4x32xf32>
    %224 = arith.addf %222, %223 : vector<4x32xf32>
    %225 = math.tanh %224 : vector<4x32xf32>
    %226 = arith.mulf %221, %225 : vector<4x32xf32>
    %227 = vector.broadcast %196 : i32 to vector<4x1xi32>
    %228 = arith.cmpi slt, %227, %0 : vector<4x1xi32>
    %229 = vector.shape_cast %228 : vector<4x1xi1> to vector<4x1xi1>
    %230 = vector.broadcast %229 : vector<4x1xi1> to vector<4x32xi1>
    %231 = arith.select %230, %224, %187 : vector<4x32xi1>, vector<4x32xf32>
    %232 = vector.shape_cast %228 : vector<4x1xi1> to vector<4x1xi1>
    %233 = vector.broadcast %232 : vector<4x1xi1> to vector<4x32xi1>
    %234 = arith.select %233, %226, %190 : vector<4x32xi1>, vector<4x32xf32>
    %c0_69 = arith.constant 0 : index
    %235 = arith.index_cast %196 : i32 to index
    %c0_70 = arith.constant 0 : index
    %c0_71 = arith.constant 0 : index
    %236 = vector.load %arg8[%c0_69, %235, %c0_70, %c0_71] : memref<1x8x4x32xf32, #tpu.memory_space<vmem>>, vector<1x1x4x32xf32>
    %237 = vector.shape_cast %236 : vector<1x1x4x32xf32> to vector<4x32xf32>
    %238 = vector.shape_cast %226 : vector<4x32xf32> to vector<1x1x4x32xf32>
    tpu.vector_store %arg8[%c0_69, %235, %c0_70, %c0_71], %238 {strides = array<i32>} : memref<1x8x4x32xf32, #tpu.memory_space<vmem>>, vector<1x1x4x32xf32>,
    %c5_i32 = arith.constant 5 : i32
    %c7_i32_72 = arith.constant 7 : i32
    %239 = arith.subi %c7_i32_72, %c5_i32 : i32
    %240 = arith.select %14, %239, %c5_i32 : i32
    %241 = arith.index_cast %240 : i32 to index
    %c0_73 = arith.constant 0 : index
    %c0_74 = arith.constant 0 : index
    %242 = vector.load %arg11[%241, %c0_73, %c0_74] : memref<8x4x128xf32, #tpu.memory_space<vmem>>, vector<1x4x128xf32>
    %243 = vector.shape_cast %242 : vector<1x4x128xf32> to vector<4x128xf32>
    %cst_75 = arith.constant dense<0.000000e+00> : vector<4x128xf32>
    %244 = tpu.matmul %234, %4, %cst_75 {dimension_numbers = #tpu.dot_dimension_numbers<[1], [0], [0], [1], [0, 0, 1, 1], [], []>} : vector<4x32xf32>, vector<32x128xf32>, vector<4x128xf32> -> vector<4x128xf32>
    %245 = arith.addf %243, %244 : vector<4x128xf32>
    %246 = vector.extract_strided_slice %245 {offsets = [0, 0], sizes = [4, 32], strides = [1, 1]} : vector<4x128xf32> to vector<4x32xf32>
    %247 = arith.negf %246 : vector<4x32xf32>
    %248 = math.exp %247 : vector<4x32xf32>
    %cst_76 = arith.constant 1.000000e+00 : f32
    %249 = vector.broadcast %cst_76 : f32 to vector<4x32xf32>
    %250 = arith.addf %249, %248 : vector<4x32xf32>
    %251 = arith.divf %249, %250 : vector<4x32xf32>
    %252 = vector.extract_strided_slice %245 {offsets = [0, 32], sizes = [4, 32], strides = [1, 1]} : vector<4x128xf32> to vector<4x32xf32>
    %253 = arith.negf %252 : vector<4x32xf32>
    %254 = math.exp %253 : vector<4x32xf32>
    %cst_77 = arith.constant 1.000000e+00 : f32
    %255 = vector.broadcast %cst_77 : f32 to vector<4x32xf32>
    %256 = arith.addf %255, %254 : vector<4x32xf32>
    %257 = arith.divf %255, %256 : vector<4x32xf32>
    %258 = vector.extract_strided_slice %245 {offsets = [0, 64], sizes = [4, 32], strides = [1, 1]} : vector<4x128xf32> to vector<4x32xf32>
    %259 = math.tanh %258 : vector<4x32xf32>
    %260 = vector.extract_strided_slice %245 {offsets = [0, 96], sizes = [4, 32], strides = [1, 1]} : vector<4x128xf32> to vector<4x32xf32>
    %261 = arith.negf %260 : vector<4x32xf32>
    %262 = math.exp %261 : vector<4x32xf32>
    %cst_78 = arith.constant 1.000000e+00 : f32
    %263 = vector.broadcast %cst_78 : f32 to vector<4x32xf32>
    %264 = arith.addf %263, %262 : vector<4x32xf32>
    %265 = arith.divf %263, %264 : vector<4x32xf32>
    %266 = arith.mulf %257, %231 : vector<4x32xf32>
    %267 = arith.mulf %251, %259 : vector<4x32xf32>
    %268 = arith.addf %266, %267 : vector<4x32xf32>
    %269 = math.tanh %268 : vector<4x32xf32>
    %270 = arith.mulf %265, %269 : vector<4x32xf32>
    %271 = vector.broadcast %240 : i32 to vector<4x1xi32>
    %272 = arith.cmpi slt, %271, %0 : vector<4x1xi32>
    %273 = vector.shape_cast %272 : vector<4x1xi1> to vector<4x1xi1>
    %274 = vector.broadcast %273 : vector<4x1xi1> to vector<4x32xi1>
    %275 = arith.select %274, %268, %231 : vector<4x32xi1>, vector<4x32xf32>
    %276 = vector.shape_cast %272 : vector<4x1xi1> to vector<4x1xi1>
    %277 = vector.broadcast %276 : vector<4x1xi1> to vector<4x32xi1>
    %278 = arith.select %277, %270, %234 : vector<4x32xi1>, vector<4x32xf32>
    %c0_79 = arith.constant 0 : index
    %279 = arith.index_cast %240 : i32 to index
    %c0_80 = arith.constant 0 : index
    %c0_81 = arith.constant 0 : index
    %280 = vector.load %arg8[%c0_79, %279, %c0_80, %c0_81] : memref<1x8x4x32xf32, #tpu.memory_space<vmem>>, vector<1x1x4x32xf32>
    %281 = vector.shape_cast %280 : vector<1x1x4x32xf32> to vector<4x32xf32>
    %282 = vector.shape_cast %270 : vector<4x32xf32> to vector<1x1x4x32xf32>
    tpu.vector_store %arg8[%c0_79, %279, %c0_80, %c0_81], %282 {strides = array<i32>} : memref<1x8x4x32xf32, #tpu.memory_space<vmem>>, vector<1x1x4x32xf32>,
    %c6_i32 = arith.constant 6 : i32
    %c7_i32_82 = arith.constant 7 : i32
    %283 = arith.subi %c7_i32_82, %c6_i32 : i32
    %284 = arith.select %14, %283, %c6_i32 : i32
    %285 = arith.index_cast %284 : i32 to index
    %c0_83 = arith.constant 0 : index
    %c0_84 = arith.constant 0 : index
    %286 = vector.load %arg11[%285, %c0_83, %c0_84] : memref<8x4x128xf32, #tpu.memory_space<vmem>>, vector<1x4x128xf32>
    %287 = vector.shape_cast %286 : vector<1x4x128xf32> to vector<4x128xf32>
    %cst_85 = arith.constant dense<0.000000e+00> : vector<4x128xf32>
    %288 = tpu.matmul %278, %4, %cst_85 {dimension_numbers = #tpu.dot_dimension_numbers<[1], [0], [0], [1], [0, 0, 1, 1], [], []>} : vector<4x32xf32>, vector<32x128xf32>, vector<4x128xf32> -> vector<4x128xf32>
    %289 = arith.addf %287, %288 : vector<4x128xf32>
    %290 = vector.extract_strided_slice %289 {offsets = [0, 0], sizes = [4, 32], strides = [1, 1]} : vector<4x128xf32> to vector<4x32xf32>
    %291 = arith.negf %290 : vector<4x32xf32>
    %292 = math.exp %291 : vector<4x32xf32>
    %cst_86 = arith.constant 1.000000e+00 : f32
    %293 = vector.broadcast %cst_86 : f32 to vector<4x32xf32>
    %294 = arith.addf %293, %292 : vector<4x32xf32>
    %295 = arith.divf %293, %294 : vector<4x32xf32>
    %296 = vector.extract_strided_slice %289 {offsets = [0, 32], sizes = [4, 32], strides = [1, 1]} : vector<4x128xf32> to vector<4x32xf32>
    %297 = arith.negf %296 : vector<4x32xf32>
    %298 = math.exp %297 : vector<4x32xf32>
    %cst_87 = arith.constant 1.000000e+00 : f32
    %299 = vector.broadcast %cst_87 : f32 to vector<4x32xf32>
    %300 = arith.addf %299, %298 : vector<4x32xf32>
    %301 = arith.divf %299, %300 : vector<4x32xf32>
    %302 = vector.extract_strided_slice %289 {offsets = [0, 64], sizes = [4, 32], strides = [1, 1]} : vector<4x128xf32> to vector<4x32xf32>
    %303 = math.tanh %302 : vector<4x32xf32>
    %304 = vector.extract_strided_slice %289 {offsets = [0, 96], sizes = [4, 32], strides = [1, 1]} : vector<4x128xf32> to vector<4x32xf32>
    %305 = arith.negf %304 : vector<4x32xf32>
    %306 = math.exp %305 : vector<4x32xf32>
    %cst_88 = arith.constant 1.000000e+00 : f32
    %307 = vector.broadcast %cst_88 : f32 to vector<4x32xf32>
    %308 = arith.addf %307, %306 : vector<4x32xf32>
    %309 = arith.divf %307, %308 : vector<4x32xf32>
    %310 = arith.mulf %301, %275 : vector<4x32xf32>
    %311 = arith.mulf %295, %303 : vector<4x32xf32>
    %312 = arith.addf %310, %311 : vector<4x32xf32>
    %313 = math.tanh %312 : vector<4x32xf32>
    %314 = arith.mulf %309, %313 : vector<4x32xf32>
    %315 = vector.broadcast %284 : i32 to vector<4x1xi32>
    %316 = arith.cmpi slt, %315, %0 : vector<4x1xi32>
    %317 = vector.shape_cast %316 : vector<4x1xi1> to vector<4x1xi1>
    %318 = vector.broadcast %317 : vector<4x1xi1> to vector<4x32xi1>
    %319 = arith.select %318, %312, %275 : vector<4x32xi1>, vector<4x32xf32>
    %320 = vector.shape_cast %316 : vector<4x1xi1> to vector<4x1xi1>
    %321 = vector.broadcast %320 : vector<4x1xi1> to vector<4x32xi1>
    %322 = arith.select %321, %314, %278 : vector<4x32xi1>, vector<4x32xf32>
    %c0_89 = arith.constant 0 : index
    %323 = arith.index_cast %284 : i32 to index
    %c0_90 = arith.constant 0 : index
    %c0_91 = arith.constant 0 : index
    %324 = vector.load %arg8[%c0_89, %323, %c0_90, %c0_91] : memref<1x8x4x32xf32, #tpu.memory_space<vmem>>, vector<1x1x4x32xf32>
    %325 = vector.shape_cast %324 : vector<1x1x4x32xf32> to vector<4x32xf32>
    %326 = vector.shape_cast %314 : vector<4x32xf32> to vector<1x1x4x32xf32>
    tpu.vector_store %arg8[%c0_89, %323, %c0_90, %c0_91], %326 {strides = array<i32>} : memref<1x8x4x32xf32, #tpu.memory_space<vmem>>, vector<1x1x4x32xf32>,
    %c7_i32_92 = arith.constant 7 : i32
    %c7_i32_93 = arith.constant 7 : i32
    %327 = arith.subi %c7_i32_93, %c7_i32_92 : i32
    %328 = arith.select %14, %327, %c7_i32_92 : i32
    %329 = arith.index_cast %328 : i32 to index
    %c0_94 = arith.constant 0 : index
    %c0_95 = arith.constant 0 : index
    %330 = vector.load %arg11[%329, %c0_94, %c0_95] : memref<8x4x128xf32, #tpu.memory_space<vmem>>, vector<1x4x128xf32>
    %331 = vector.shape_cast %330 : vector<1x4x128xf32> to vector<4x128xf32>
    %cst_96 = arith.constant dense<0.000000e+00> : vector<4x128xf32>
    %332 = tpu.matmul %322, %4, %cst_96 {dimension_numbers = #tpu.dot_dimension_numbers<[1], [0], [0], [1], [0, 0, 1, 1], [], []>} : vector<4x32xf32>, vector<32x128xf32>, vector<4x128xf32> -> vector<4x128xf32>
    %333 = arith.addf %331, %332 : vector<4x128xf32>
    %334 = vector.extract_strided_slice %333 {offsets = [0, 0], sizes = [4, 32], strides = [1, 1]} : vector<4x128xf32> to vector<4x32xf32>
    %335 = arith.negf %334 : vector<4x32xf32>
    %336 = math.exp %335 : vector<4x32xf32>
    %cst_97 = arith.constant 1.000000e+00 : f32
    %337 = vector.broadcast %cst_97 : f32 to vector<4x32xf32>
    %338 = arith.addf %337, %336 : vector<4x32xf32>
    %339 = arith.divf %337, %338 : vector<4x32xf32>
    %340 = vector.extract_strided_slice %333 {offsets = [0, 32], sizes = [4, 32], strides = [1, 1]} : vector<4x128xf32> to vector<4x32xf32>
    %341 = arith.negf %340 : vector<4x32xf32>
    %342 = math.exp %341 : vector<4x32xf32>
    %cst_98 = arith.constant 1.000000e+00 : f32
    %343 = vector.broadcast %cst_98 : f32 to vector<4x32xf32>
    %344 = arith.addf %343, %342 : vector<4x32xf32>
    %345 = arith.divf %343, %344 : vector<4x32xf32>
    %346 = vector.extract_strided_slice %333 {offsets = [0, 64], sizes = [4, 32], strides = [1, 1]} : vector<4x128xf32> to vector<4x32xf32>
    %347 = math.tanh %346 : vector<4x32xf32>
    %348 = vector.extract_strided_slice %333 {offsets = [0, 96], sizes = [4, 32], strides = [1, 1]} : vector<4x128xf32> to vector<4x32xf32>
    %349 = arith.negf %348 : vector<4x32xf32>
    %350 = math.exp %349 : vector<4x32xf32>
    %cst_99 = arith.constant 1.000000e+00 : f32
    %351 = vector.broadcast %cst_99 : f32 to vector<4x32xf32>
    %352 = arith.addf %351, %350 : vector<4x32xf32>
    %353 = arith.divf %351, %352 : vector<4x32xf32>
    %354 = arith.mulf %345, %319 : vector<4x32xf32>
    %355 = arith.mulf %339, %347 : vector<4x32xf32>
    %356 = arith.addf %354, %355 : vector<4x32xf32>
    %357 = math.tanh %356 : vector<4x32xf32>
    %358 = arith.mulf %353, %357 : vector<4x32xf32>
    %359 = vector.broadcast %328 : i32 to vector<4x1xi32>
    %360 = arith.cmpi slt, %359, %0 : vector<4x1xi32>
    %361 = vector.shape_cast %360 : vector<4x1xi1> to vector<4x1xi1>
    %362 = vector.broadcast %361 : vector<4x1xi1> to vector<4x32xi1>
    %363 = arith.select %362, %356, %319 : vector<4x32xi1>, vector<4x32xf32>
    %364 = vector.shape_cast %360 : vector<4x1xi1> to vector<4x1xi1>
    %365 = vector.broadcast %364 : vector<4x1xi1> to vector<4x32xi1>
    %366 = arith.select %365, %358, %322 : vector<4x32xi1>, vector<4x32xf32>
    %c0_100 = arith.constant 0 : index
    %367 = arith.index_cast %328 : i32 to index
    %c0_101 = arith.constant 0 : index
    %c0_102 = arith.constant 0 : index
    %368 = vector.load %arg8[%c0_100, %367, %c0_101, %c0_102] : memref<1x8x4x32xf32, #tpu.memory_space<vmem>>, vector<1x1x4x32xf32>
    %369 = vector.shape_cast %368 : vector<1x1x4x32xf32> to vector<4x32xf32>
    %370 = vector.shape_cast %358 : vector<4x32xf32> to vector<1x1x4x32xf32>
    tpu.vector_store %arg8[%c0_100, %367, %c0_101, %c0_102], %370 {strides = array<i32>} : memref<1x8x4x32xf32, #tpu.memory_space<vmem>>, vector<1x1x4x32xf32>,
    %c8_i32 = arith.constant 8 : i32
    %371 = tpu.iota {dimensions = array<i32: 0>} : vector<8x4x1xi32>
    %372 = vector.shape_cast %0 : vector<4x1xi32> to vector<1x4x1xi32>
    %373 = vector.broadcast %372 : vector<1x4x1xi32> to vector<8x4x1xi32>
    %374 = arith.cmpi slt, %371, %373 : vector<8x4x1xi32>
    %c0_103 = arith.constant 0 : index
    %c0_104 = arith.constant 0 : index
    %c0_105 = arith.constant 0 : index
    %c0_106 = arith.constant 0 : index
    %375 = vector.load %arg8[%c0_103, %c0_104, %c0_105, %c0_106] : memref<1x8x4x32xf32, #tpu.memory_space<vmem>>, vector<1x8x4x32xf32>
    %376 = vector.shape_cast %375 : vector<1x8x4x32xf32> to vector<8x4x32xf32>
    %cst_107 = arith.constant 0.000000e+00 : f32
    %377 = vector.shape_cast %374 : vector<8x4x1xi1> to vector<8x4x1xi1>
    %378 = vector.broadcast %377 : vector<8x4x1xi1> to vector<8x4x32xi1>
    %379 = vector.broadcast %cst_107 : f32 to vector<8x4x32xf32>
    %380 = arith.select %378, %376, %379 : vector<8x4x32xi1>, vector<8x4x32xf32>
    %c0_108 = arith.constant 0 : index
    %c0_109 = arith.constant 0 : index
    %c0_110 = arith.constant 0 : index
    %c0_111 = arith.constant 0 : index
    %381 = vector.load %arg8[%c0_108, %c0_109, %c0_110, %c0_111] : memref<1x8x4x32xf32, #tpu.memory_space<vmem>>, vector<1x8x4x32xf32>
    %382 = vector.shape_cast %381 : vector<1x8x4x32xf32> to vector<8x4x32xf32>
    %383 = vector.shape_cast %380 : vector<8x4x32xf32> to vector<1x8x4x32xf32>
    tpu.vector_store %arg8[%c0_108, %c0_109, %c0_110, %c0_111], %383 {strides = array<i32>} : memref<1x8x4x32xf32, #tpu.memory_space<vmem>>, vector<1x8x4x32xf32>,
    %c0_112 = arith.constant 0 : index
    %c0_113 = arith.constant 0 : index
    %c0_114 = arith.constant 0 : index
    %384 = vector.load %arg9[%c0_112, %c0_113, %c0_114] : memref<1x4x32xf32, #tpu.memory_space<vmem>>, vector<1x4x32xf32>
    %385 = vector.shape_cast %384 : vector<1x4x32xf32> to vector<4x32xf32>
    %386 = vector.shape_cast %366 : vector<4x32xf32> to vector<1x4x32xf32>
    tpu.vector_store %arg9[%c0_112, %c0_113, %c0_114], %386 {strides = array<i32>} : memref<1x4x32xf32, #tpu.memory_space<vmem>>, vector<1x4x32xf32>,
    %c0_115 = arith.constant 0 : index
    %c0_116 = arith.constant 0 : index
    %c0_117 = arith.constant 0 : index
    %387 = vector.load %arg10[%c0_115, %c0_116, %c0_117] : memref<1x4x32xf32, #tpu.memory_space<vmem>>, vector<1x4x32xf32>
    %388 = vector.shape_cast %387 : vector<1x4x32xf32> to vector<4x32xf32>
    %389 = vector.shape_cast %363 : vector<4x32xf32> to vector<1x4x32xf32>
    tpu.vector_store %arg10[%c0_115, %c0_116, %c0_117], %389 {strides = array<i32>} : memref<1x4x32xf32, #tpu.memory_space<vmem>>, vector<1x4x32xf32>,
    return
  }
  func.func @transform_0(%arg0: i32) -> (i32, i32, i32) {
    %c0_i32 = arith.constant 0 : i32
    %c0_i32_0 = arith.constant 0 : i32
    %c0_i32_1 = arith.constant 0 : i32
    %c0_i32_2 = arith.constant 0 : i32
    return %c0_i32, %c0_i32_0, %c0_i32_1 : i32, i32, i32
  }
  func.func @transform_1(%arg0: i32) -> (i32, i32) {
    %c0_i32 = arith.constant 0 : i32
    %c0_i32_0 = arith.constant 0 : i32
    %c0_i32_1 = arith.constant 0 : i32
    return %c0_i32, %c0_i32_0 : i32, i32
  }
  func.func @transform_2(%arg0: i32) -> (i32, i32, i32) {
    %c0_i32 = arith.constant 0 : i32
    %c0_i32_0 = arith.constant 0 : i32
    %c0_i32_1 = arith.constant 0 : i32
    return %arg0, %c0_i32, %c0_i32_0 : i32, i32, i32
  }
  func.func @transform_3(%arg0: i32) -> (i32, i32, i32) {
    %c0_i32 = arith.constant 0 : i32
    %c0_i32_0 = arith.constant 0 : i32
    %c0_i32_1 = arith.constant 0 : i32
    return %arg0, %c0_i32, %c0_i32_0 : i32, i32, i32
  }
  func.func @transform_4(%arg0: i32) -> (i32, i32, i32) {
    %c0_i32 = arith.constant 0 : i32
    %c0_i32_0 = arith.constant 0 : i32
    %c0_i32_1 = arith.constant 0 : i32
    return %arg0, %c0_i32, %c0_i32_0 : i32, i32, i32
  }
  func.func @transform_5(%arg0: i32) -> (i32, i32, i32) {
    %c0_i32 = arith.constant 0 : i32
    %c0_i32_0 = arith.constant 0 : i32
    %c0_i32_1 = arith.constant 0 : i32
    return %arg0, %c0_i32, %c0_i32_0 : i32, i32, i32
  }
  func.func @transform_6(%arg0: i32) -> (i32, i32, i32) {
    %c0_i32 = arith.constant 0 : i32
    %c0_i32_0 = arith.constant 0 : i32
    %c0_i32_1 = arith.constant 0 : i32
    return %arg0, %c0_i32, %c0_i32_0 : i32, i32, i32
  }
  func.func @transform_7(%arg0: i32) -> (i32, i32, i32, i32) {
    %c0_i32 = arith.constant 0 : i32
    %c0_i32_0 = arith.constant 0 : i32
    %c0_i32_1 = arith.constant 0 : i32
    %c0_i32_2 = arith.constant 0 : i32
    return %arg0, %c0_i32, %c0_i32_0, %c0_i32_1 : i32, i32, i32, i32
  }
  func.func @transform_8(%arg0: i32) -> (i32, i32, i32) {
    %c0_i32 = arith.constant 0 : i32
    %c0_i32_0 = arith.constant 0 : i32
    %c0_i32_1 = arith.constant 0 : i32
    return %arg0, %c0_i32, %c0_i32_0 : i32, i32, i32
  }
  func.func @transform_9(%arg0: i32) -> (i32, i32, i32) {
    %c0_i32 = arith.constant 0 : i32
    %c0_i32_0 = arith.constant 0 : i32
    %c0_i32_1 = arith.constant 0 : i32
    return %arg0, %c0_i32, %c0_i32_0 : i32, i32, i32
  }
}

module attributes {stable_mosaic.version = 11 : i64} {
  func.func @lstm_direction_kernel(%arg0: i32, %arg1: memref<8x4x64xf32, #tpu.memory_space<vmem>>, %arg2: memref<4x1xi32, #tpu.memory_space<vmem>>, %arg3: memref<1x64x128xf32, #tpu.memory_space<vmem>>, %arg4: memref<1x32x128xf32, #tpu.memory_space<vmem>>, %arg5: memref<1x1x128xf32, #tpu.memory_space<vmem>>, %arg6: memref<1x4x32xf32, #tpu.memory_space<vmem>>, %arg7: memref<1x4x32xf32, #tpu.memory_space<vmem>>, %arg8: memref<1x8x4x32xf32, #tpu.memory_space<vmem>>, %arg9: memref<1x4x32xf32, #tpu.memory_space<vmem>>, %arg10: memref<1x4x32xf32, #tpu.memory_space<vmem>>, %arg11: memref<8x4x128xf32, #tpu.memory_space<vmem>>) attributes {dimension_semantics = [#tpu.dimension_semantics<parallel>], iteration_bounds = array<i64: 2>, scalar_prefetch = 0 : i64, scratch_operands = 1 : i64, tpu.core_type = #tpu.core_type<tc>, window_params = [{pipeline_mode = #tpu.pipeline_mode<synchronous>, transform_indices = @transform_0, window_bounds = array<i64: 8, 4, 64>}, {pipeline_mode = #tpu.pipeline_mode<synchronous>, transform_indices = @transform_1, window_bounds = array<i64: 4, 1>}, {transform_indices = @transform_2, window_bounds = array<i64: 1, 64, 128>}, {transform_indices = @transform_3, window_bounds = array<i64: 1, 32, 128>}, {transform_indices = @transform_4, window_bounds = array<i64: 1, 1, 128>}, {transform_indices = @transform_5, window_bounds = array<i64: 1, 4, 32>}, {transform_indices = @transform_6, window_bounds = array<i64: 1, 4, 32>}, {transform_indices = @transform_7, window_bounds = array<i64: 1, 8, 4, 32>}, {transform_indices = @transform_8, window_bounds = array<i64: 1, 4, 32>}, {transform_indices = @transform_9, window_bounds = array<i64: 1, 4, 32>}]} {
    %c0 = arith.constant 0 : index
    %c0_0 = arith.constant 0 : index
    %0 = vector.load %arg2[%c0, %c0_0] : memref<4x1xi32, #tpu.memory_space<vmem>>, vector<4x1xi32>
    %c0_1 = arith.constant 0 : index
    %c0_2 = arith.constant 0 : index
    %c0_3 = arith.constant 0 : index
    %1 = vector.load %arg3[%c0_1, %c0_2, %c0_3] : memref<1x64x128xf32, #tpu.memory_space<vmem>>, vector<1x64x128xf32>
    %2 = vector.shape_cast %1 : vector<1x64x128xf32> to vector<64x128xf32>
    %c0_4 = arith.constant 0 : index
    %c0_5 = arith.constant 0 : index
    %c0_6 = arith.constant 0 : index
    %3 = vector.load %arg4[%c0_4, %c0_5, %c0_6] : memref<1x32x128xf32, #tpu.memory_space<vmem>>, vector<1x32x128xf32>
    %4 = vector.shape_cast %3 : vector<1x32x128xf32> to vector<32x128xf32>
    %c0_7 = arith.constant 0 : index
    %c0_8 = arith.constant 0 : index
    %c0_9 = arith.constant 0 : index
    %5 = vector.load %arg5[%c0_7, %c0_8, %c0_9] : memref<1x1x128xf32, #tpu.memory_space<vmem>>, vector<1x1x128xf32>
    %6 = vector.shape_cast %5 : vector<1x1x128xf32> to vector<1x128xf32>
    %c0_10 = arith.constant 0 : index
    %c0_11 = arith.constant 0 : index
    %c0_12 = arith.constant 0 : index
    %7 = vector.load %arg1[%c0_10, %c0_11, %c0_12] : memref<8x4x64xf32, #tpu.memory_space<vmem>>, vector<8x4x64xf32>
    %8 = vector.shape_cast %7 : vector<8x4x64xf32> to vector<32x64xf32>
    %cst = arith.constant dense<0.000000e+00> : vector<32x128xf32>
    %9 = tpu.matmul %8, %2, %cst {dimension_numbers = #tpu.dot_dimension_numbers<[1], [0], [0], [1], [0, 0, 1, 1], [], []>} : vector<32x64xf32>, vector<64x128xf32>, vector<32x128xf32> -> vector<32x128xf32>
    %10 = vector.broadcast %6 : vector<1x128xf32> to vector<32x128xf32>
    %11 = arith.addf %9, %10 : vector<32x128xf32>
    %12 = vector.shape_cast %11 : vector<32x128xf32> to vector<8x4x128xf32>
    %c0_13 = arith.constant 0 : index
    %c0_14 = arith.constant 0 : index
    %c0_15 = arith.constant 0 : index
    %13 = vector.load %arg11[%c0_13, %c0_14, %c0_15] : memref<8x4x128xf32, #tpu.memory_space<vmem>>, vector<8x4x128xf32>
    tpu.vector_store %arg11[%c0_13, %c0_14, %c0_15], %12 {strides = array<i32>} : memref<8x4x128xf32, #tpu.memory_space<vmem>>, vector<8x4x128xf32>,
    %c1_i32 = arith.constant 1 : i32
    %14 = arith.cmpi eq, %arg0, %c1_i32 : i32
    %c0_16 = arith.constant 0 : index
    %c0_17 = arith.constant 0 : index
    %c0_18 = arith.constant 0 : index
    %15 = vector.load %arg6[%c0_16, %c0_17, %c0_18] : memref<1x4x32xf32, #tpu.memory_space<vmem>>, vector<1x4x32xf32>
    %16 = vector.shape_cast %15 : vector<1x4x32xf32> to vector<4x32xf32>
    %c0_19 = arith.constant 0 : index
    %c0_20 = arith.constant 0 : index
    %c0_21 = arith.constant 0 : index
    %17 = vector.load %arg7[%c0_19, %c0_20, %c0_21] : memref<1x4x32xf32, #tpu.memory_space<vmem>>, vector<1x4x32xf32>
    %18 = vector.shape_cast %17 : vector<1x4x32xf32> to vector<4x32xf32>
    %c0_i32 = arith.constant 0 : i32
    %c7_i32 = arith.constant 7 : i32
    %19 = arith.subi %c7_i32, %c0_i32 : i32
    %20 = arith.select %14, %19, %c0_i32 : i32
    %21 = arith.index_cast %20 : i32 to index
    %c0_22 = arith.constant 0 : index
    %c0_23 = arith.constant 0 : index
    %22 = vector.load %arg11[%21, %c0_22, %c0_23] : memref<8x4x128xf32, #tpu.memory_space<vmem>>, vector<1x4x128xf32>
    %23 = vector.shape_cast %22 : vector<1x4x128xf32> to vector<4x128xf32>
    %cst_24 = arith.constant dense<0.000000e+00> : vector<4x128xf32>
    %24 = tpu.matmul %16, %4, %cst_24 {dimension_numbers = #tpu.dot_dimension_numbers<[1], [0], [0], [1], [0, 0, 1, 1], [], []>} : vector<4x32xf32>, vector<32x128xf32>, vector<4x128xf32> -> vector<4x128xf32>
    %25 = arith.addf %23, %24 : vector<4x128xf32>
    %26 = vector.extract_strided_slice %25 {offsets = [0, 0], sizes = [4, 32], strides = [1, 1]} : vector<4x128xf32> to vector<4x32xf32>
    %27 = arith.negf %26 : vector<4x32xf32>
    %28 = math.exp %27 : vector<4x32xf32>
    %cst_25 = arith.constant 1.000000e+00 : f32
    %29 = vector.broadcast %cst_25 : f32 to vector<4x32xf32>
    %30 = arith.addf %29, %28 : vector<4x32xf32>
    %31 = arith.divf %29, %30 : vector<4x32xf32>
    %32 = vector.extract_strided_slice %25 {offsets = [0, 32], sizes = [4, 32], strides = [1, 1]} : vector<4x128xf32> to vector<4x32xf32>
    %33 = arith.negf %32 : vector<4x32xf32>
    %34 = math.exp %33 : vector<4x32xf32>
    %cst_26 = arith.constant 1.000000e+00 : f32
    %35 = vector.broadcast %cst_26 : f32 to vector<4x32xf32>
    %36 = arith.addf %35, %34 : vector<4x32xf32>
    %37 = arith.divf %35, %36 : vector<4x32xf32>
    %38 = vector.extract_strided_slice %25 {offsets = [0, 64], sizes = [4, 32], strides = [1, 1]} : vector<4x128xf32> to vector<4x32xf32>
    %39 = math.tanh %38 : vector<4x32xf32>
    %40 = vector.extract_strided_slice %25 {offsets = [0, 96], sizes = [4, 32], strides = [1, 1]} : vector<4x128xf32> to vector<4x32xf32>
    %41 = arith.negf %40 : vector<4x32xf32>
    %42 = math.exp %41 : vector<4x32xf32>
    %cst_27 = arith.constant 1.000000e+00 : f32
    %43 = vector.broadcast %cst_27 : f32 to vector<4x32xf32>
    %44 = arith.addf %43, %42 : vector<4x32xf32>
    %45 = arith.divf %43, %44 : vector<4x32xf32>
    %46 = arith.mulf %37, %18 : vector<4x32xf32>
    %47 = arith.mulf %31, %39 : vector<4x32xf32>
    %48 = arith.addf %46, %47 : vector<4x32xf32>
    %49 = math.tanh %48 : vector<4x32xf32>
    %50 = arith.mulf %45, %49 : vector<4x32xf32>
    %51 = vector.broadcast %20 : i32 to vector<4x1xi32>
    %52 = arith.cmpi slt, %51, %0 : vector<4x1xi32>
    %53 = vector.shape_cast %52 : vector<4x1xi1> to vector<4x1xi1>
    %54 = vector.broadcast %53 : vector<4x1xi1> to vector<4x32xi1>
    %55 = arith.select %54, %48, %18 : vector<4x32xi1>, vector<4x32xf32>
    %56 = vector.shape_cast %52 : vector<4x1xi1> to vector<4x1xi1>
    %57 = vector.broadcast %56 : vector<4x1xi1> to vector<4x32xi1>
    %58 = arith.select %57, %50, %16 : vector<4x32xi1>, vector<4x32xf32>
    %c0_28 = arith.constant 0 : index
    %59 = arith.index_cast %20 : i32 to index
    %c0_29 = arith.constant 0 : index
    %c0_30 = arith.constant 0 : index
    %60 = vector.load %arg8[%c0_28, %59, %c0_29, %c0_30] : memref<1x8x4x32xf32, #tpu.memory_space<vmem>>, vector<1x1x4x32xf32>
    %61 = vector.shape_cast %60 : vector<1x1x4x32xf32> to vector<4x32xf32>
    %62 = vector.shape_cast %50 : vector<4x32xf32> to vector<1x1x4x32xf32>
    tpu.vector_store %arg8[%c0_28, %59, %c0_29, %c0_30], %62 {strides = array<i32>} : memref<1x8x4x32xf32, #tpu.memory_space<vmem>>, vector<1x1x4x32xf32>,
    %c1_i32_31 = arith.constant 1 : i32
    %c7_i32_32 = arith.constant 7 : i32
    %63 = arith.subi %c7_i32_32, %c1_i32_31 : i32
    %64 = arith.select %14, %63, %c1_i32_31 : i32
    %65 = arith.index_cast %64 : i32 to index
    %c0_33 = arith.constant 0 : index
    %c0_34 = arith.constant 0 : index
    %66 = vector.load %arg11[%65, %c0_33, %c0_34] : memref<8x4x128xf32, #tpu.memory_space<vmem>>, vector<1x4x128xf32>
    %67 = vector.shape_cast %66 : vector<1x4x128xf32> to vector<4x128xf32>
    %cst_35 = arith.constant dense<0.000000e+00> : vector<4x128xf32>
    %68 = tpu.matmul %58, %4, %cst_35 {dimension_numbers = #tpu.dot_dimension_numbers<[1], [0], [0], [1], [0, 0, 1, 1], [], []>} : vector<4x32xf32>, vector<32x128xf32>, vector<4x128xf32> -> vector<4x128xf32>
    %69 = arith.addf %67, %68 : vector<4x128xf32>
    %70 = vector.extract_strided_slice %69 {offsets = [0, 0], sizes = [4, 32], strides = [1, 1]} : vector<4x128xf32> to vector<4x32xf32>
    %71 = arith.negf %70 : vector<4x32xf32>
    %72 = math.exp %71 : vector<4x32xf32>
    %cst_36 = arith.constant 1.000000e+00 : f32
    %73 = vector.broadcast %cst_36 : f32 to vector<4x32xf32>
    %74 = arith.addf %73, %72 : vector<4x32xf32>
    %75 = arith.divf %73, %74 : vector<4x32xf32>
    %76 = vector.extract_strided_slice %69 {offsets = [0, 32], sizes = [4, 32], strides = [1, 1]} : vector<4x128xf32> to vector<4x32xf32>
    %77 = arith.negf %76 : vector<4x32xf32>
    %78 = math.exp %77 : vector<4x32xf32>
    %cst_37 = arith.constant 1.000000e+00 : f32
    %79 = vector.broadcast %cst_37 : f32 to vector<4x32xf32>
    %80 = arith.addf %79, %78 : vector<4x32xf32>
    %81 = arith.divf %79, %80 : vector<4x32xf32>
    %82 = vector.extract_strided_slice %69 {offsets = [0, 64], sizes = [4, 32], strides = [1, 1]} : vector<4x128xf32> to vector<4x32xf32>
    %83 = math.tanh %82 : vector<4x32xf32>
    %84 = vector.extract_strided_slice %69 {offsets = [0, 96], sizes = [4, 32], strides = [1, 1]} : vector<4x128xf32> to vector<4x32xf32>
    %85 = arith.negf %84 : vector<4x32xf32>
    %86 = math.exp %85 : vector<4x32xf32>
    %cst_38 = arith.constant 1.000000e+00 : f32
    %87 = vector.broadcast %cst_38 : f32 to vector<4x32xf32>
    %88 = arith.addf %87, %86 : vector<4x32xf32>
    %89 = arith.divf %87, %88 : vector<4x32xf32>
    %90 = arith.mulf %81, %55 : vector<4x32xf32>
    %91 = arith.mulf %75, %83 : vector<4x32xf32>
    %92 = arith.addf %90, %91 : vector<4x32xf32>
    %93 = math.tanh %92 : vector<4x32xf32>
    %94 = arith.mulf %89, %93 : vector<4x32xf32>
    %95 = vector.broadcast %64 : i32 to vector<4x1xi32>
    %96 = arith.cmpi slt, %95, %0 : vector<4x1xi32>
    %97 = vector.shape_cast %96 : vector<4x1xi1> to vector<4x1xi1>
    %98 = vector.broadcast %97 : vector<4x1xi1> to vector<4x32xi1>
    %99 = arith.select %98, %92, %55 : vector<4x32xi1>, vector<4x32xf32>
    %100 = vector.shape_cast %96 : vector<4x1xi1> to vector<4x1xi1>
    %101 = vector.broadcast %100 : vector<4x1xi1> to vector<4x32xi1>
    %102 = arith.select %101, %94, %58 : vector<4x32xi1>, vector<4x32xf32>
    %c0_39 = arith.constant 0 : index
    %103 = arith.index_cast %64 : i32 to index
    %c0_40 = arith.constant 0 : index
    %c0_41 = arith.constant 0 : index
    %104 = vector.load %arg8[%c0_39, %103, %c0_40, %c0_41] : memref<1x8x4x32xf32, #tpu.memory_space<vmem>>, vector<1x1x4x32xf32>
    %105 = vector.shape_cast %104 : vector<1x1x4x32xf32> to vector<4x32xf32>
    %106 = vector.shape_cast %94 : vector<4x32xf32> to vector<1x1x4x32xf32>
    tpu.vector_store %arg8[%c0_39, %103, %c0_40, %c0_41], %106 {strides = array<i32>} : memref<1x8x4x32xf32, #tpu.memory_space<vmem>>, vector<1x1x4x32xf32>,
    %c2_i32 = arith.constant 2 : i32
    %c7_i32_42 = arith.constant 7 : i32
    %107 = arith.subi %c7_i32_42, %c2_i32 : i32
    %108 = arith.select %14, %107, %c2_i32 : i32
    %109 = arith.index_cast %108 : i32 to index
    %c0_43 = arith.constant 0 : index
    %c0_44 = arith.constant 0 : index
    %110 = vector.load %arg11[%109, %c0_43, %c0_44] : memref<8x4x128xf32, #tpu.memory_space<vmem>>, vector<1x4x128xf32>
    %111 = vector.shape_cast %110 : vector<1x4x128xf32> to vector<4x128xf32>
    %cst_45 = arith.constant dense<0.000000e+00> : vector<4x128xf32>
    %112 = tpu.matmul %102, %4, %cst_45 {dimension_numbers = #tpu.dot_dimension_numbers<[1], [0], [0], [1], [0, 0, 1, 1], [], []>} : vector<4x32xf32>, vector<32x128xf32>, vector<4x128xf32> -> vector<4x128xf32>
    %113 = arith.addf %111, %112 : vector<4x128xf32>
    %114 = vector.extract_strided_slice %113 {offsets = [0, 0], sizes = [4, 32], strides = [1, 1]} : vector<4x128xf32> to vector<4x32xf32>
    %115 = arith.negf %114 : vector<4x32xf32>
    %116 = math.exp %115 : vector<4x32xf32>
    %cst_46 = arith.constant 1.000000e+00 : f32
    %117 = vector.broadcast %cst_46 : f32 to vector<4x32xf32>
    %118 = arith.addf %117, %116 : vector<4x32xf32>
    %119 = arith.divf %117, %118 : vector<4x32xf32>
    %120 = vector.extract_strided_slice %113 {offsets = [0, 32], sizes = [4, 32], strides = [1, 1]} : vector<4x128xf32> to vector<4x32xf32>
    %121 = arith.negf %120 : vector<4x32xf32>
    %122 = math.exp %121 : vector<4x32xf32>
    %cst_47 = arith.constant 1.000000e+00 : f32
    %123 = vector.broadcast %cst_47 : f32 to vector<4x32xf32>
    %124 = arith.addf %123, %122 : vector<4x32xf32>
    %125 = arith.divf %123, %124 : vector<4x32xf32>
    %126 = vector.extract_strided_slice %113 {offsets = [0, 64], sizes = [4, 32], strides = [1, 1]} : vector<4x128xf32> to vector<4x32xf32>
    %127 = math.tanh %126 : vector<4x32xf32>
    %128 = vector.extract_strided_slice %113 {offsets = [0, 96], sizes = [4, 32], strides = [1, 1]} : vector<4x128xf32> to vector<4x32xf32>
    %129 = arith.negf %128 : vector<4x32xf32>
    %130 = math.exp %129 : vector<4x32xf32>
    %cst_48 = arith.constant 1.000000e+00 : f32
    %131 = vector.broadcast %cst_48 : f32 to vector<4x32xf32>
    %132 = arith.addf %131, %130 : vector<4x32xf32>
    %133 = arith.divf %131, %132 : vector<4x32xf32>
    %134 = arith.mulf %125, %99 : vector<4x32xf32>
    %135 = arith.mulf %119, %127 : vector<4x32xf32>
    %136 = arith.addf %134, %135 : vector<4x32xf32>
    %137 = math.tanh %136 : vector<4x32xf32>
    %138 = arith.mulf %133, %137 : vector<4x32xf32>
    %139 = vector.broadcast %108 : i32 to vector<4x1xi32>
    %140 = arith.cmpi slt, %139, %0 : vector<4x1xi32>
    %141 = vector.shape_cast %140 : vector<4x1xi1> to vector<4x1xi1>
    %142 = vector.broadcast %141 : vector<4x1xi1> to vector<4x32xi1>
    %143 = arith.select %142, %136, %99 : vector<4x32xi1>, vector<4x32xf32>
    %144 = vector.shape_cast %140 : vector<4x1xi1> to vector<4x1xi1>
    %145 = vector.broadcast %144 : vector<4x1xi1> to vector<4x32xi1>
    %146 = arith.select %145, %138, %102 : vector<4x32xi1>, vector<4x32xf32>
    %c0_49 = arith.constant 0 : index
    %147 = arith.index_cast %108 : i32 to index
    %c0_50 = arith.constant 0 : index
    %c0_51 = arith.constant 0 : index
    %148 = vector.load %arg8[%c0_49, %147, %c0_50, %c0_51] : memref<1x8x4x32xf32, #tpu.memory_space<vmem>>, vector<1x1x4x32xf32>
    %149 = vector.shape_cast %148 : vector<1x1x4x32xf32> to vector<4x32xf32>
    %150 = vector.shape_cast %138 : vector<4x32xf32> to vector<1x1x4x32xf32>
    tpu.vector_store %arg8[%c0_49, %147, %c0_50, %c0_51], %150 {strides = array<i32>} : memref<1x8x4x32xf32, #tpu.memory_space<vmem>>, vector<1x1x4x32xf32>,
    %c3_i32 = arith.constant 3 : i32
    %c7_i32_52 = arith.constant 7 : i32
    %151 = arith.subi %c7_i32_52, %c3_i32 : i32
    %152 = arith.select %14, %151, %c3_i32 : i32
    %153 = arith.index_cast %152 : i32 to index
    %c0_53 = arith.constant 0 : index
    %c0_54 = arith.constant 0 : index
    %154 = vector.load %arg11[%153, %c0_53, %c0_54] : memref<8x4x128xf32, #tpu.memory_space<vmem>>, vector<1x4x128xf32>
    %155 = vector.shape_cast %154 : vector<1x4x128xf32> to vector<4x128xf32>
    %cst_55 = arith.constant dense<0.000000e+00> : vector<4x128xf32>
    %156 = tpu.matmul %146, %4, %cst_55 {dimension_numbers = #tpu.dot_dimension_numbers<[1], [0], [0], [1], [0, 0, 1, 1], [], []>} : vector<4x32xf32>, vector<32x128xf32>, vector<4x128xf32> -> vector<4x128xf32>
    %157 = arith.addf %155, %156 : vector<4x128xf32>
    %158 = vector.extract_strided_slice %157 {offsets = [0, 0], sizes = [4, 32], strides = [1, 1]} : vector<4x128xf32> to vector<4x32xf32>
    %159 = arith.negf %158 : vector<4x32xf32>
    %160 = math.exp %159 : vector<4x32xf32>
    %cst_56 = arith.constant 1.000000e+00 : f32
    %161 = vector.broadcast %cst_56 : f32 to vector<4x32xf32>
    %162 = arith.addf %161, %160 : vector<4x32xf32>
    %163 = arith.divf %161, %162 : vector<4x32xf32>
    %164 = vector.extract_strided_slice %157 {offsets = [0, 32], sizes = [4, 32], strides = [1, 1]} : vector<4x128xf32> to vector<4x32xf32>
    %165 = arith.negf %164 : vector<4x32xf32>
    %166 = math.exp %165 : vector<4x32xf32>
    %cst_57 = arith.constant 1.000000e+00 : f32
    %167 = vector.broadcast %cst_57 : f32 to vector<4x32xf32>
    %168 = arith.addf %167, %166 : vector<4x32xf32>
    %169 = arith.divf %167, %168 : vector<4x32xf32>
    %170 = vector.extract_strided_slice %157 {offsets = [0, 64], sizes = [4, 32], strides = [1, 1]} : vector<4x128xf32> to vector<4x32xf32>
    %171 = math.tanh %170 : vector<4x32xf32>
    %172 = vector.extract_strided_slice %157 {offsets = [0, 96], sizes = [4, 32], strides = [1, 1]} : vector<4x128xf32> to vector<4x32xf32>
    %173 = arith.negf %172 : vector<4x32xf32>
    %174 = math.exp %173 : vector<4x32xf32>
    %cst_58 = arith.constant 1.000000e+00 : f32
    %175 = vector.broadcast %cst_58 : f32 to vector<4x32xf32>
    %176 = arith.addf %175, %174 : vector<4x32xf32>
    %177 = arith.divf %175, %176 : vector<4x32xf32>
    %178 = arith.mulf %169, %143 : vector<4x32xf32>
    %179 = arith.mulf %163, %171 : vector<4x32xf32>
    %180 = arith.addf %178, %179 : vector<4x32xf32>
    %181 = math.tanh %180 : vector<4x32xf32>
    %182 = arith.mulf %177, %181 : vector<4x32xf32>
    %183 = vector.broadcast %152 : i32 to vector<4x1xi32>
    %184 = arith.cmpi slt, %183, %0 : vector<4x1xi32>
    %185 = vector.shape_cast %184 : vector<4x1xi1> to vector<4x1xi1>
    %186 = vector.broadcast %185 : vector<4x1xi1> to vector<4x32xi1>
    %187 = arith.select %186, %180, %143 : vector<4x32xi1>, vector<4x32xf32>
    %188 = vector.shape_cast %184 : vector<4x1xi1> to vector<4x1xi1>
    %189 = vector.broadcast %188 : vector<4x1xi1> to vector<4x32xi1>
    %190 = arith.select %189, %182, %146 : vector<4x32xi1>, vector<4x32xf32>
    %c0_59 = arith.constant 0 : index
    %191 = arith.index_cast %152 : i32 to index
    %c0_60 = arith.constant 0 : index
    %c0_61 = arith.constant 0 : index
    %192 = vector.load %arg8[%c0_59, %191, %c0_60, %c0_61] : memref<1x8x4x32xf32, #tpu.memory_space<vmem>>, vector<1x1x4x32xf32>
    %193 = vector.shape_cast %192 : vector<1x1x4x32xf32> to vector<4x32xf32>
    %194 = vector.shape_cast %182 : vector<4x32xf32> to vector<1x1x4x32xf32>
    tpu.vector_store %arg8[%c0_59, %191, %c0_60, %c0_61], %194 {strides = array<i32>} : memref<1x8x4x32xf32, #tpu.memory_space<vmem>>, vector<1x1x4x32xf32>,
    %c4_i32 = arith.constant 4 : i32
    %c7_i32_62 = arith.constant 7 : i32
    %195 = arith.subi %c7_i32_62, %c4_i32 : i32
    %196 = arith.select %14, %195, %c4_i32 : i32
    %197 = arith.index_cast %196 : i32 to index
    %c0_63 = arith.constant 0 : index
    %c0_64 = arith.constant 0 : index
    %198 = vector.load %arg11[%197, %c0_63, %c0_64] : memref<8x4x128xf32, #tpu.memory_space<vmem>>, vector<1x4x128xf32>
    %199 = vector.shape_cast %198 : vector<1x4x128xf32> to vector<4x128xf32>
    %cst_65 = arith.constant dense<0.000000e+00> : vector<4x128xf32>
    %200 = tpu.matmul %190, %4, %cst_65 {dimension_numbers = #tpu.dot_dimension_numbers<[1], [0], [0], [1], [0, 0, 1, 1], [], []>} : vector<4x32xf32>, vector<32x128xf32>, vector<4x128xf32> -> vector<4x128xf32>
    %201 = arith.addf %199, %200 : vector<4x128xf32>
    %202 = vector.extract_strided_slice %201 {offsets = [0, 0], sizes = [4, 32], strides = [1, 1]} : vector<4x128xf32> to vector<4x32xf32>
    %203 = arith.negf %202 : vector<4x32xf32>
    %204 = math.exp %203 : vector<4x32xf32>
    %cst_66 = arith.constant 1.000000e+00 : f32
    %205 = vector.broadcast %cst_66 : f32 to vector<4x32xf32>
    %206 = arith.addf %205, %204 : vector<4x32xf32>
    %207 = arith.divf %205, %206 : vector<4x32xf32>
    %208 = vector.extract_strided_slice %201 {offsets = [0, 32], sizes = [4, 32], strides = [1, 1]} : vector<4x128xf32> to vector<4x32xf32>
    %209 = arith.negf %208 : vector<4x32xf32>
    %210 = math.exp %209 : vector<4x32xf32>
    %cst_67 = arith.constant 1.000000e+00 : f32
    %211 = vector.broadcast %cst_67 : f32 to vector<4x32xf32>
    %212 = arith.addf %211, %210 : vector<4x32xf32>
    %213 = arith.divf %211, %212 : vector<4x32xf32>
    %214 = vector.extract_strided_slice %201 {offsets = [0, 64], sizes = [4, 32], strides = [1, 1]} : vector<4x128xf32> to vector<4x32xf32>
    %215 = math.tanh %214 : vector<4x32xf32>
    %216 = vector.extract_strided_slice %201 {offsets = [0, 96], sizes = [4, 32], strides = [1, 1]} : vector<4x128xf32> to vector<4x32xf32>
    %217 = arith.negf %216 : vector<4x32xf32>
    %218 = math.exp %217 : vector<4x32xf32>
    %cst_68 = arith.constant 1.000000e+00 : f32
    %219 = vector.broadcast %cst_68 : f32 to vector<4x32xf32>
    %220 = arith.addf %219, %218 : vector<4x32xf32>
    %221 = arith.divf %219, %220 : vector<4x32xf32>
    %222 = arith.mulf %213, %187 : vector<4x32xf32>
    %223 = arith.mulf %207, %215 : vector<4x32xf32>
    %224 = arith.addf %222, %223 : vector<4x32xf32>
    %225 = math.tanh %224 : vector<4x32xf32>
    %226 = arith.mulf %221, %225 : vector<4x32xf32>
    %227 = vector.broadcast %196 : i32 to vector<4x1xi32>
    %228 = arith.cmpi slt, %227, %0 : vector<4x1xi32>
    %229 = vector.shape_cast %228 : vector<4x1xi1> to vector<4x1xi1>
    %230 = vector.broadcast %229 : vector<4x1xi1> to vector<4x32xi1>
    %231 = arith.select %230, %224, %187 : vector<4x32xi1>, vector<4x32xf32>
    %232 = vector.shape_cast %228 : vector<4x1xi1> to vector<4x1xi1>
    %233 = vector.broadcast %232 : vector<4x1xi1> to vector<4x32xi1>
    %234 = arith.select %233, %226, %190 : vector<4x32xi1>, vector<4x32xf32>
    %c0_69 = arith.constant 0 : index
    %235 = arith.index_cast %196 : i32 to index
    %c0_70 = arith.constant 0 : index
    %c0_71 = arith.constant 0 : index
    %236 = vector.load %arg8[%c0_69, %235, %c0_70, %c0_71] : memref<1x8x4x32xf32, #tpu.memory_space<vmem>>, vector<1x1x4x32xf32>
    %237 = vector.shape_cast %236 : vector<1x1x4x32xf32> to vector<4x32xf32>
    %238 = vector.shape_cast %226 : vector<4x32xf32> to vector<1x1x4x32xf32>
    tpu.vector_store %arg8[%c0_69, %235, %c0_70, %c0_71], %238 {strides = array<i32>} : memref<1x8x4x32xf32, #tpu.memory_space<vmem>>, vector<1x1x4x32xf32>,
    %c5_i32 = arith.constant 5 : i32
    %c7_i32_72 = arith.constant 7 : i32
    %239 = arith.subi %c7_i32_72, %c5_i32 : i32
    %240 = arith.select %14, %239, %c5_i32 : i32
    %241 = arith.index_cast %240 : i32 to index
    %c0_73 = arith.constant 0 : index
    %c0_74 = arith.constant 0 : index
    %242 = vector.load %arg11[%241, %c0_73, %c0_74] : memref<8x4x128xf32, #tpu.memory_space<vmem>>, vector<1x4x128xf32>
    %243 = vector.shape_cast %242 : vector<1x4x128xf32> to vector<4x128xf32>
    %cst_75 = arith.constant dense<0.000000e+00> : vector<4x128xf32>
    %244 = tpu.matmul %234, %4, %cst_75 {dimension_numbers = #tpu.dot_dimension_numbers<[1], [0], [0], [1], [0, 0, 1, 1], [], []>} : vector<4x32xf32>, vector<32x128xf32>, vector<4x128xf32> -> vector<4x128xf32>
    %245 = arith.addf %243, %244 : vector<4x128xf32>
    %246 = vector.extract_strided_slice %245 {offsets = [0, 0], sizes = [4, 32], strides = [1, 1]} : vector<4x128xf32> to vector<4x32xf32>
    %247 = arith.negf %246 : vector<4x32xf32>
    %248 = math.exp %247 : vector<4x32xf32>
    %cst_76 = arith.constant 1.000000e+00 : f32
    %249 = vector.broadcast %cst_76 : f32 to vector<4x32xf32>
    %250 = arith.addf %249, %248 : vector<4x32xf32>
    %251 = arith.divf %249, %250 : vector<4x32xf32>
    %252 = vector.extract_strided_slice %245 {offsets = [0, 32], sizes = [4, 32], strides = [1, 1]} : vector<4x128xf32> to vector<4x32xf32>
    %253 = arith.negf %252 : vector<4x32xf32>
    %254 = math.exp %253 : vector<4x32xf32>
    %cst_77 = arith.constant 1.000000e+00 : f32
    %255 = vector.broadcast %cst_77 : f32 to vector<4x32xf32>
    %256 = arith.addf %255, %254 : vector<4x32xf32>
    %257 = arith.divf %255, %256 : vector<4x32xf32>
    %258 = vector.extract_strided_slice %245 {offsets = [0, 64], sizes = [4, 32], strides = [1, 1]} : vector<4x128xf32> to vector<4x32xf32>
    %259 = math.tanh %258 : vector<4x32xf32>
    %260 = vector.extract_strided_slice %245 {offsets = [0, 96], sizes = [4, 32], strides = [1, 1]} : vector<4x128xf32> to vector<4x32xf32>
    %261 = arith.negf %260 : vector<4x32xf32>
    %262 = math.exp %261 : vector<4x32xf32>
    %cst_78 = arith.constant 1.000000e+00 : f32
    %263 = vector.broadcast %cst_78 : f32 to vector<4x32xf32>
    %264 = arith.addf %263, %262 : vector<4x32xf32>
    %265 = arith.divf %263, %264 : vector<4x32xf32>
    %266 = arith.mulf %257, %231 : vector<4x32xf32>
    %267 = arith.mulf %251, %259 : vector<4x32xf32>
    %268 = arith.addf %266, %267 : vector<4x32xf32>
    %269 = math.tanh %268 : vector<4x32xf32>
    %270 = arith.mulf %265, %269 : vector<4x32xf32>
    %271 = vector.broadcast %240 : i32 to vector<4x1xi32>
    %272 = arith.cmpi slt, %271, %0 : vector<4x1xi32>
    %273 = vector.shape_cast %272 : vector<4x1xi1> to vector<4x1xi1>
    %274 = vector.broadcast %273 : vector<4x1xi1> to vector<4x32xi1>
    %275 = arith.select %274, %268, %231 : vector<4x32xi1>, vector<4x32xf32>
    %276 = vector.shape_cast %272 : vector<4x1xi1> to vector<4x1xi1>
    %277 = vector.broadcast %276 : vector<4x1xi1> to vector<4x32xi1>
    %278 = arith.select %277, %270, %234 : vector<4x32xi1>, vector<4x32xf32>
    %c0_79 = arith.constant 0 : index
    %279 = arith.index_cast %240 : i32 to index
    %c0_80 = arith.constant 0 : index
    %c0_81 = arith.constant 0 : index
    %280 = vector.load %arg8[%c0_79, %279, %c0_80, %c0_81] : memref<1x8x4x32xf32, #tpu.memory_space<vmem>>, vector<1x1x4x32xf32>
    %281 = vector.shape_cast %280 : vector<1x1x4x32xf32> to vector<4x32xf32>
    %282 = vector.shape_cast %270 : vector<4x32xf32> to vector<1x1x4x32xf32>
    tpu.vector_store %arg8[%c0_79, %279, %c0_80, %c0_81], %282 {strides = array<i32>} : memref<1x8x4x32xf32, #tpu.memory_space<vmem>>, vector<1x1x4x32xf32>,
    %c6_i32 = arith.constant 6 : i32
    %c7_i32_82 = arith.constant 7 : i32
    %283 = arith.subi %c7_i32_82, %c6_i32 : i32
    %284 = arith.select %14, %283, %c6_i32 : i32
    %285 = arith.index_cast %284 : i32 to index
    %c0_83 = arith.constant 0 : index
    %c0_84 = arith.constant 0 : index
    %286 = vector.load %arg11[%285, %c0_83, %c0_84] : memref<8x4x128xf32, #tpu.memory_space<vmem>>, vector<1x4x128xf32>
    %287 = vector.shape_cast %286 : vector<1x4x128xf32> to vector<4x128xf32>
    %cst_85 = arith.constant dense<0.000000e+00> : vector<4x128xf32>
    %288 = tpu.matmul %278, %4, %cst_85 {dimension_numbers = #tpu.dot_dimension_numbers<[1], [0], [0], [1], [0, 0, 1, 1], [], []>} : vector<4x32xf32>, vector<32x128xf32>, vector<4x128xf32> -> vector<4x128xf32>
    %289 = arith.addf %287, %288 : vector<4x128xf32>
    %290 = vector.extract_strided_slice %289 {offsets = [0, 0], sizes = [4, 32], strides = [1, 1]} : vector<4x128xf32> to vector<4x32xf32>
    %291 = arith.negf %290 : vector<4x32xf32>
    %292 = math.exp %291 : vector<4x32xf32>
    %cst_86 = arith.constant 1.000000e+00 : f32
    %293 = vector.broadcast %cst_86 : f32 to vector<4x32xf32>
    %294 = arith.addf %293, %292 : vector<4x32xf32>
    %295 = arith.divf %293, %294 : vector<4x32xf32>
    %296 = vector.extract_strided_slice %289 {offsets = [0, 32], sizes = [4, 32], strides = [1, 1]} : vector<4x128xf32> to vector<4x32xf32>
    %297 = arith.negf %296 : vector<4x32xf32>
    %298 = math.exp %297 : vector<4x32xf32>
    %cst_87 = arith.constant 1.000000e+00 : f32
    %299 = vector.broadcast %cst_87 : f32 to vector<4x32xf32>
    %300 = arith.addf %299, %298 : vector<4x32xf32>
    %301 = arith.divf %299, %300 : vector<4x32xf32>
    %302 = vector.extract_strided_slice %289 {offsets = [0, 64], sizes = [4, 32], strides = [1, 1]} : vector<4x128xf32> to vector<4x32xf32>
    %303 = math.tanh %302 : vector<4x32xf32>
    %304 = vector.extract_strided_slice %289 {offsets = [0, 96], sizes = [4, 32], strides = [1, 1]} : vector<4x128xf32> to vector<4x32xf32>
    %305 = arith.negf %304 : vector<4x32xf32>
    %306 = math.exp %305 : vector<4x32xf32>
    %cst_88 = arith.constant 1.000000e+00 : f32
    %307 = vector.broadcast %cst_88 : f32 to vector<4x32xf32>
    %308 = arith.addf %307, %306 : vector<4x32xf32>
    %309 = arith.divf %307, %308 : vector<4x32xf32>
    %310 = arith.mulf %301, %275 : vector<4x32xf32>
    %311 = arith.mulf %295, %303 : vector<4x32xf32>
    %312 = arith.addf %310, %311 : vector<4x32xf32>
    %313 = math.tanh %312 : vector<4x32xf32>
    %314 = arith.mulf %309, %313 : vector<4x32xf32>
    %315 = vector.broadcast %284 : i32 to vector<4x1xi32>
    %316 = arith.cmpi slt, %315, %0 : vector<4x1xi32>
    %317 = vector.shape_cast %316 : vector<4x1xi1> to vector<4x1xi1>
    %318 = vector.broadcast %317 : vector<4x1xi1> to vector<4x32xi1>
    %319 = arith.select %318, %312, %275 : vector<4x32xi1>, vector<4x32xf32>
    %320 = vector.shape_cast %316 : vector<4x1xi1> to vector<4x1xi1>
    %321 = vector.broadcast %320 : vector<4x1xi1> to vector<4x32xi1>
    %322 = arith.select %321, %314, %278 : vector<4x32xi1>, vector<4x32xf32>
    %c0_89 = arith.constant 0 : index
    %323 = arith.index_cast %284 : i32 to index
    %c0_90 = arith.constant 0 : index
    %c0_91 = arith.constant 0 : index
    %324 = vector.load %arg8[%c0_89, %323, %c0_90, %c0_91] : memref<1x8x4x32xf32, #tpu.memory_space<vmem>>, vector<1x1x4x32xf32>
    %325 = vector.shape_cast %324 : vector<1x1x4x32xf32> to vector<4x32xf32>
    %326 = vector.shape_cast %314 : vector<4x32xf32> to vector<1x1x4x32xf32>
    tpu.vector_store %arg8[%c0_89, %323, %c0_90, %c0_91], %326 {strides = array<i32>} : memref<1x8x4x32xf32, #tpu.memory_space<vmem>>, vector<1x1x4x32xf32>,
    %c7_i32_92 = arith.constant 7 : i32
    %c7_i32_93 = arith.constant 7 : i32
    %327 = arith.subi %c7_i32_93, %c7_i32_92 : i32
    %328 = arith.select %14, %327, %c7_i32_92 : i32
    %329 = arith.index_cast %328 : i32 to index
    %c0_94 = arith.constant 0 : index
    %c0_95 = arith.constant 0 : index
    %330 = vector.load %arg11[%329, %c0_94, %c0_95] : memref<8x4x128xf32, #tpu.memory_space<vmem>>, vector<1x4x128xf32>
    %331 = vector.shape_cast %330 : vector<1x4x128xf32> to vector<4x128xf32>
    %cst_96 = arith.constant dense<0.000000e+00> : vector<4x128xf32>
    %332 = tpu.matmul %322, %4, %cst_96 {dimension_numbers = #tpu.dot_dimension_numbers<[1], [0], [0], [1], [0, 0, 1, 1], [], []>} : vector<4x32xf32>, vector<32x128xf32>, vector<4x128xf32> -> vector<4x128xf32>
    %333 = arith.addf %331, %332 : vector<4x128xf32>
    %334 = vector.extract_strided_slice %333 {offsets = [0, 0], sizes = [4, 32], strides = [1, 1]} : vector<4x128xf32> to vector<4x32xf32>
    %335 = arith.negf %334 : vector<4x32xf32>
    %336 = math.exp %335 : vector<4x32xf32>
    %cst_97 = arith.constant 1.000000e+00 : f32
    %337 = vector.broadcast %cst_97 : f32 to vector<4x32xf32>
    %338 = arith.addf %337, %336 : vector<4x32xf32>
    %339 = arith.divf %337, %338 : vector<4x32xf32>
    %340 = vector.extract_strided_slice %333 {offsets = [0, 32], sizes = [4, 32], strides = [1, 1]} : vector<4x128xf32> to vector<4x32xf32>
    %341 = arith.negf %340 : vector<4x32xf32>
    %342 = math.exp %341 : vector<4x32xf32>
    %cst_98 = arith.constant 1.000000e+00 : f32
    %343 = vector.broadcast %cst_98 : f32 to vector<4x32xf32>
    %344 = arith.addf %343, %342 : vector<4x32xf32>
    %345 = arith.divf %343, %344 : vector<4x32xf32>
    %346 = vector.extract_strided_slice %333 {offsets = [0, 64], sizes = [4, 32], strides = [1, 1]} : vector<4x128xf32> to vector<4x32xf32>
    %347 = math.tanh %346 : vector<4x32xf32>
    %348 = vector.extract_strided_slice %333 {offsets = [0, 96], sizes = [4, 32], strides = [1, 1]} : vector<4x128xf32> to vector<4x32xf32>
    %349 = arith.negf %348 : vector<4x32xf32>
    %350 = math.exp %349 : vector<4x32xf32>
    %cst_99 = arith.constant 1.000000e+00 : f32
    %351 = vector.broadcast %cst_99 : f32 to vector<4x32xf32>
    %352 = arith.addf %351, %350 : vector<4x32xf32>
    %353 = arith.divf %351, %352 : vector<4x32xf32>
    %354 = arith.mulf %345, %319 : vector<4x32xf32>
    %355 = arith.mulf %339, %347 : vector<4x32xf32>
    %356 = arith.addf %354, %355 : vector<4x32xf32>
    %357 = math.tanh %356 : vector<4x32xf32>
    %358 = arith.mulf %353, %357 : vector<4x32xf32>
    %359 = vector.broadcast %328 : i32 to vector<4x1xi32>
    %360 = arith.cmpi slt, %359, %0 : vector<4x1xi32>
    %361 = vector.shape_cast %360 : vector<4x1xi1> to vector<4x1xi1>
    %362 = vector.broadcast %361 : vector<4x1xi1> to vector<4x32xi1>
    %363 = arith.select %362, %356, %319 : vector<4x32xi1>, vector<4x32xf32>
    %364 = vector.shape_cast %360 : vector<4x1xi1> to vector<4x1xi1>
    %365 = vector.broadcast %364 : vector<4x1xi1> to vector<4x32xi1>
    %366 = arith.select %365, %358, %322 : vector<4x32xi1>, vector<4x32xf32>
    %c0_100 = arith.constant 0 : index
    %367 = arith.index_cast %328 : i32 to index
    %c0_101 = arith.constant 0 : index
    %c0_102 = arith.constant 0 : index
    %368 = vector.load %arg8[%c0_100, %367, %c0_101, %c0_102] : memref<1x8x4x32xf32, #tpu.memory_space<vmem>>, vector<1x1x4x32xf32>
    %369 = vector.shape_cast %368 : vector<1x1x4x32xf32> to vector<4x32xf32>
    %370 = vector.shape_cast %358 : vector<4x32xf32> to vector<1x1x4x32xf32>
    tpu.vector_store %arg8[%c0_100, %367, %c0_101, %c0_102], %370 {strides = array<i32>} : memref<1x8x4x32xf32, #tpu.memory_space<vmem>>, vector<1x1x4x32xf32>,
    %c8_i32 = arith.constant 8 : i32
    %371 = tpu.iota {dimensions = array<i32: 0>} : vector<8x4x1xi32>
    %372 = vector.shape_cast %0 : vector<4x1xi32> to vector<1x4x1xi32>
    %373 = vector.broadcast %372 : vector<1x4x1xi32> to vector<8x4x1xi32>
    %374 = arith.cmpi slt, %371, %373 : vector<8x4x1xi32>
    %c0_103 = arith.constant 0 : index
    %c0_104 = arith.constant 0 : index
    %c0_105 = arith.constant 0 : index
    %c0_106 = arith.constant 0 : index
    %375 = vector.load %arg8[%c0_103, %c0_104, %c0_105, %c0_106] : memref<1x8x4x32xf32, #tpu.memory_space<vmem>>, vector<1x8x4x32xf32>
    %376 = vector.shape_cast %375 : vector<1x8x4x32xf32> to vector<8x4x32xf32>
    %cst_107 = arith.constant 0.000000e+00 : f32
    %377 = vector.shape_cast %374 : vector<8x4x1xi1> to vector<8x4x1xi1>
    %378 = vector.broadcast %377 : vector<8x4x1xi1> to vector<8x4x32xi1>
    %379 = vector.broadcast %cst_107 : f32 to vector<8x4x32xf32>
    %380 = arith.select %378, %376, %379 : vector<8x4x32xi1>, vector<8x4x32xf32>
    %c0_108 = arith.constant 0 : index
    %c0_109 = arith.constant 0 : index
    %c0_110 = arith.constant 0 : index
    %c0_111 = arith.constant 0 : index
    %381 = vector.load %arg8[%c0_108, %c0_109, %c0_110, %c0_111] : memref<1x8x4x32xf32, #tpu.memory_space<vmem>>, vector<1x8x4x32xf32>
    %382 = vector.shape_cast %381 : vector<1x8x4x32xf32> to vector<8x4x32xf32>
    %383 = vector.shape_cast %380 : vector<8x4x32xf32> to vector<1x8x4x32xf32>
    tpu.vector_store %arg8[%c0_108, %c0_109, %c0_110, %c0_111], %383 {strides = array<i32>} : memref<1x8x4x32xf32, #tpu.memory_space<vmem>>, vector<1x8x4x32xf32>,
    %c0_112 = arith.constant 0 : index
    %c0_113 = arith.constant 0 : index
    %c0_114 = arith.constant 0 : index
    %384 = vector.load %arg9[%c0_112, %c0_113, %c0_114] : memref<1x4x32xf32, #tpu.memory_space<vmem>>, vector<1x4x32xf32>
    %385 = vector.shape_cast %384 : vector<1x4x32xf32> to vector<4x32xf32>
    %386 = vector.shape_cast %366 : vector<4x32xf32> to vector<1x4x32xf32>
    tpu.vector_store %arg9[%c0_112, %c0_113, %c0_114], %386 {strides = array<i32>} : memref<1x4x32xf32, #tpu.memory_space<vmem>>, vector<1x4x32xf32>,
    %c0_115 = arith.constant 0 : index
    %c0_116 = arith.constant 0 : index
    %c0_117 = arith.constant 0 : index
    %387 = vector.load %arg10[%c0_115, %c0_116, %c0_117] : memref<1x4x32xf32, #tpu.memory_space<vmem>>, vector<1x4x32xf32>
    %388 = vector.shape_cast %387 : vector<1x4x32xf32> to vector<4x32xf32>
    %389 = vector.shape_cast %363 : vector<4x32xf32> to vector<1x4x32xf32>
    tpu.vector_store %arg10[%c0_115, %c0_116, %c0_117], %389 {strides = array<i32>} : memref<1x4x32xf32, #tpu.memory_space<vmem>>, vector<1x4x32xf32>,
    return
  }
  func.func @transform_0(%arg0: i32) -> (i32, i32, i32) {
    %c0_i32 = arith.constant 0 : i32
    %c0_i32_0 = arith.constant 0 : i32
    %c0_i32_1 = arith.constant 0 : i32
    %c0_i32_2 = arith.constant 0 : i32
    return %c0_i32, %c0_i32_0, %c0_i32_1 : i32, i32, i32
  }
  func.func @transform_1(%arg0: i32) -> (i32, i32) {
    %c0_i32 = arith.constant 0 : i32
    %c0_i32_0 = arith.constant 0 : i32
    %c0_i32_1 = arith.constant 0 : i32
    return %c0_i32, %c0_i32_0 : i32, i32
  }
  func.func @transform_2(%arg0: i32) -> (i32, i32, i32) {
    %c0_i32 = arith.constant 0 : i32
    %c0_i32_0 = arith.constant 0 : i32
    %c0_i32_1 = arith.constant 0 : i32
    return %arg0, %c0_i32, %c0_i32_0 : i32, i32, i32
  }
  func.func @transform_3(%arg0: i32) -> (i32, i32, i32) {
    %c0_i32 = arith.constant 0 : i32
    %c0_i32_0 = arith.constant 0 : i32
    %c0_i32_1 = arith.constant 0 : i32
    return %arg0, %c0_i32, %c0_i32_0 : i32, i32, i32
  }
  func.func @transform_4(%arg0: i32) -> (i32, i32, i32) {
    %c0_i32 = arith.constant 0 : i32
    %c0_i32_0 = arith.constant 0 : i32
    %c0_i32_1 = arith.constant 0 : i32
    return %arg0, %c0_i32, %c0_i32_0 : i32, i32, i32
  }
  func.func @transform_5(%arg0: i32) -> (i32, i32, i32) {
    %c0_i32 = arith.constant 0 : i32
    %c0_i32_0 = arith.constant 0 : i32
    %c0_i32_1 = arith.constant 0 : i32
    return %arg0, %c0_i32, %c0_i32_0 : i32, i32, i32
  }
  func.func @transform_6(%arg0: i32) -> (i32, i32, i32) {
    %c0_i32 = arith.constant 0 : i32
    %c0_i32_0 = arith.constant 0 : i32
    %c0_i32_1 = arith.constant 0 : i32
    return %arg0, %c0_i32, %c0_i32_0 : i32, i32, i32
  }
  func.func @transform_7(%arg0: i32) -> (i32, i32, i32, i32) {
    %c0_i32 = arith.constant 0 : i32
    %c0_i32_0 = arith.constant 0 : i32
    %c0_i32_1 = arith.constant 0 : i32
    %c0_i32_2 = arith.constant 0 : i32
    return %arg0, %c0_i32, %c0_i32_0, %c0_i32_1 : i32, i32, i32, i32
  }
  func.func @transform_8(%arg0: i32) -> (i32, i32, i32) {
    %c0_i32 = arith.constant 0 : i32
    %c0_i32_0 = arith.constant 0 : i32
    %c0_i32_1 = arith.constant 0 : i32
    return %arg0, %c0_i32, %c0_i32_0 : i32, i32, i32
  }
  func.func @transform_9(%arg0: i32) -> (i32, i32, i32) {
    %c0_i32 = arith.constant 0 : i32
    %c0_i32_0 = arith.constant 0 : i32
    %c0_i32_1 = arith.constant 0 : i32
    return %arg0, %c0_i32, %c0_i32_0 : i32, i32, i32
  }
}

</mosaic_0001>

<llo_original>
// kernel: encoder_rnn_forward.2
$region0: #{encoder_rnn_forward.2}
  #allocation0 [shape = 'u32[]', space=smem, size = 0x4, offset = 0x4, fixed_abs, tag = 'smem constant byte address 0x4 - core index']
  #allocation1 [shape = 'u32[144,128]{1,0:T(1,128)}', space=vmem, size = 0x12000, scoped, tag = 'internal scratch']
  #allocation2 [shape = 'f32[8,4,128]{2,1,0:T(4,128)}', space=vmem, size = 0x4000, scoped, tag = 'scratch operand']
  %s0 = inlined_call_operand.vmem [shape: f32[8,4,16], index: 0, kind: input, shape index: {}]
  %s1 = inlined_call_operand.vmem [shape: s32[4,1], index: 1, kind: input, shape index: {}]
  %s2 = inlined_call_operand.vmem [shape: f32[2,16,128], index: 2, kind: input, shape index: {}]
  %s3 = inlined_call_operand.vmem [shape: f32[2,32,128], index: 3, kind: input, shape index: {}]
  %s4 = inlined_call_operand.vmem [shape: f32[2,1,128], index: 4, kind: input, shape index: {}]
  %s5 = inlined_call_operand.vmem [shape: f32[2,4,32], index: 5, kind: input, shape index: {}]
  %s6 = inlined_call_operand.vmem [shape: f32[2,4,32], index: 6, kind: input, shape index: {}]
  %s7 = inlined_call_operand.vmem [shape: f32[2,8,4,32], index: 7, kind: output, shape index: {0}]
  %s8 = inlined_call_operand.vmem [shape: f32[2,4,32], index: 8, kind: output, shape index: {1}]
  %s9 = inlined_call_operand.vmem [shape: f32[2,4,32], index: 9, kind: output, shape index: {2}]
  %10 = xla_tuple %s7, %s8, %s9
  %s11 = sld [smem:[#allocation0]]
  $region77: #{encoder_rnn_forward.2} parent=0
    _
  %s13 = ssub.s32 1, %s11
  %s14 = scalar_select 0, %s13, %s11
  loop: start=0, step=1, limit=4
  $region2: #{encoder_rnn_forward.2} parent=0 // loop_pre_header
    _
  $region3: #{encoder_rnn_forward.2} parent=0 // loop_header
    %s16 = sphi 0, %s20
    %p17 = scmp.ge.s32.totalorder %s16, 4
    %s24 = sphi 0, %s24
    %s26 = sphi 0, %s24
    %s27 = sphi 0, %s26
    %s41 = sphi 0, %s27
    %s45 = sphi 0, %s45
    %s47 = sphi 0, %s45
    %s48 = sphi 0, %s47
    %s62 = sphi 0, %s48
    %s68 = sphi 0, %s70
    %s71 = sphi 0, %s68
    %s72 = sphi 0, %s71
    %s88 = sphi 0, %s72
    %s94 = sphi 0, %s96
    %s97 = sphi 0, %s94
    %s98 = sphi 0, %s97
    %s114 = sphi 0, %s98
    %s120 = sphi 0, %s122
    %s123 = sphi 0, %s120
    %s124 = sphi 0, %s123
    %s140 = sphi 0, %s124
    %s146 = sphi 0, %s148
    %s149 = sphi 0, %s146
    %s150 = sphi 0, %s149
    %s166 = sphi 0, %s150
    %s172 = sphi 0, %s174
    %s175 = sphi 0, %s172
    %s176 = sphi 0, %s175
    %s192 = sphi 0, %s176
    %s198 = sphi 0, %s200
    %s201 = sphi 0, %s198
    %s202 = sphi 0, %s201
    %s218 = sphi 0, %s202
    %s224 = sphi 0, %s226
    %s227 = sphi 0, %s224
    %s228 = sphi 0, %s227
    %s244 = sphi 0, %s228
    %s250 = sphi 0, %s252
    %s253 = sphi 0, %s250
    %s254 = sphi 0, %s253
    %s270 = sphi 0, %s254
  $region4: #{encoder_rnn_forward.2} parent=0 // loop_header_branch
    %19 = sbr.rel (%p17) target = $region8
  $region5: #{encoder_rnn_forward.2} parent=0 // loop_body
    %s21 = ssub.s32 %s16, 1
    %s22 = ssub.s32 %s16, 2
    %s23 = sadd.s32 %s16, 1
    %s25 = sadd.s32 %s24, 1
    %p28 = scmp.eq.s32.totalorder %s16, 1
    %p29 = scmp.ne.s32.totalorder %s24, %s26
    %p30 = scmp.eq.s32.totalorder %s16, 0
    %p31 = por %p29, %p30
    %p32 = scmp.ne.s32.totalorder %s24, %s26
    %p33 = scmp.eq.s32.totalorder %s21, 1
    %p34 = por %p32, %p33
    %p35 = scmp.ne.s32.totalorder %s26, %s27
    %p36 = scmp.eq.s32.totalorder %s21, 0
    %p37 = por %p35, %p36
    %p38 = scmp.ne.s32.totalorder %s26, %s27
    %p39 = scmp.eq.s32.totalorder %s22, 1
    %p40 = por %p38, %p39
    %p42 = scmp.ne.s32.totalorder %s27, %s41
    %p43 = scmp.eq.s32.totalorder %s22, 0
    %p44 = por %p42, %p43
    %s46 = sadd.s32 %s45, 1
    %p49 = scmp.eq.s32.totalorder %s16, 1
    %p50 = scmp.ne.s32.totalorder %s45, %s47
    %p51 = scmp.eq.s32.totalorder %s16, 0
    %p52 = por %p50, %p51
    %p53 = scmp.ne.s32.totalorder %s45, %s47
    %p54 = scmp.eq.s32.totalorder %s21, 1
    %p55 = por %p53, %p54
    %p56 = scmp.ne.s32.totalorder %s47, %s48
    %p57 = scmp.eq.s32.totalorder %s21, 0
    %p58 = por %p56, %p57
    %p59 = scmp.ne.s32.totalorder %s47, %s48
    %p60 = scmp.eq.s32.totalorder %s22, 1
    %p61 = por %p59, %p60
    %p63 = scmp.ne.s32.totalorder %s48, %s62
    %p64 = scmp.eq.s32.totalorder %s22, 0
    %p65 = por %p63, %p64
    %s66 = ssub.s32 %s16, %s23
    %p67 = scmp.eq.s32.totalorder %s66, 0
    %s69 = sadd.s32 %s68, 1
    %s70 = scalar_select %p67, %s68, %s69
    %p73 = pneg %p67
    %p74 = scmp.eq.s32.totalorder %s16, 1
    %p75 = por %p73, %p74
    %p76 = scmp.ne.s32.totalorder %s68, %s71
    %p77 = scmp.eq.s32.totalorder %s16, 0
    %p78 = por %p76, %p77
    %p79 = scmp.ne.s32.totalorder %s68, %s71
    %p80 = scmp.eq.s32.totalorder %s21, 1
    %p81 = por %p79, %p80
    %p82 = scmp.ne.s32.totalorder %s71, %s72
    %p83 = scmp.eq.s32.totalorder %s21, 0
    %p84 = por %p82, %p83
    %p85 = scmp.ne.s32.totalorder %s71, %s72
    %p86 = scmp.eq.s32.totalorder %s22, 1
    %p87 = por %p85, %p86
    %p89 = scmp.ne.s32.totalorder %s72, %s88
    %p90 = scmp.eq.s32.totalorder %s22, 0
    %p91 = por %p89, %p90
    %s92 = ssub.s32 %s16, %s23
    %p93 = scmp.eq.s32.totalorder %s92, 0
    %s95 = sadd.s32 %s94, 1
    %s96 = scalar_select %p93, %s94, %s95
    %p99 = pneg %p93
    %p100 = scmp.eq.s32.totalorder %s16, 1
    %p101 = por %p99, %p100
    %p102 = scmp.ne.s32.totalorder %s94, %s97
    %p103 = scmp.eq.s32.totalorder %s16, 0
    %p104 = por %p102, %p103
    %p105 = scmp.ne.s32.totalorder %s94, %s97
    %p106 = scmp.eq.s32.totalorder %s21, 1
    %p107 = por %p105, %p106
    %p108 = scmp.ne.s32.totalorder %s97, %s98
    %p109 = scmp.eq.s32.totalorder %s21, 0
    %p110 = por %p108, %p109
    %p111 = scmp.ne.s32.totalorder %s97, %s98
    %p112 = scmp.eq.s32.totalorder %s22, 1
    %p113 = por %p111, %p112
    %p115 = scmp.ne.s32.totalorder %s98, %s114
    %p116 = scmp.eq.s32.totalorder %s22, 0
    %p117 = por %p115, %p116
    %s118 = ssub.s32 %s16, %s23
    %p119 = scmp.eq.s32.totalorder %s118, 0
    %s121 = sadd.s32 %s120, 1
    %s122 = scalar_select %p119, %s120, %s121
    %p125 = pneg %p119
    %p126 = scmp.eq.s32.totalorder %s16, 1
    %p127 = por %p125, %p126
    %p128 = scmp.ne.s32.totalorder %s120, %s123
    %p129 = scmp.eq.s32.totalorder %s16, 0
    %p130 = por %p128, %p129
    %p131 = scmp.ne.s32.totalorder %s120, %s123
    %p132 = scmp.eq.s32.totalorder %s21, 1
    %p133 = por %p131, %p132
    %p134 = scmp.ne.s32.totalorder %s123, %s124
    %p135 = scmp.eq.s32.totalorder %s21, 0
    %p136 = por %p134, %p135
    %p137 = scmp.ne.s32.totalorder %s123, %s124
    %p138 = scmp.eq.s32.totalorder %s22, 1
    %p139 = por %p137, %p138
    %p141 = scmp.ne.s32.totalorder %s124, %s140
    %p142 = scmp.eq.s32.totalorder %s22, 0
    %p143 = por %p141, %p142
    %s144 = ssub.s32 %s16, %s23
    %p145 = scmp.eq.s32.totalorder %s144, 0
    %s147 = sadd.s32 %s146, 1
    %s148 = scalar_select %p145, %s146, %s147
    %p151 = pneg %p145
    %p152 = scmp.eq.s32.totalorder %s16, 1
    %p153 = por %p151, %p152
    %p154 = scmp.ne.s32.totalorder %s146, %s149
    %p155 = scmp.eq.s32.totalorder %s16, 0
    %p156 = por %p154, %p155
    %p157 = scmp.ne.s32.totalorder %s146, %s149
    %p158 = scmp.eq.s32.totalorder %s21, 1
    %p159 = por %p157, %p158
    %p160 = scmp.ne.s32.totalorder %s149, %s150
    %p161 = scmp.eq.s32.totalorder %s21, 0
    %p162 = por %p160, %p161
    %p163 = scmp.ne.s32.totalorder %s149, %s150
    %p164 = scmp.eq.s32.totalorder %s22, 1
    %p165 = por %p163, %p164
    %p167 = scmp.ne.s32.totalorder %s150, %s166
    %p168 = scmp.eq.s32.totalorder %s22, 0
    %p169 = por %p167, %p168
    %s170 = ssub.s32 %s16, %s23
    %p171 = scmp.eq.s32.totalorder %s170, 0
    %s173 = sadd.s32 %s172, 1
    %s174 = scalar_select %p171, %s172, %s173
    %p177 = pneg %p171
    %p178 = scmp.eq.s32.totalorder %s16, 1
    %p179 = por %p177, %p178
    %p180 = scmp.ne.s32.totalorder %s172, %s175
    %p181 = scmp.eq.s32.totalorder %s16, 0
    %p182 = por %p180, %p181
    %p183 = scmp.ne.s32.totalorder %s172, %s175
    %p184 = scmp.eq.s32.totalorder %s21, 1
    %p185 = por %p183, %p184
    %p186 = scmp.ne.s32.totalorder %s175, %s176
    %p187 = scmp.eq.s32.totalorder %s21, 0
    %p188 = por %p186, %p187
    %p189 = scmp.ne.s32.totalorder %s175, %s176
    %p190 = scmp.eq.s32.totalorder %s22, 1
    %p191 = por %p189, %p190
    %p193 = scmp.ne.s32.totalorder %s176, %s192
    %p194 = scmp.eq.s32.totalorder %s22, 0
    %p195 = por %p193, %p194
    %s196 = ssub.s32 %s16, %s23
    %p197 = scmp.eq.s32.totalorder %s196, 0
    %s199 = sadd.s32 %s198, 1
    %s200 = scalar_select %p197, %s198, %s199
    %p203 = pneg %p197
    %p204 = scmp.eq.s32.totalorder %s16, 1
    %p205 = por %p203, %p204
    %p206 = scmp.ne.s32.totalorder %s198, %s201
    %p207 = scmp.eq.s32.totalorder %s16, 0
    %p208 = por %p206, %p207
    %p209 = scmp.ne.s32.totalorder %s198, %s201
    %p210 = scmp.eq.s32.totalorder %s21, 1
    %p211 = por %p209, %p210
    %p212 = scmp.ne.s32.totalorder %s201, %s202
    %p213 = scmp.eq.s32.totalorder %s21, 0
    %p214 = por %p212, %p213
    %p215 = scmp.ne.s32.totalorder %s201, %s202
    %p216 = scmp.eq.s32.totalorder %s22, 1
    %p217 = por %p215, %p216
    %p219 = scmp.ne.s32.totalorder %s202, %s218
    %p220 = scmp.eq.s32.totalorder %s22, 0
    %p221 = por %p219, %p220
    %s222 = ssub.s32 %s16, %s23
    %p223 = scmp.eq.s32.totalorder %s222, 0
    %s225 = sadd.s32 %s224, 1
    %s226 = scalar_select %p223, %s224, %s225
    %p229 = pneg %p223
    %p230 = scmp.eq.s32.totalorder %s16, 1
    %p231 = por %p229, %p230
    %p232 = scmp.ne.s32.totalorder %s224, %s227
    %p233 = scmp.eq.s32.totalorder %s16, 0
    %p234 = por %p232, %p233
    %p235 = scmp.ne.s32.totalorder %s224, %s227
    %p236 = scmp.eq.s32.totalorder %s21, 1
    %p237 = por %p235, %p236
    %p238 = scmp.ne.s32.totalorder %s227, %s228
    %p239 = scmp.eq.s32.totalorder %s21, 0
    %p240 = por %p238, %p239
    %p241 = scmp.ne.s32.totalorder %s227, %s228
    %p242 = scmp.eq.s32.totalorder %s22, 1
    %p243 = por %p241, %p242
    %p245 = scmp.ne.s32.totalorder %s228, %s244
    %p246 = scmp.eq.s32.totalorder %s22, 0
    %p247 = por %p245, %p246
    %s248 = ssub.s32 %s16, %s23
    %p249 = scmp.eq.s32.totalorder %s248, 0
    %s251 = sadd.s32 %s250, 1
    %s252 = scalar_select %p249, %s250, %s251
    %p255 = pneg %p249
    %p256 = scmp.eq.s32.totalorder %s16, 1
    %p257 = por %p255, %p256
    %p258 = scmp.ne.s32.totalorder %s250, %s253
    %p259 = scmp.eq.s32.totalorder %s16, 0
    %p260 = por %p258, %p259
    %p261 = scmp.ne.s32.totalorder %s250, %s253
    %p262 = scmp.eq.s32.totalorder %s21, 1
    %p263 = por %p261, %p262
    %p264 = scmp.ne.s32.totalorder %s253, %s254
    %p265 = scmp.eq.s32.totalorder %s21, 0
    %p266 = por %p264, %p265
    %p267 = scmp.ne.s32.totalorder %s253, %s254
    %p268 = scmp.eq.s32.totalorder %s22, 1
    %p269 = por %p267, %p268
    %p271 = scmp.ne.s32.totalorder %s254, %s270
    %p272 = scmp.eq.s32.totalorder %s22, 0
    %p273 = por %p271, %p272
    %p274 = scmp.le.s32.totalorder 1, %s16
    %p275 = scmp.lt.s32.totalorder %s16, 3
    %p276 = pnand %p274, %p275
    %p277 = pneg %p276
    // Predicated region
    $region9: #{encoder_rnn_forward.2} parent=5 // pred_check
      _
    $region10: #{encoder_rnn_forward.2} parent=5 // pred_check_branch
      %279 = sbr.rel (%p276) target = $region12
    $region11: #{encoder_rnn_forward.2} parent=5 // pred_region
      %s280 = ssub.s32 %s16, 1
      // Predicated region
      $region13: #{encoder_rnn_forward.2} parent=11 // pred_check
        %p281 = pneg %p37
      $region14: #{encoder_rnn_forward.2} parent=11 // pred_check_branch
        %283 = sbr.rel (%p281) target = $region16
      $region15: #{encoder_rnn_forward.2} parent=11 // pred_region
        _
      $region16: #{encoder_rnn_forward.2} parent=11 // pred_fallthru
        _
      // Predicated region
      $region17: #{encoder_rnn_forward.2} parent=11 // pred_check
        %p284 = pneg %p58
      $region18: #{encoder_rnn_forward.2} parent=11 // pred_check_branch
        %286 = sbr.rel (%p284) target = $region20
      $region19: #{encoder_rnn_forward.2} parent=11 // pred_region
        _
      $region20: #{encoder_rnn_forward.2} parent=11 // pred_fallthru
        _
    $region12: #{encoder_rnn_forward.2} parent=5 // pred_fallthru
      _
    %p287 = scmp.lt.s32.totalorder %s16, 2
    // Predicated region
    $region21: #{encoder_rnn_forward.2} parent=5 // pred_check
      %p288 = pneg %p287
    $region22: #{encoder_rnn_forward.2} parent=5 // pred_check_branch
      %290 = sbr.rel (%p288) target = $region24
    $region23: #{encoder_rnn_forward.2} parent=5 // pred_region
      // Predicated region
      $region25: #{encoder_rnn_forward.2} parent=23 // pred_check
        %p291 = pneg %p78
      $region26: #{encoder_rnn_forward.2} parent=23 // pred_check_branch
        %293 = sbr.rel (%p291) target = $region28
      $region27: #{encoder_rnn_forward.2} parent=23 // pred_region
        %p294 = scmp.lt.s32.totalorder %s16, 1
        %s295 = scalar_select %p294, %s16, 1
        %s296 = smul.addr %s295, 2
        %s297 = smul.addr %s296, 8
        %s298 = scalar_lea.vmem %s2, %s297
      $region28: #{encoder_rnn_forward.2} parent=23 // pred_fallthru
        _
      // Predicated region
      $region29: #{encoder_rnn_forward.2} parent=23 // pred_check
        %p299 = pneg %p104
      $region30: #{encoder_rnn_forward.2} parent=23 // pred_check_branch
        %301 = sbr.rel (%p299) target = $region32
      $region31: #{encoder_rnn_forward.2} parent=23 // pred_region
        %p302 = scmp.lt.s32.totalorder %s16, 1
        %s303 = scalar_select %p302, %s16, 1
        %s304 = smul.addr %s303, 4
        %s305 = smul.addr %s304, 8
        %s306 = scalar_lea.vmem %s3, %s305
      $region32: #{encoder_rnn_forward.2} parent=23 // pred_fallthru
        _
      // Predicated region
      $region33: #{encoder_rnn_forward.2} parent=23 // pred_check
        %p307 = pneg %p130
      $region34: #{encoder_rnn_forward.2} parent=23 // pred_check_branch
        %309 = sbr.rel (%p307) target = $region36
      $region35: #{encoder_rnn_forward.2} parent=23 // pred_region
        %p310 = scmp.lt.s32.totalorder %s16, 1
        %s311 = scalar_select %p310, %s16, 1
        %s312 = scalar_lea.vmem %s4, %s311
      $region36: #{encoder_rnn_forward.2} parent=23 // pred_fallthru
        _
      // Predicated region
      $region37: #{encoder_rnn_forward.2} parent=23 // pred_check
        %p313 = pneg %p156
      $region38: #{encoder_rnn_forward.2} parent=23 // pred_check_branch
        %315 = sbr.rel (%p313) target = $region40
      $region39: #{encoder_rnn_forward.2} parent=23 // pred_region
        %p316 = scmp.lt.s32.totalorder %s16, 1
        %s317 = scalar_select %p316, %s16, 1
        %s318 = smul.addr %s317, 4
        %s319 = scalar_lea.vmem %s5, %s318
      $region40: #{encoder_rnn_forward.2} parent=23 // pred_fallthru
        _
      // Predicated region
      $region41: #{encoder_rnn_forward.2} parent=23 // pred_check
        %p320 = pneg %p182
      $region42: #{encoder_rnn_forward.2} parent=23 // pred_check_branch
        %322 = sbr.rel (%p320) target = $region44
      $region43: #{encoder_rnn_forward.2} parent=23 // pred_region
        %p323 = scmp.lt.s32.totalorder %s16, 1
        %s324 = scalar_select %p323, %s16, 1
        %s325 = smul.addr %s324, 4
        %s326 = scalar_lea.vmem %s6, %s325
      $region44: #{encoder_rnn_forward.2} parent=23 // pred_fallthru
        _
    $region24: #{encoder_rnn_forward.2} parent=5 // pred_fallthru
      _
    %p327 = scmp.le.s32.totalorder 1, %s16
    %p328 = scmp.lt.s32.totalorder %s16, 3
    %p329 = pnand %p327, %p328
    %p330 = pneg %p329
    // Predicated region
    $region45: #{encoder_rnn_forward.2} parent=5 // pred_check
      _
    $region46: #{encoder_rnn_forward.2} parent=5 // pred_check_branch
      %332 = sbr.rel (%p329) target = $region48
    $region47: #{encoder_rnn_forward.2} parent=5 // pred_region
      %s333 = ssub.s32 %s16, 1
      %p334 = pneg %p37
      %p335 = pneg %p34
      %p336 = pneg %p58
      %p337 = pneg %p55
      %p338 = scmp.lt.s32.totalorder %s21, 1
      %s339 = scalar_select %p338, %s21, 1
      %s340 = smul.addr %s339, 2
      %s341 = smul.addr %s340, 8
      %s342 = scalar_lea.vmem %s2, %s341
      %p343 = pneg %p84
      %p344 = pneg %p81
      %p345 = scmp.lt.s32.totalorder %s21, 1
      %s346 = scalar_select %p345, %s21, 1
      %s347 = smul.addr %s346, 4
      %s348 = smul.addr %s347, 8
      %s349 = scalar_lea.vmem %s3, %s348
      %p350 = pneg %p110
      %p351 = pneg %p107
      %p352 = scmp.lt.s32.totalorder %s21, 1
      %s353 = scalar_select %p352, %s21, 1
      %s354 = scalar_lea.vmem %s4, %s353
      %p355 = pneg %p136
      %p356 = pneg %p133
      %p357 = scmp.lt.s32.totalorder %s21, 1
      %s358 = scalar_select %p357, %s21, 1
      %s359 = smul.addr %s358, 4
      %s360 = scalar_lea.vmem %s5, %s359
      %p361 = pneg %p162
      %p362 = pneg %p159
      %p363 = scmp.lt.s32.totalorder %s21, 1
      %s364 = scalar_select %p363, %s21, 1
      %s365 = smul.addr %s364, 4
      %s366 = scalar_lea.vmem %s6, %s365
      %p367 = pneg %p188
      %p368 = pneg %p185
      %p369 = pneg %p214
      %p370 = pneg %p211
      %p371 = scmp.lt.s32.totalorder %s21, 1
      %s372 = scalar_select %p371, %s21, 1
      %s373 = smul.addr %s372, 8
      %s374 = smul.addr %s373, 4
      %s375 = scalar_lea.vmem %s7, %s374
      %p376 = pneg %p240
      %p377 = pneg %p237
      %p378 = scmp.lt.s32.totalorder %s21, 1
      %s379 = scalar_select %p378, %s21, 1
      %s380 = smul.addr %s379, 4
      %s381 = scalar_lea.vmem %s8, %s380
      %p382 = pneg %p266
      %p383 = pneg %p263
      %p384 = scmp.lt.s32.totalorder %s21, 1
      %s385 = scalar_select %p384, %s21, 1
      %s386 = smul.addr %s385, 4
      %s387 = scalar_lea.vmem %s9, %s386
      %p388 = scmp.lt.s32.totalorder %s21, 1
      %s389 = scalar_select %p388, %s21, 1
      %s390 = smul.addr %s389, 2
      %s391 = smul.addr %s390, 8
      %s392 = scalar_lea.vmem %s2, %s391
      %p393 = scmp.lt.s32.totalorder %s21, 1
      %s394 = scalar_select %p393, %s21, 1
      %s395 = smul.addr %s394, 4
      %s396 = smul.addr %s395, 8
      %s397 = scalar_lea.vmem %s3, %s396
      %p398 = scmp.lt.s32.totalorder %s21, 1
      %s399 = scalar_select %p398, %s21, 1
      %s400 = scalar_lea.vmem %s4, %s399
      %p401 = scmp.lt.s32.totalorder %s21, 1
      %s402 = scalar_select %p401, %s21, 1
      %s403 = smul.addr %s402, 4
      %s404 = scalar_lea.vmem %s5, %s403
      %p405 = scmp.lt.s32.totalorder %s21, 1
      %s406 = scalar_select %p405, %s21, 1
      %s407 = smul.addr %s406, 4
      %s408 = scalar_lea.vmem %s6, %s407
      %p409 = scmp.lt.s32.totalorder %s21, 1
      %s410 = scalar_select %p409, %s21, 1
      %s411 = smul.addr %s410, 8
      %s412 = smul.addr %s411, 4
      %s413 = scalar_lea.vmem %s7, %s412
      %p414 = scmp.lt.s32.totalorder %s21, 1
      %s415 = scalar_select %p414, %s21, 1
      %s416 = smul.addr %s415, 4
      %s417 = scalar_lea.vmem %s8, %s416
      %p418 = scmp.lt.s32.totalorder %s21, 1
      %s419 = scalar_select %p418, %s21, 1
      %s420 = smul.addr %s419, 4
      %s421 = scalar_lea.vmem %s9, %s420
      %v422 = vld [vmem:[%s1] sm:$0xf]
      %v423 = vld [vmem:[%s392] sm:$0xff]
      %v424 = vld [vmem:[%s392 + $0x8] sm:$0xff]
      %v425 = vld [vmem:[%s397] sm:$0xff]
      %v426 = vld [vmem:[%s397 + $0x8] sm:$0xff]
      %v427 = vld [vmem:[%s397 + $0x10] sm:$0xff]
      %v428 = vld [vmem:[%s397 + $0x18] sm:$0xff]
      %v429 = vld [vmem:[%s400] sm:$0x1]
      %v430 = vld [vmem:[%s0] sm:$0xf]
      %v431 = vld [vmem:[%s0 + $0x4] sm:$0xf]
      %v432 = vld [vmem:[%s0 + $0x8] sm:$0xf]
      %v433 = vld [vmem:[%s0 + $0xc] sm:$0xf]
      %v434 = vld [vmem:[%s0 + $0x10] sm:$0xf]
      %v435 = vld [vmem:[%s0 + $0x14] sm:$0xf]
      %v436 = vld [vmem:[%s0 + $0x18] sm:$0xf]
      %v437 = vld [vmem:[%s0 + $0x1c] sm:$0xf]
      %v439 = vlaneseq
      %v440 = vshrl.u32 %v439, 7
      %v441 = vsub.s32 0, %v440
      %v442 = vrot.slane %v429, %v441
      %v452 = vcombine.low %v430, %v431
      %v453 = vcombine.low %v432, %v433
      %v454 = vcombine.low %v434, %v435
      %v455 = vcombine.low %v436, %v437
      %vm456 = vcmask 130048
      %v457 = vsel %vm456, %v452, 0
      %v459 = vsel %vm456, %v453, 0
      %v461 = vsel %vm456, %v454, 0
      %v463 = vsel %vm456, %v455, 0
      %465 = vmatprep.subr.mxu0 0.0
      %466 = vmatpush1.msra.mxu0 0.0
      %467 = vmatprep.subr.mxu0 0.0
      %468 = vmatpush1.msra.mxu0 0.0
      %469 = vmatprep.subr.mxu0 0.0
      %470 = vmatpush1.msra.mxu0 0.0
      %471 = vmatprep.subr.mxu0 0.0
      %472 = vmatpush1.msra.mxu0 0.0
      %473 = vmatprep.subr.mxu0 0.0
      %474 = vmatpush1.msra.mxu0 0.0
      %475 = vmatprep.subr.mxu0 0.0
      %476 = vmatpush1.msra.mxu0 0.0
      %477 = vmatprep.subr.mxu0 0.0
      %478 = vmatpush1.msra.mxu0 0.0
      %479 = vmatprep.subr.mxu0 0.0
      %480 = vmatpush1.msra.mxu0 0.0
      %481 = vmatprep.subr.mxu0 0.0
      %482 = vmatpush1.msra.mxu0 0.0
      %483 = vmatprep.subr.mxu0 0.0
      %484 = vmatpush1.msra.mxu0 0.0
      %485 = vmatprep.subr.mxu0 0.0
      %486 = vmatpush1.msra.mxu0 0.0
      %487 = vmatprep.subr.mxu0 0.0
      %488 = vmatpush1.msra.mxu0 0.0
      %489 = vmatprep.subr.mxu0 0.0
      %490 = vmatpush1.msra.mxu0 0.0
      %491 = vmatprep.subr.mxu0 0.0
      %492 = vmatpush1.msra.mxu0 0.0
      %493 = vmatprep.subr.mxu0 0.0
      %494 = vmatpush1.msra.mxu0 %v424
      %495 = vmatprep.subr.mxu0 0.0
      %496 = vmatpush1.msra.mxu0 %v423
      %497 = vmatprep.subr.mxu0 0.0
      %498 = vmatpush2.msra.mxu0 0.0
      %499 = vmatprep.subr.mxu0 0.0
      %500 = vmatpush2.msra.mxu0 0.0
      %501 = vmatprep.subr.mxu0 0.0
      %502 = vmatpush2.msra.mxu0 0.0
      %503 = vmatprep.subr.mxu0 0.0
      %504 = vmatpush2.msra.mxu0 0.0
      %505 = vmatprep.subr.mxu0 0.0
      %506 = vmatpush2.msra.mxu0 0.0
      %507 = vmatprep.subr.mxu0 0.0
      %508 = vmatpush2.msra.mxu0 0.0
      %509 = vmatprep.subr.mxu0 0.0
      %510 = vmatpush2.msra.mxu0 0.0
      %511 = vmatprep.subr.mxu0 0.0
      %512 = vmatpush2.msra.mxu0 0.0
      %513 = vmatprep.subr.mxu0 0.0
      %514 = vmatpush2.msra.mxu0 0.0
      %515 = vmatprep.subr.mxu0 0.0
      %516 = vmatpush2.msra.mxu0 0.0
      %517 = vmatprep.subr.mxu0 0.0
      %518 = vmatpush2.msra.mxu0 0.0
      %519 = vmatprep.subr.mxu0 0.0
      %520 = vmatpush2.msra.mxu0 0.0
      %521 = vmatprep.subr.mxu0 0.0
      %522 = vmatpush2.msra.mxu0 0.0
      %523 = vmatprep.subr.mxu0 0.0
      %524 = vmatpush2.msra.mxu0 0.0
      %525 = vmatprep.subr.mxu0 0.0
      %526 = vmatpush2.msra.mxu0 0.0
      %527 = vmatprep.subr.mxu0 0.0
      %528 = vmatpush2.msra.mxu0 0.0
      %529 = vmatprep.mubr.f32.mxu0 0.0
      %530 = vmatmul.mubr.f32.gmra.mxu0 %v457
      %v531 = vpop.f32.mrf.mxu0
      %v532 = vadd.f32 %v442, %v531
      %v533 = vpop.f32.mrf.mxu0
      %534 = vmatprep.mubr.f32.mxu0 0.0
      %535 = vmatmul.mubr.f32.gmra.mxu0 %v459
      %v536 = vpop.f32.mrf.mxu0
      %v537 = vadd.f32 %v442, %v536
      %v538 = vpop.f32.mrf.mxu0
      %539 = vmatprep.mubr.f32.mxu0 0.0
      %540 = vmatmul.mubr.f32.gmra.mxu0 %v461
      %v541 = vpop.f32.mrf.mxu0
      %v542 = vadd.f32 %v442, %v541
      %v543 = vpop.f32.mrf.mxu0
      %544 = vmatprep.mubr.f32.mxu0 0.0
      %545 = vmatmul.mubr.f32.gmra.mxu0 %v463
      %v546 = vpop.f32.mrf.mxu0
      %v547 = vadd.f32 %v442, %v546
      %v548 = vpop.f32.mrf.mxu0
      %549 = vdwg.mxu0
      %v554 = vcombine.high %v532, %v532
      %v555 = vcombine.high %v537, %v537
      %v556 = vcombine.high %v542, %v542
      %v557 = vcombine.high %v547, %v547
      %562 = vst [vmem:[#allocation2] sm:$0xf] %v532
      %563 = vst [vmem:[#allocation2 + $0x4] sm:$0xf] %v554
      %564 = vst [vmem:[#allocation2 + $0x8] sm:$0xf] %v537
      %565 = vst [vmem:[#allocation2 + $0xc] sm:$0xf] %v555
      %566 = vst [vmem:[#allocation2 + $0x10] sm:$0xf] %v542
      %567 = vst [vmem:[#allocation2 + $0x14] sm:$0xf] %v556
      %568 = vst [vmem:[#allocation2 + $0x18] sm:$0xf] %v547
      %569 = vst [vmem:[#allocation2 + $0x1c] sm:$0xf] %v557
      %p570 = scmp.eq.s32.totalorder %s21, 1
      %v571 = vld [vmem:[%s404] sm:$0xf]
      %v572 = vld [vmem:[%s408] sm:$0xf]
      %s573 = scalar_select %p570, 7, 0
      %s574 = smul.u32 %s573, 4
      %s575 = scalar_lea.vmem [#allocation2], %s574
      %v576 = vld [vmem:[%s575] sm:$0xf]
      %vm577 = vcmask 261120
      %v579 = vsel %vm577, %v571, 0
      %581 = vmatprep.subr.mxu0 0.0
      %582 = vmatpush1.msra.mxu0 0.0
      %583 = vmatprep.subr.mxu0 0.0
      %584 = vmatpush1.msra.mxu0 0.0
      %585 = vmatprep.subr.mxu0 0.0
      %586 = vmatpush1.msra.mxu0 0.0
      %587 = vmatprep.subr.mxu0 0.0
      %588 = vmatpush1.msra.mxu0 0.0
      %589 = vmatprep.subr.mxu0 0.0
      %590 = vmatpush1.msra.mxu0 0.0
      %591 = vmatprep.subr.mxu0 0.0
      %592 = vmatpush1.msra.mxu0 0.0
      %593 = vmatprep.subr.mxu0 0.0
      %594 = vmatpush1.msra.mxu0 0.0
      %595 = vmatprep.subr.mxu0 0.0
      %596 = vmatpush1.msra.mxu0 0.0
      %597 = vmatprep.subr.mxu0 0.0
      %598 = vmatpush1.msra.mxu0 0.0
      %599 = vmatprep.subr.mxu0 0.0
      %600 = vmatpush1.msra.mxu0 0.0
      %601 = vmatprep.subr.mxu0 0.0
      %602 = vmatpush1.msra.mxu0 0.0
      %603 = vmatprep.subr.mxu0 0.0
      %604 = vmatpush1.msra.mxu0 0.0
      %605 = vmatprep.subr.mxu0 0.0
      %606 = vmatpush1.msra.mxu0 %v428
      %607 = vmatprep.subr.mxu0 0.0
      %608 = vmatpush1.msra.mxu0 %v427
      %609 = vmatprep.subr.mxu0 0.0
      %610 = vmatpush1.msra.mxu0 %v426
      %611 = vmatprep.subr.mxu0 0.0
      %612 = vmatpush1.msra.mxu0 %v425
      %613 = vmatprep.subr.mxu0 0.0
      %614 = vmatpush2.msra.mxu0 0.0
      %615 = vmatprep.subr.mxu0 0.0
      %616 = vmatpush2.msra.mxu0 0.0
      %617 = vmatprep.subr.mxu0 0.0
      %618 = vmatpush2.msra.mxu0 0.0
      %619 = vmatprep.subr.mxu0 0.0
      %620 = vmatpush2.msra.mxu0 0.0
      %621 = vmatprep.subr.mxu0 0.0
      %622 = vmatpush2.msra.mxu0 0.0
      %623 = vmatprep.subr.mxu0 0.0
      %624 = vmatpush2.msra.mxu0 0.0
      %625 = vmatprep.subr.mxu0 0.0
      %626 = vmatpush2.msra.mxu0 0.0
      %627 = vmatprep.subr.mxu0 0.0
      %628 = vmatpush2.msra.mxu0 0.0
      %629 = vmatprep.subr.mxu0 0.0
      %630 = vmatpush2.msra.mxu0 0.0
      %631 = vmatprep.subr.mxu0 0.0
      %632 = vmatpush2.msra.mxu0 0.0
      %633 = vmatprep.subr.mxu0 0.0
      %634 = vmatpush2.msra.mxu0 0.0
      %635 = vmatprep.subr.mxu0 0.0
      %636 = vmatpush2.msra.mxu0 0.0
      %637 = vmatprep.subr.mxu0 0.0
      %638 = vmatpush2.msra.mxu0 0.0
      %639 = vmatprep.subr.mxu0 0.0
      %640 = vmatpush2.msra.mxu0 0.0
      %641 = vmatprep.subr.mxu0 0.0
      %642 = vmatpush2.msra.mxu0 0.0
      %643 = vmatprep.subr.mxu0 0.0
      %644 = vmatpush2.msra.mxu0 0.0
      %645 = vmatprep.mubr.f32.mxu0 0.0
      %646 = vmatmul.mubr.f32.gmra.mxu0 %v579
      %v647 = vpop.f32.mrf.mxu0
      %v648 = vadd.f32 0.0, %v647
      %v649 = vpop.f32.mrf.mxu0
      %650 = vdwg.mxu0
      %v651 = vadd.f32 %v576, %v648
      %v652 = vxor.u32 %v651, 2147483648
      %v653 = vmul.f32 %v652, 1.442695
      %v654 = vpow.pop %v653
      %v655 = vadd.f32 %v654, 1.0
      %v656 = vrcp.pop %v655
      %v657 = vmul.f32 1.0, %v656
      %v658 = vtanh.pop %v651
      %660 = vrot.lane.b32.xlu0 %v572, 32
      %v661 = vpop.permute.xlu0 %660
      %v663 = vmul.f32 %v657, %v661
      %665 = vrot.lane.b32.xlu0 %v658, 64
      %v666 = vpop.permute.xlu0 %665
      %v668 = vmul.f32 %v657, %v666
      %670 = vrot.lane.b32.xlu0 %v668, 32
      %v671 = vpop.permute.xlu0 %670
      %v673 = vadd.f32 %v663, %v671
      %v674 = vtanh.pop %v673
      %676 = vrot.lane.b32.xlu0 %v674, 64
      %v677 = vpop.permute.xlu0 %676
      %v679 = vmul.f32 %v657, %v677
      %v680 = vstv %s573
      %vm681 = vcmp.lt.s32.totalorder %v680, %v422
      %v682 = vsel %vm681, 1, 0
      %683 = vset.pattern.permute.xlu0 0
      %684 = vperm.xlu0 %683, %v682
      %v685 = vpop.permute.xlu0 %684
      %vm686 = vcmp.eq.s32.totalorder %v685, 1
      %v687 = vsel %vm686, %v673, %v661
      %688 = vrot.lane.b32.xlu0 %v571, 96
      %v689 = vpop.permute.xlu0 %688
      %v691 = vsel %vm686, %v679, %v689
      %693 = vrot.lane.b32.xlu0 %v679, 32
      %v694 = vpop.permute.xlu0 %693
      %s696 = scalar_lea.vmem %s413, %s574
      %vm697 = vcmask 257024
      %698 = vst.msk [vmem:[%s696] sm:$0xf] %vm697, %v694
      %s699 = scalar_select %p570, 6, 1
      %s700 = smul.u32 %s699, 4
      %s701 = scalar_lea.vmem [#allocation2], %s700
      %v702 = vld [vmem:[%s701] sm:$0xf]
      %704 = vrot.lane.b32.xlu0 %v691, 32
      %v705 = vpop.permute.xlu0 %704
      %v706 = vsel %vm577, %v705, 0
      %708 = vmatprep.subr.mxu0 0.0
      %709 = vmatpush1.msra.mxu0 0.0
      %710 = vmatprep.subr.mxu0 0.0
      %711 = vmatpush1.msra.mxu0 0.0
      %712 = vmatprep.subr.mxu0 0.0
      %713 = vmatpush1.msra.mxu0 0.0
      %714 = vmatprep.subr.mxu0 0.0
      %715 = vmatpush1.msra.mxu0 0.0
      %716 = vmatprep.subr.mxu0 0.0
      %717 = vmatpush1.msra.mxu0 0.0
      %718 = vmatprep.subr.mxu0 0.0
      %719 = vmatpush1.msra.mxu0 0.0
      %720 = vmatprep.subr.mxu0 0.0
      %721 = vmatpush1.msra.mxu0 0.0
      %722 = vmatprep.subr.mxu0 0.0
      %723 = vmatpush1.msra.mxu0 0.0
      %724 = vmatprep.subr.mxu0 0.0
      %725 = vmatpush1.msra.mxu0 0.0
      %726 = vmatprep.subr.mxu0 0.0
      %727 = vmatpush1.msra.mxu0 0.0
      %728 = vmatprep.subr.mxu0 0.0
      %729 = vmatpush1.msra.mxu0 0.0
      %730 = vmatprep.subr.mxu0 0.0
      %731 = vmatpush1.msra.mxu0 0.0
      %732 = vmatprep.subr.mxu0 0.0
      %733 = vmatpush1.msra.mxu0 %v428
      %734 = vmatprep.subr.mxu0 0.0
      %735 = vmatpush1.msra.mxu0 %v427
      %736 = vmatprep.subr.mxu0 0.0
      %737 = vmatpush1.msra.mxu0 %v426
      %738 = vmatprep.subr.mxu0 0.0
      %739 = vmatpush1.msra.mxu0 %v425
      %740 = vmatprep.subr.mxu0 0.0
      %741 = vmatpush2.msra.mxu0 0.0
      %742 = vmatprep.subr.mxu0 0.0
      %743 = vmatpush2.msra.mxu0 0.0
      %744 = vmatprep.subr.mxu0 0.0
      %745 = vmatpush2.msra.mxu0 0.0
      %746 = vmatprep.subr.mxu0 0.0
      %747 = vmatpush2.msra.mxu0 0.0
      %748 = vmatprep.subr.mxu0 0.0
      %749 = vmatpush2.msra.mxu0 0.0
      %750 = vmatprep.subr.mxu0 0.0
      %751 = vmatpush2.msra.mxu0 0.0
      %752 = vmatprep.subr.mxu0 0.0
      %753 = vmatpush2.msra.mxu0 0.0
      %754 = vmatprep.subr.mxu0 0.0
      %755 = vmatpush2.msra.mxu0 0.0
      %756 = vmatprep.subr.mxu0 0.0
      %757 = vmatpush2.msra.mxu0 0.0
      %758 = vmatprep.subr.mxu0 0.0
      %759 = vmatpush2.msra.mxu0 0.0
      %760 = vmatprep.subr.mxu0 0.0
      %761 = vmatpush2.msra.mxu0 0.0
      %762 = vmatprep.subr.mxu0 0.0
      %763 = vmatpush2.msra.mxu0 0.0
      %764 = vmatprep.subr.mxu0 0.0
      %765 = vmatpush2.msra.mxu0 0.0
      %766 = vmatprep.subr.mxu0 0.0
      %767 = vmatpush2.msra.mxu0 0.0
      %768 = vmatprep.subr.mxu0 0.0
      %769 = vmatpush2.msra.mxu0 0.0
      %770 = vmatprep.subr.mxu0 0.0
      %771 = vmatpush2.msra.mxu0 0.0
      %772 = vmatprep.mubr.f32.mxu0 0.0
      %773 = vmatmul.mubr.f32.gmra.mxu0 %v706
      %v774 = vpop.f32.mrf.mxu0
      %v775 = vadd.f32 0.0, %v774
      %v776 = vpop.f32.mrf.mxu0
      %777 = vdwg.mxu0
      %v778 = vadd.f32 %v702, %v775
      %v779 = vxor.u32 %v778, 2147483648
      %v780 = vmul.f32 %v779, 1.442695
      %v781 = vpow.pop %v780
      %v782 = vadd.f32 %v781, 1.0
      %v783 = vrcp.pop %v782
      %v784 = vmul.f32 1.0, %v783
      %v785 = vtanh.pop %v778
      %v786 = vmul.f32 %v784, %v687
      %788 = vrot.lane.b32.xlu0 %v785, 64
      %v789 = vpop.permute.xlu0 %788
      %v791 = vmul.f32 %v784, %v789
      %793 = vrot.lane.b32.xlu0 %v791, 32
      %v794 = vpop.permute.xlu0 %793
      %v796 = vadd.f32 %v786, %v794
      %v797 = vtanh.pop %v796
      %799 = vrot.lane.b32.xlu0 %v797, 64
      %v800 = vpop.permute.xlu0 %799
      %v802 = vmul.f32 %v784, %v800
      %v803 = vstv %s699
      %vm804 = vcmp.lt.s32.totalorder %v803, %v422
      %v805 = vsel %vm804, 1, 0
      %806 = vset.pattern.permute.xlu0 0
      %807 = vperm.xlu0 %806, %v805
      %v808 = vpop.permute.xlu0 %807
      %vm809 = vcmp.eq.s32.totalorder %v808, 1
      %v810 = vsel %vm809, %v796, %v687
      %v811 = vsel %vm809, %v802, %v691
      %813 = vrot.lane.b32.xlu0 %v802, 32
      %v814 = vpop.permute.xlu0 %813
      %s816 = scalar_lea.vmem %s413, %s700
      %817 = vst.msk [vmem:[%s816] sm:$0xf] %vm697, %v814
      %s818 = scalar_select %p570, 5, 2
      %s819 = smul.u32 %s818, 4
      %s820 = scalar_lea.vmem [#allocation2], %s819
      %v821 = vld [vmem:[%s820] sm:$0xf]
      %823 = vrot.lane.b32.xlu0 %v811, 32
      %v824 = vpop.permute.xlu0 %823
      %v825 = vsel %vm577, %v824, 0
      %827 = vmatprep.subr.mxu0 0.0
      %828 = vmatpush1.msra.mxu0 0.0
      %829 = vmatprep.subr.mxu0 0.0
      %830 = vmatpush1.msra.mxu0 0.0
      %831 = vmatprep.subr.mxu0 0.0
      %832 = vmatpush1.msra.mxu0 0.0
      %833 = vmatprep.subr.mxu0 0.0
      %834 = vmatpush1.msra.mxu0 0.0
      %835 = vmatprep.subr.mxu0 0.0
      %836 = vmatpush1.msra.mxu0 0.0
      %837 = vmatprep.subr.mxu0 0.0
      %838 = vmatpush1.msra.mxu0 0.0
      %839 = vmatprep.subr.mxu0 0.0
      %840 = vmatpush1.msra.mxu0 0.0
      %841 = vmatprep.subr.mxu0 0.0
      %842 = vmatpush1.msra.mxu0 0.0
      %843 = vmatprep.subr.mxu0 0.0
      %844 = vmatpush1.msra.mxu0 0.0
      %845 = vmatprep.subr.mxu0 0.0
      %846 = vmatpush1.msra.mxu0 0.0
      %847 = vmatprep.subr.mxu0 0.0
      %848 = vmatpush1.msra.mxu0 0.0
      %849 = vmatprep.subr.mxu0 0.0
      %850 = vmatpush1.msra.mxu0 0.0
      %851 = vmatprep.subr.mxu0 0.0
      %852 = vmatpush1.msra.mxu0 %v428
      %853 = vmatprep.subr.mxu0 0.0
      %854 = vmatpush1.msra.mxu0 %v427
      %855 = vmatprep.subr.mxu0 0.0
      %856 = vmatpush1.msra.mxu0 %v426
      %857 = vmatprep.subr.mxu0 0.0
      %858 = vmatpush1.msra.mxu0 %v425
      %859 = vmatprep.subr.mxu0 0.0
      %860 = vmatpush2.msra.mxu0 0.0
      %861 = vmatprep.subr.mxu0 0.0
      %862 = vmatpush2.msra.mxu0 0.0
      %863 = vmatprep.subr.mxu0 0.0
      %864 = vmatpush2.msra.mxu0 0.0
      %865 = vmatprep.subr.mxu0 0.0
      %866 = vmatpush2.msra.mxu0 0.0
      %867 = vmatprep.subr.mxu0 0.0
      %868 = vmatpush2.msra.mxu0 0.0
      %869 = vmatprep.subr.mxu0 0.0
      %870 = vmatpush2.msra.mxu0 0.0
      %871 = vmatprep.subr.mxu0 0.0
      %872 = vmatpush2.msra.mxu0 0.0
      %873 = vmatprep.subr.mxu0 0.0
      %874 = vmatpush2.msra.mxu0 0.0
      %875 = vmatprep.subr.mxu0 0.0
      %876 = vmatpush2.msra.mxu0 0.0
      %877 = vmatprep.subr.mxu0 0.0
      %878 = vmatpush2.msra.mxu0 0.0
      %879 = vmatprep.subr.mxu0 0.0
      %880 = vmatpush2.msra.mxu0 0.0
      %881 = vmatprep.subr.mxu0 0.0
      %882 = vmatpush2.msra.mxu0 0.0
      %883 = vmatprep.subr.mxu0 0.0
      %884 = vmatpush2.msra.mxu0 0.0
      %885 = vmatprep.subr.mxu0 0.0
      %886 = vmatpush2.msra.mxu0 0.0
      %887 = vmatprep.subr.mxu0 0.0
      %888 = vmatpush2.msra.mxu0 0.0
      %889 = vmatprep.subr.mxu0 0.0
      %890 = vmatpush2.msra.mxu0 0.0
      %891 = vmatprep.mubr.f32.mxu0 0.0
      %892 = vmatmul.mubr.f32.gmra.mxu0 %v825
      %v893 = vpop.f32.mrf.mxu0
      %v894 = vadd.f32 0.0, %v893
      %v895 = vpop.f32.mrf.mxu0
      %896 = vdwg.mxu0
      %v897 = vadd.f32 %v821, %v894
      %v898 = vxor.u32 %v897, 2147483648
      %v899 = vmul.f32 %v898, 1.442695
      %v900 = vpow.pop %v899
      %v901 = vadd.f32 %v900, 1.0
      %v902 = vrcp.pop %v901
      %v903 = vmul.f32 1.0, %v902
      %v904 = vtanh.pop %v897
      %v905 = vmul.f32 %v903, %v810
      %907 = vrot.lane.b32.xlu0 %v904, 64
      %v908 = vpop.permute.xlu0 %907
      %v910 = vmul.f32 %v903, %v908
      %912 = vrot.lane.b32.xlu0 %v910, 32
      %v913 = vpop.permute.xlu0 %912
      %v915 = vadd.f32 %v905, %v913
      %v916 = vtanh.pop %v915
      %918 = vrot.lane.b32.xlu0 %v916, 64
      %v919 = vpop.permute.xlu0 %918
      %v921 = vmul.f32 %v903, %v919
      %v922 = vstv %s818
      %vm923 = vcmp.lt.s32.totalorder %v922, %v422
      %v924 = vsel %vm923, 1, 0
      %925 = vset.pattern.permute.xlu0 0
      %926 = vperm.xlu0 %925, %v924
      %v927 = vpop.permute.xlu0 %926
      %vm928 = vcmp.eq.s32.totalorder %v927, 1
      %v929 = vsel %vm928, %v915, %v810
      %v930 = vsel %vm928, %v921, %v811
      %932 = vrot.lane.b32.xlu0 %v921, 32
      %v933 = vpop.permute.xlu0 %932
      %s935 = scalar_lea.vmem %s413, %s819
      %936 = vst.msk [vmem:[%s935] sm:$0xf] %vm697, %v933
      %s937 = scalar_select %p570, 4, 3
      %s938 = smul.u32 %s937, 4
      %s939 = scalar_lea.vmem [#allocation2], %s938
      %v940 = vld [vmem:[%s939] sm:$0xf]
      %942 = vrot.lane.b32.xlu0 %v930, 32
      %v943 = vpop.permute.xlu0 %942
      %v944 = vsel %vm577, %v943, 0
      %946 = vmatprep.subr.mxu0 0.0
      %947 = vmatpush1.msra.mxu0 0.0
      %948 = vmatprep.subr.mxu0 0.0
      %949 = vmatpush1.msra.mxu0 0.0
      %950 = vmatprep.subr.mxu0 0.0
      %951 = vmatpush1.msra.mxu0 0.0
      %952 = vmatprep.subr.mxu0 0.0
      %953 = vmatpush1.msra.mxu0 0.0
      %954 = vmatprep.subr.mxu0 0.0
      %955 = vmatpush1.msra.mxu0 0.0
      %956 = vmatprep.subr.mxu0 0.0
      %957 = vmatpush1.msra.mxu0 0.0
      %958 = vmatprep.subr.mxu0 0.0
      %959 = vmatpush1.msra.mxu0 0.0
      %960 = vmatprep.subr.mxu0 0.0
      %961 = vmatpush1.msra.mxu0 0.0
      %962 = vmatprep.subr.mxu0 0.0
      %963 = vmatpush1.msra.mxu0 0.0
      %964 = vmatprep.subr.mxu0 0.0
      %965 = vmatpush1.msra.mxu0 0.0
      %966 = vmatprep.subr.mxu0 0.0
      %967 = vmatpush1.msra.mxu0 0.0
      %968 = vmatprep.subr.mxu0 0.0
      %969 = vmatpush1.msra.mxu0 0.0
      %970 = vmatprep.subr.mxu0 0.0
      %971 = vmatpush1.msra.mxu0 %v428
      %972 = vmatprep.subr.mxu0 0.0
      %973 = vmatpush1.msra.mxu0 %v427
      %974 = vmatprep.subr.mxu0 0.0
      %975 = vmatpush1.msra.mxu0 %v426
      %976 = vmatprep.subr.mxu0 0.0
      %977 = vmatpush1.msra.mxu0 %v425
      %978 = vmatprep.subr.mxu0 0.0
      %979 = vmatpush2.msra.mxu0 0.0
      %980 = vmatprep.subr.mxu0 0.0
      %981 = vmatpush2.msra.mxu0 0.0
      %982 = vmatprep.subr.mxu0 0.0
      %983 = vmatpush2.msra.mxu0 0.0
      %984 = vmatprep.subr.mxu0 0.0
      %985 = vmatpush2.msra.mxu0 0.0
      %986 = vmatprep.subr.mxu0 0.0
      %987 = vmatpush2.msra.mxu0 0.0
      %988 = vmatprep.subr.mxu0 0.0
      %989 = vmatpush2.msra.mxu0 0.0
      %990 = vmatprep.subr.mxu0 0.0
      %991 = vmatpush2.msra.mxu0 0.0
      %992 = vmatprep.subr.mxu0 0.0
      %993 = vmatpush2.msra.mxu0 0.0
      %994 = vmatprep.subr.mxu0 0.0
      %995 = vmatpush2.msra.mxu0 0.0
      %996 = vmatprep.subr.mxu0 0.0
      %997 = vmatpush2.msra.mxu0 0.0
      %998 = vmatprep.subr.mxu0 0.0
      %999 = vmatpush2.msra.mxu0 0.0
      %1000 = vmatprep.subr.mxu0 0.0
      %1001 = vmatpush2.msra.mxu0 0.0
      %1002 = vmatprep.subr.mxu0 0.0
      %1003 = vmatpush2.msra.mxu0 0.0
      %1004 = vmatprep.subr.mxu0 0.0
      %1005 = vmatpush2.msra.mxu0 0.0
      %1006 = vmatprep.subr.mxu0 0.0
      %1007 = vmatpush2.msra.mxu0 0.0
      %1008 = vmatprep.subr.mxu0 0.0
      %1009 = vmatpush2.msra.mxu0 0.0
      %1010 = vmatprep.mubr.f32.mxu0 0.0
      %1011 = vmatmul.mubr.f32.gmra.mxu0 %v944
      %v1012 = vpop.f32.mrf.mxu0
      %v1013 = vadd.f32 0.0, %v1012
      %v1014 = vpop.f32.mrf.mxu0
      %1015 = vdwg.mxu0
      %v1016 = vadd.f32 %v940, %v1013
      %v1017 = vxor.u32 %v1016, 2147483648
      %v1018 = vmul.f32 %v1017, 1.442695
      %v1019 = vpow.pop %v1018
      %v1020 = vadd.f32 %v1019, 1.0
      %v1021 = vrcp.pop %v1020
      %v1022 = vmul.f32 1.0, %v1021
      %v1023 = vtanh.pop %v1016
      %v1024 = vmul.f32 %v1022, %v929
      %1026 = vrot.lane.b32.xlu0 %v1023, 64
      %v1027 = vpop.permute.xlu0 %1026
      %v1029 = vmul.f32 %v1022, %v1027
      %1031 = vrot.lane.b32.xlu0 %v1029, 32
      %v1032 = vpop.permute.xlu0 %1031
      %v1034 = vadd.f32 %v1024, %v1032
      %v1035 = vtanh.pop %v1034
      %1037 = vrot.lane.b32.xlu0 %v1035, 64
      %v1038 = vpop.permute.xlu0 %1037
      %v1040 = vmul.f32 %v1022, %v1038
      %v1041 = vstv %s937
      %vm1042 = vcmp.lt.s32.totalorder %v1041, %v422
      %v1043 = vsel %vm1042, 1, 0
      %1044 = vset.pattern.permute.xlu0 0
      %1045 = vperm.xlu0 %1044, %v1043
      %v1046 = vpop.permute.xlu0 %1045
      %vm1047 = vcmp.eq.s32.totalorder %v1046, 1
      %v1048 = vsel %vm1047, %v1034, %v929
      %v1049 = vsel %vm1047, %v1040, %v930
      %1051 = vrot.lane.b32.xlu0 %v1040, 32
      %v1052 = vpop.permute.xlu0 %1051
      %s1054 = scalar_lea.vmem %s413, %s938
      %1055 = vst.msk [vmem:[%s1054] sm:$0xf] %vm697, %v1052
      %s1056 = scalar_select %p570, 3, 4
      %s1057 = smul.u32 %s1056, 4
      %s1058 = scalar_lea.vmem [#allocation2], %s1057
      %v1059 = vld [vmem:[%s1058] sm:$0xf]
      %1061 = vrot.lane.b32.xlu0 %v1049, 32
      %v1062 = vpop.permute.xlu0 %1061
      %v1063 = vsel %vm577, %v1062, 0
      %1065 = vmatprep.subr.mxu0 0.0
      %1066 = vmatpush1.msra.mxu0 0.0
      %1067 = vmatprep.subr.mxu0 0.0
      %1068 = vmatpush1.msra.mxu0 0.0
      %1069 = vmatprep.subr.mxu0 0.0
      %1070 = vmatpush1.msra.mxu0 0.0
      %1071 = vmatprep.subr.mxu0 0.0
      %1072 = vmatpush1.msra.mxu0 0.0
      %1073 = vmatprep.subr.mxu0 0.0
      %1074 = vmatpush1.msra.mxu0 0.0
      %1075 = vmatprep.subr.mxu0 0.0
      %1076 = vmatpush1.msra.mxu0 0.0
      %1077 = vmatprep.subr.mxu0 0.0
      %1078 = vmatpush1.msra.mxu0 0.0
      %1079 = vmatprep.subr.mxu0 0.0
      %1080 = vmatpush1.msra.mxu0 0.0
      %1081 = vmatprep.subr.mxu0 0.0
      %1082 = vmatpush1.msra.mxu0 0.0
      %1083 = vmatprep.subr.mxu0 0.0
      %1084 = vmatpush1.msra.mxu0 0.0
      %1085 = vmatprep.subr.mxu0 0.0
      %1086 = vmatpush1.msra.mxu0 0.0
      %1087 = vmatprep.subr.mxu0 0.0
      %1088 = vmatpush1.msra.mxu0 0.0
      %1089 = vmatprep.subr.mxu0 0.0
      %1090 = vmatpush1.msra.mxu0 %v428
      %1091 = vmatprep.subr.mxu0 0.0
      %1092 = vmatpush1.msra.mxu0 %v427
      %1093 = vmatprep.subr.mxu0 0.0
      %1094 = vmatpush1.msra.mxu0 %v426
      %1095 = vmatprep.subr.mxu0 0.0
      %1096 = vmatpush1.msra.mxu0 %v425
      %1097 = vmatprep.subr.mxu0 0.0
      %1098 = vmatpush2.msra.mxu0 0.0
      %1099 = vmatprep.subr.mxu0 0.0
      %1100 = vmatpush2.msra.mxu0 0.0
      %1101 = vmatprep.subr.mxu0 0.0
      %1102 = vmatpush2.msra.mxu0 0.0
      %1103 = vmatprep.subr.mxu0 0.0
      %1104 = vmatpush2.msra.mxu0 0.0
      %1105 = vmatprep.subr.mxu0 0.0
      %1106 = vmatpush2.msra.mxu0 0.0
      %1107 = vmatprep.subr.mxu0 0.0
      %1108 = vmatpush2.msra.mxu0 0.0
      %1109 = vmatprep.subr.mxu0 0.0
      %1110 = vmatpush2.msra.mxu0 0.0
      %1111 = vmatprep.subr.mxu0 0.0
      %1112 = vmatpush2.msra.mxu0 0.0
      %1113 = vmatprep.subr.mxu0 0.0
      %1114 = vmatpush2.msra.mxu0 0.0
      %1115 = vmatprep.subr.mxu0 0.0
      %1116 = vmatpush2.msra.mxu0 0.0
      %1117 = vmatprep.subr.mxu0 0.0
      %1118 = vmatpush2.msra.mxu0 0.0
      %1119 = vmatprep.subr.mxu0 0.0
      %1120 = vmatpush2.msra.mxu0 0.0
      %1121 = vmatprep.subr.mxu0 0.0
      %1122 = vmatpush2.msra.mxu0 0.0
      %1123 = vmatprep.subr.mxu0 0.0
      %1124 = vmatpush2.msra.mxu0 0.0
      %1125 = vmatprep.subr.mxu0 0.0
      %1126 = vmatpush2.msra.mxu0 0.0
      %1127 = vmatprep.subr.mxu0 0.0
      %1128 = vmatpush2.msra.mxu0 0.0
      %1129 = vmatprep.mubr.f32.mxu0 0.0
      %1130 = vmatmul.mubr.f32.gmra.mxu0 %v1063
      %v1131 = vpop.f32.mrf.mxu0
      %v1132 = vadd.f32 0.0, %v1131
      %v1133 = vpop.f32.mrf.mxu0
      %1134 = vdwg.mxu0
      %v1135 = vadd.f32 %v1059, %v1132
      %v1136 = vxor.u32 %v1135, 2147483648
      %v1137 = vmul.f32 %v1136, 1.442695
      %v1138 = vpow.pop %v1137
      %v1139 = vadd.f32 %v1138, 1.0
      %v1140 = vrcp.pop %v1139
      %v1141 = vmul.f32 1.0, %v1140
      %v1142 = vtanh.pop %v1135
      %v1143 = vmul.f32 %v1141, %v1048
      %1145 = vrot.lane.b32.xlu0 %v1142, 64
      %v1146 = vpop.permute.xlu0 %1145
      %v1148 = vmul.f32 %v1141, %v1146
      %1150 = vrot.lane.b32.xlu0 %v1148, 32
      %v1151 = vpop.permute.xlu0 %1150
      %v1153 = vadd.f32 %v1143, %v1151
      %v1154 = vtanh.pop %v1153
      %1156 = vrot.lane.b32.xlu0 %v1154, 64
      %v1157 = vpop.permute.xlu0 %1156
      %v1159 = vmul.f32 %v1141, %v1157
      %v1160 = vstv %s1056
      %vm1161 = vcmp.lt.s32.totalorder %v1160, %v422
      %v1162 = vsel %vm1161, 1, 0
      %1163 = vset.pattern.permute.xlu0 0
      %1164 = vperm.xlu0 %1163, %v1162
      %v1165 = vpop.permute.xlu0 %1164
      %vm1166 = vcmp.eq.s32.totalorder %v1165, 1
      %v1167 = vsel %vm1166, %v1153, %v1048
      %v1168 = vsel %vm1166, %v1159, %v1049
      %1170 = vrot.lane.b32.xlu0 %v1159, 32
      %v1171 = vpop.permute.xlu0 %1170
      %s1173 = scalar_lea.vmem %s413, %s1057
      %1174 = vst.msk [vmem:[%s1173] sm:$0xf] %vm697, %v1171
      %s1175 = scalar_select %p570, 2, 5
      %s1176 = smul.u32 %s1175, 4
      %s1177 = scalar_lea.vmem [#allocation2], %s1176
      %v1178 = vld [vmem:[%s1177] sm:$0xf]
      %1180 = vrot.lane.b32.xlu0 %v1168, 32
      %v1181 = vpop.permute.xlu0 %1180
      %v1182 = vsel %vm577, %v1181, 0
      %1184 = vmatprep.subr.mxu0 0.0
      %1185 = vmatpush1.msra.mxu0 0.0
      %1186 = vmatprep.subr.mxu0 0.0
      %1187 = vmatpush1.msra.mxu0 0.0
      %1188 = vmatprep.subr.mxu0 0.0
      %1189 = vmatpush1.msra.mxu0 0.0
      %1190 = vmatprep.subr.mxu0 0.0
      %1191 = vmatpush1.msra.mxu0 0.0
      %1192 = vmatprep.subr.mxu0 0.0
      %1193 = vmatpush1.msra.mxu0 0.0
      %1194 = vmatprep.subr.mxu0 0.0
      %1195 = vmatpush1.msra.mxu0 0.0
      %1196 = vmatprep.subr.mxu0 0.0
      %1197 = vmatpush1.msra.mxu0 0.0
      %1198 = vmatprep.subr.mxu0 0.0
      %1199 = vmatpush1.msra.mxu0 0.0
      %1200 = vmatprep.subr.mxu0 0.0
      %1201 = vmatpush1.msra.mxu0 0.0
      %1202 = vmatprep.subr.mxu0 0.0
      %1203 = vmatpush1.msra.mxu0 0.0
      %1204 = vmatprep.subr.mxu0 0.0
      %1205 = vmatpush1.msra.mxu0 0.0
      %1206 = vmatprep.subr.mxu0 0.0
      %1207 = vmatpush1.msra.mxu0 0.0
      %1208 = vmatprep.subr.mxu0 0.0
      %1209 = vmatpush1.msra.mxu0 %v428
      %1210 = vmatprep.subr.mxu0 0.0
      %1211 = vmatpush1.msra.mxu0 %v427
      %1212 = vmatprep.subr.mxu0 0.0
      %1213 = vmatpush1.msra.mxu0 %v426
      %1214 = vmatprep.subr.mxu0 0.0
      %1215 = vmatpush1.msra.mxu0 %v425
      %1216 = vmatprep.subr.mxu0 0.0
      %1217 = vmatpush2.msra.mxu0 0.0
      %1218 = vmatprep.subr.mxu0 0.0
      %1219 = vmatpush2.msra.mxu0 0.0
      %1220 = vmatprep.subr.mxu0 0.0
      %1221 = vmatpush2.msra.mxu0 0.0
      %1222 = vmatprep.subr.mxu0 0.0
      %1223 = vmatpush2.msra.mxu0 0.0
      %1224 = vmatprep.subr.mxu0 0.0
      %1225 = vmatpush2.msra.mxu0 0.0
      %1226 = vmatprep.subr.mxu0 0.0
      %1227 = vmatpush2.msra.mxu0 0.0
      %1228 = vmatprep.subr.mxu0 0.0
      %1229 = vmatpush2.msra.mxu0 0.0
      %1230 = vmatprep.subr.mxu0 0.0
      %1231 = vmatpush2.msra.mxu0 0.0
      %1232 = vmatprep.subr.mxu0 0.0
      %1233 = vmatpush2.msra.mxu0 0.0
      %1234 = vmatprep.subr.mxu0 0.0
      %1235 = vmatpush2.msra.mxu0 0.0
      %1236 = vmatprep.subr.mxu0 0.0
      %1237 = vmatpush2.msra.mxu0 0.0
      %1238 = vmatprep.subr.mxu0 0.0
      %1239 = vmatpush2.msra.mxu0 0.0
      %1240 = vmatprep.subr.mxu0 0.0
      %1241 = vmatpush2.msra.mxu0 0.0
      %1242 = vmatprep.subr.mxu0 0.0
      %1243 = vmatpush2.msra.mxu0 0.0
      %1244 = vmatprep.subr.mxu0 0.0
      %1245 = vmatpush2.msra.mxu0 0.0
      %1246 = vmatprep.subr.mxu0 0.0
      %1247 = vmatpush2.msra.mxu0 0.0
      %1248 = vmatprep.mubr.f32.mxu0 0.0
      %1249 = vmatmul.mubr.f32.gmra.mxu0 %v1182
      %v1250 = vpop.f32.mrf.mxu0
      %v1251 = vadd.f32 0.0, %v1250
      %v1252 = vpop.f32.mrf.mxu0
      %1253 = vdwg.mxu0
      %v1254 = vadd.f32 %v1178, %v1251
      %v1255 = vxor.u32 %v1254, 2147483648
      %v1256 = vmul.f32 %v1255, 1.442695
      %v1257 = vpow.pop %v1256
      %v1258 = vadd.f32 %v1257, 1.0
      %v1259 = vrcp.pop %v1258
      %v1260 = vmul.f32 1.0, %v1259
      %v1261 = vtanh.pop %v1254
      %v1262 = vmul.f32 %v1260, %v1167
      %1264 = vrot.lane.b32.xlu0 %v1261, 64
      %v1265 = vpop.permute.xlu0 %1264
      %v1267 = vmul.f32 %v1260, %v1265
      %1269 = vrot.lane.b32.xlu0 %v1267, 32
      %v1270 = vpop.permute.xlu0 %1269
      %v1272 = vadd.f32 %v1262, %v1270
      %v1273 = vtanh.pop %v1272
      %1275 = vrot.lane.b32.xlu0 %v1273, 64
      %v1276 = vpop.permute.xlu0 %1275
      %v1278 = vmul.f32 %v1260, %v1276
      %v1279 = vstv %s1175
      %vm1280 = vcmp.lt.s32.totalorder %v1279, %v422
      %v1281 = vsel %vm1280, 1, 0
      %1282 = vset.pattern.permute.xlu0 0
      %1283 = vperm.xlu0 %1282, %v1281
      %v1284 = vpop.permute.xlu0 %1283
      %vm1285 = vcmp.eq.s32.totalorder %v1284, 1
      %v1286 = vsel %vm1285, %v1272, %v1167
      %v1287 = vsel %vm1285, %v1278, %v1168
      %1289 = vrot.lane.b32.xlu0 %v1278, 32
      %v1290 = vpop.permute.xlu0 %1289
      %s1292 = scalar_lea.vmem %s413, %s1176
      %1293 = vst.msk [vmem:[%s1292] sm:$0xf] %vm697, %v1290
      %s1294 = scalar_select %p570, 1, 6
      %s1295 = smul.u32 %s1294, 4
      %s1296 = scalar_lea.vmem [#allocation2], %s1295
      %v1297 = vld [vmem:[%s1296] sm:$0xf]
      %1299 = vrot.lane.b32.xlu0 %v1287, 32
      %v1300 = vpop.permute.xlu0 %1299
      %v1301 = vsel %vm577, %v1300, 0
      %1303 = vmatprep.subr.mxu0 0.0
      %1304 = vmatpush1.msra.mxu0 0.0
      %1305 = vmatprep.subr.mxu0 0.0
      %1306 = vmatpush1.msra.mxu0 0.0
      %1307 = vmatprep.subr.mxu0 0.0
      %1308 = vmatpush1.msra.mxu0 0.0
      %1309 = vmatprep.subr.mxu0 0.0
      %1310 = vmatpush1.msra.mxu0 0.0
      %1311 = vmatprep.subr.mxu0 0.0
      %1312 = vmatpush1.msra.mxu0 0.0
      %1313 = vmatprep.subr.mxu0 0.0
      %1314 = vmatpush1.msra.mxu0 0.0
      %1315 = vmatprep.subr.mxu0 0.0
      %1316 = vmatpush1.msra.mxu0 0.0
      %1317 = vmatprep.subr.mxu0 0.0
      %1318 = vmatpush1.msra.mxu0 0.0
      %1319 = vmatprep.subr.mxu0 0.0
      %1320 = vmatpush1.msra.mxu0 0.0
      %1321 = vmatprep.subr.mxu0 0.0
      %1322 = vmatpush1.msra.mxu0 0.0
      %1323 = vmatprep.subr.mxu0 0.0
      %1324 = vmatpush1.msra.mxu0 0.0
      %1325 = vmatprep.subr.mxu0 0.0
      %1326 = vmatpush1.msra.mxu0 0.0
      %1327 = vmatprep.subr.mxu0 0.0
      %1328 = vmatpush1.msra.mxu0 %v428
      %1329 = vmatprep.subr.mxu0 0.0
      %1330 = vmatpush1.msra.mxu0 %v427
      %1331 = vmatprep.subr.mxu0 0.0
      %1332 = vmatpush1.msra.mxu0 %v426
      %1333 = vmatprep.subr.mxu0 0.0
      %1334 = vmatpush1.msra.mxu0 %v425
      %1335 = vmatprep.subr.mxu0 0.0
      %1336 = vmatpush2.msra.mxu0 0.0
      %1337 = vmatprep.subr.mxu0 0.0
      %1338 = vmatpush2.msra.mxu0 0.0
      %1339 = vmatprep.subr.mxu0 0.0
      %1340 = vmatpush2.msra.mxu0 0.0
      %1341 = vmatprep.subr.mxu0 0.0
      %1342 = vmatpush2.msra.mxu0 0.0
      %1343 = vmatprep.subr.mxu0 0.0
      %1344 = vmatpush2.msra.mxu0 0.0
      %1345 = vmatprep.subr.mxu0 0.0
      %1346 = vmatpush2.msra.mxu0 0.0
      %1347 = vmatprep.subr.mxu0 0.0
      %1348 = vmatpush2.msra.mxu0 0.0
      %1349 = vmatprep.subr.mxu0 0.0
      %1350 = vmatpush2.msra.mxu0 0.0
      %1351 = vmatprep.subr.mxu0 0.0
      %1352 = vmatpush2.msra.mxu0 0.0
      %1353 = vmatprep.subr.mxu0 0.0
      %1354 = vmatpush2.msra.mxu0 0.0
      %1355 = vmatprep.subr.mxu0 0.0
      %1356 = vmatpush2.msra.mxu0 0.0
      %1357 = vmatprep.subr.mxu0 0.0
      %1358 = vmatpush2.msra.mxu0 0.0
      %1359 = vmatprep.subr.mxu0 0.0
      %1360 = vmatpush2.msra.mxu0 0.0
      %1361 = vmatprep.subr.mxu0 0.0
      %1362 = vmatpush2.msra.mxu0 0.0
      %1363 = vmatprep.subr.mxu0 0.0
      %1364 = vmatpush2.msra.mxu0 0.0
      %1365 = vmatprep.subr.mxu0 0.0
      %1366 = vmatpush2.msra.mxu0 0.0
      %1367 = vmatprep.mubr.f32.mxu0 0.0
      %1368 = vmatmul.mubr.f32.gmra.mxu0 %v1301
      %v1369 = vpop.f32.mrf.mxu0
      %v1370 = vadd.f32 0.0, %v1369
      %v1371 = vpop.f32.mrf.mxu0
      %1372 = vdwg.mxu0
      %v1373 = vadd.f32 %v1297, %v1370
      %v1374 = vxor.u32 %v1373, 2147483648
      %v1375 = vmul.f32 %v1374, 1.442695
      %v1376 = vpow.pop %v1375
      %v1377 = vadd.f32 %v1376, 1.0
      %v1378 = vrcp.pop %v1377
      %v1379 = vmul.f32 1.0, %v1378
      %v1380 = vtanh.pop %v1373
      %v1381 = vmul.f32 %v1379, %v1286
      %1383 = vrot.lane.b32.xlu0 %v1380, 64
      %v1384 = vpop.permute.xlu0 %1383
      %v1386 = vmul.f32 %v1379, %v1384
      %1388 = vrot.lane.b32.xlu0 %v1386, 32
      %v1389 = vpop.permute.xlu0 %1388
      %v1391 = vadd.f32 %v1381, %v1389
      %v1392 = vtanh.pop %v1391
      %1394 = vrot.lane.b32.xlu0 %v1392, 64
      %v1395 = vpop.permute.xlu0 %1394
      %v1397 = vmul.f32 %v1379, %v1395
      %v1398 = vstv %s1294
      %vm1399 = vcmp.lt.s32.totalorder %v1398, %v422
      %v1400 = vsel %vm1399, 1, 0
      %1401 = vset.pattern.permute.xlu0 0
      %1402 = vperm.xlu0 %1401, %v1400
      %v1403 = vpop.permute.xlu0 %1402
      %vm1404 = vcmp.eq.s32.totalorder %v1403, 1
      %v1405 = vsel %vm1404, %v1391, %v1286
      %v1406 = vsel %vm1404, %v1397, %v1287
      %1408 = vrot.lane.b32.xlu0 %v1397, 32
      %v1409 = vpop.permute.xlu0 %1408
      %s1411 = scalar_lea.vmem %s413, %s1295
      %1412 = vst.msk [vmem:[%s1411] sm:$0xf] %vm697, %v1409
      %s1413 = scalar_select %p570, 0, 7
      %s1414 = smul.u32 %s1413, 4
      %s1415 = scalar_lea.vmem [#allocation2], %s1414
      %v1416 = vld [vmem:[%s1415] sm:$0xf]
      %1418 = vrot.lane.b32.xlu0 %v1406, 32
      %v1419 = vpop.permute.xlu0 %1418
      %v1420 = vsel %vm577, %v1419, 0
      %1422 = vmatprep.subr.mxu0 0.0
      %1423 = vmatpush1.msra.mxu0 0.0
      %1424 = vmatprep.subr.mxu0 0.0
      %1425 = vmatpush1.msra.mxu0 0.0
      %1426 = vmatprep.subr.mxu0 0.0
      %1427 = vmatpush1.msra.mxu0 0.0
      %1428 = vmatprep.subr.mxu0 0.0
      %1429 = vmatpush1.msra.mxu0 0.0
      %1430 = vmatprep.subr.mxu0 0.0
      %1431 = vmatpush1.msra.mxu0 0.0
      %1432 = vmatprep.subr.mxu0 0.0
      %1433 = vmatpush1.msra.mxu0 0.0
      %1434 = vmatprep.subr.mxu0 0.0
      %1435 = vmatpush1.msra.mxu0 0.0
      %1436 = vmatprep.subr.mxu0 0.0
      %1437 = vmatpush1.msra.mxu0 0.0
      %1438 = vmatprep.subr.mxu0 0.0
      %1439 = vmatpush1.msra.mxu0 0.0
      %1440 = vmatprep.subr.mxu0 0.0
      %1441 = vmatpush1.msra.mxu0 0.0
      %1442 = vmatprep.subr.mxu0 0.0
      %1443 = vmatpush1.msra.mxu0 0.0
      %1444 = vmatprep.subr.mxu0 0.0
      %1445 = vmatpush1.msra.mxu0 0.0
      %1446 = vmatprep.subr.mxu0 0.0
      %1447 = vmatpush1.msra.mxu0 %v428
      %1448 = vmatprep.subr.mxu0 0.0
      %1449 = vmatpush1.msra.mxu0 %v427
      %1450 = vmatprep.subr.mxu0 0.0
      %1451 = vmatpush1.msra.mxu0 %v426
      %1452 = vmatprep.subr.mxu0 0.0
      %1453 = vmatpush1.msra.mxu0 %v425
      %1454 = vmatprep.subr.mxu0 0.0
      %1455 = vmatpush2.msra.mxu0 0.0
      %1456 = vmatprep.subr.mxu0 0.0
      %1457 = vmatpush2.msra.mxu0 0.0
      %1458 = vmatprep.subr.mxu0 0.0
      %1459 = vmatpush2.msra.mxu0 0.0
      %1460 = vmatprep.subr.mxu0 0.0
      %1461 = vmatpush2.msra.mxu0 0.0
      %1462 = vmatprep.subr.mxu0 0.0
      %1463 = vmatpush2.msra.mxu0 0.0
      %1464 = vmatprep.subr.mxu0 0.0
      %1465 = vmatpush2.msra.mxu0 0.0
      %1466 = vmatprep.subr.mxu0 0.0
      %1467 = vmatpush2.msra.mxu0 0.0
      %1468 = vmatprep.subr.mxu0 0.0
      %1469 = vmatpush2.msra.mxu0 0.0
      %1470 = vmatprep.subr.mxu0 0.0
      %1471 = vmatpush2.msra.mxu0 0.0
      %1472 = vmatprep.subr.mxu0 0.0
      %1473 = vmatpush2.msra.mxu0 0.0
      %1474 = vmatprep.subr.mxu0 0.0
      %1475 = vmatpush2.msra.mxu0 0.0
      %1476 = vmatprep.subr.mxu0 0.0
      %1477 = vmatpush2.msra.mxu0 0.0
      %1478 = vmatprep.subr.mxu0 0.0
      %1479 = vmatpush2.msra.mxu0 0.0
      %1480 = vmatprep.subr.mxu0 0.0
      %1481 = vmatpush2.msra.mxu0 0.0
      %1482 = vmatprep.subr.mxu0 0.0
      %1483 = vmatpush2.msra.mxu0 0.0
      %1484 = vmatprep.subr.mxu0 0.0
      %1485 = vmatpush2.msra.mxu0 0.0
      %1486 = vmatprep.mubr.f32.mxu0 0.0
      %1487 = vmatmul.mubr.f32.gmra.mxu0 %v1420
      %v1488 = vpop.f32.mrf.mxu0
      %v1489 = vadd.f32 0.0, %v1488
      %v1490 = vpop.f32.mrf.mxu0
      %1491 = vdwg.mxu0
      %v1492 = vadd.f32 %v1416, %v1489
      %v1493 = vxor.u32 %v1492, 2147483648
      %v1494 = vmul.f32 %v1493, 1.442695
      %v1495 = vpow.pop %v1494
      %v1496 = vadd.f32 %v1495, 1.0
      %v1497 = vrcp.pop %v1496
      %v1498 = vmul.f32 1.0, %v1497
      %v1499 = vtanh.pop %v1492
      %v1500 = vmul.f32 %v1498, %v1405
      %1502 = vrot.lane.b32.xlu0 %v1499, 64
      %v1503 = vpop.permute.xlu0 %1502
      %v1505 = vmul.f32 %v1498, %v1503
      %1507 = vrot.lane.b32.xlu0 %v1505, 32
      %v1508 = vpop.permute.xlu0 %1507
      %v1510 = vadd.f32 %v1500, %v1508
      %v1511 = vtanh.pop %v1510
      %1513 = vrot.lane.b32.xlu0 %v1511, 64
      %v1514 = vpop.permute.xlu0 %1513
      %v1516 = vmul.f32 %v1498, %v1514
      %v1517 = vstv %s1413
      %vm1518 = vcmp.lt.s32.totalorder %v1517, %v422
      %v1519 = vsel %vm1518, 1, 0
      %1520 = vset.pattern.permute.xlu0 0
      %1521 = vperm.xlu0 %1520, %v1519
      %v1522 = vpop.permute.xlu0 %1521
      %vm1523 = vcmp.eq.s32.totalorder %v1522, 1
      %v1524 = vsel %vm1523, %v1510, %v1405
      %v1525 = vsel %vm1523, %v1516, %v1406
      %1527 = vrot.lane.b32.xlu0 %v1516, 32
      %v1528 = vpop.permute.xlu0 %1527
      %s1530 = scalar_lea.vmem %s413, %s1414
      %1531 = vst.msk [vmem:[%s1530] sm:$0xf] %vm697, %v1528
      %vm1532 = vcmp.gt.s32.totalorder %v422, 0
      %vm1533 = vcmp.gt.s32.totalorder %v422, 1
      %vm1534 = vcmp.gt.s32.totalorder %v422, 2
      %vm1535 = vcmp.gt.s32.totalorder %v422, 3
      %vm1536 = vcmp.gt.s32.totalorder %v422, 4
      %vm1537 = vcmp.gt.s32.totalorder %v422, 5
      %vm1538 = vcmp.gt.s32.totalorder %v422, 6
      %vm1539 = vcmp.gt.s32.totalorder %v422, 7
      %v1540 = vld [vmem:[%s413] sm:$0xf]
      %v1541 = vld [vmem:[%s413 + $0x4] sm:$0xf]
      %v1542 = vld [vmem:[%s413 + $0x8] sm:$0xf]
      %v1543 = vld [vmem:[%s413 + $0xc] sm:$0xf]
      %v1544 = vld [vmem:[%s413 + $0x10] sm:$0xf]
      %v1545 = vld [vmem:[%s413 + $0x14] sm:$0xf]
      %v1546 = vld [vmem:[%s413 + $0x18] sm:$0xf]
      %v1547 = vld [vmem:[%s413 + $0x1c] sm:$0xf]
      %v1548 = vsel %vm1532, 1, 0
      %v1549 = vsel %vm1533, 1, 0
      %v1550 = vsel %vm1534, 1, 0
      %v1551 = vsel %vm1535, 1, 0
      %v1552 = vsel %vm1536, 1, 0
      %v1553 = vsel %vm1537, 1, 0
      %v1554 = vsel %vm1538, 1, 0
      %v1555 = vsel %vm1539, 1, 0
      %1556 = vset.pattern.permute.xlu0 0
      %1557 = vperm.xlu0 %1556, %v1548
      %v1558 = vpop.permute.xlu0 %1557
      %1559 = vset.pattern.permute.xlu0 0
      %1560 = vperm.xlu0 %1559, %v1549
      %v1561 = vpop.permute.xlu0 %1560
      %1562 = vset.pattern.permute.xlu0 0
      %1563 = vperm.xlu0 %1562, %v1550
      %v1564 = vpop.permute.xlu0 %1563
      %1565 = vset.pattern.permute.xlu0 0
      %1566 = vperm.xlu0 %1565, %v1551
      %v1567 = vpop.permute.xlu0 %1566
      %1568 = vset.pattern.permute.xlu0 0
      %1569 = vperm.xlu0 %1568, %v1552
      %v1570 = vpop.permute.xlu0 %1569
      %1571 = vset.pattern.permute.xlu0 0
      %1572 = vperm.xlu0 %1571, %v1553
      %v1573 = vpop.permute.xlu0 %1572
      %1574 = vset.pattern.permute.xlu0 0
      %1575 = vperm.xlu0 %1574, %v1554
      %v1576 = vpop.permute.xlu0 %1575
      %1577 = vset.pattern.permute.xlu0 0
      %1578 = vperm.xlu0 %1577, %v1555
      %v1579 = vpop.permute.xlu0 %1578
      %vm1580 = vcmp.eq.s32.totalorder %v1558, 1
      %vm1581 = vcmp.eq.s32.totalorder %v1561, 1
      %vm1582 = vcmp.eq.s32.totalorder %v1564, 1
      %vm1583 = vcmp.eq.s32.totalorder %v1567, 1
      %vm1584 = vcmp.eq.s32.totalorder %v1570, 1
      %vm1585 = vcmp.eq.s32.totalorder %v1573, 1
      %vm1586 = vcmp.eq.s32.totalorder %v1576, 1
      %vm1587 = vcmp.eq.s32.totalorder %v1579, 1
      %v1588 = vsel %vm1580, %v1540, 0.0
      %v1589 = vsel %vm1581, %v1541, 0.0
      %v1590 = vsel %vm1582, %v1542, 0.0
      %v1591 = vsel %vm1583, %v1543, 0.0
      %v1592 = vsel %vm1584, %v1544, 0.0
      %v1593 = vsel %vm1585, %v1545, 0.0
      %v1594 = vsel %vm1586, %v1546, 0.0
      %v1595 = vsel %vm1587, %v1547, 0.0
      %1596 = vst.msk [vmem:[%s413] sm:$0xf] %vm697, %v1588
      %1597 = vst.msk [vmem:[%s413 + $0x4] sm:$0xf] %vm697, %v1589
      %1598 = vst.msk [vmem:[%s413 + $0x8] sm:$0xf] %vm697, %v1590
      %1599 = vst.msk [vmem:[%s413 + $0xc] sm:$0xf] %vm697, %v1591
      %1600 = vst.msk [vmem:[%s413 + $0x10] sm:$0xf] %vm697, %v1592
      %1601 = vst.msk [vmem:[%s413 + $0x14] sm:$0xf] %vm697, %v1593
      %1602 = vst.msk [vmem:[%s413 + $0x18] sm:$0xf] %vm697, %v1594
      %1603 = vst.msk [vmem:[%s413 + $0x1c] sm:$0xf] %vm697, %v1595
      %1605 = vrot.lane.b32.xlu0 %v1525, 32
      %v1606 = vpop.permute.xlu0 %1605
      %1608 = vst.msk [vmem:[%s417] sm:$0xf] %vm697, %v1606
      %1610 = vrot.lane.b32.xlu0 %v1524, 96
      %v1611 = vpop.permute.xlu0 %1610
      %1613 = vst.msk [vmem:[%s421] sm:$0xf] %vm697, %v1611
      %p1614 = scmp.lt.s32.totalorder %s21, 1
      %s1615 = scalar_select %p1614, %s21, 1
      %s1616 = smul.addr %s1615, 8
      %s1617 = smul.addr %s1616, 4
      %s1618 = scalar_lea.vmem %s7, %s1617
      %p1619 = scmp.lt.s32.totalorder %s21, 1
      %s1620 = scalar_select %p1619, %s21, 1
      %s1621 = smul.addr %s1620, 4
      %s1622 = scalar_lea.vmem %s8, %s1621
      %p1623 = scmp.lt.s32.totalorder %s21, 1
      %s1624 = scalar_select %p1623, %s21, 1
      %s1625 = smul.addr %s1624, 4
      %s1626 = scalar_lea.vmem %s9, %s1625
      // Predicated region
      $region49: #{encoder_rnn_forward.2} parent=47 // pred_check
        %p1627 = pneg %p211
      $region50: #{encoder_rnn_forward.2} parent=47 // pred_check_branch
        %1629 = sbr.rel (%p1627) target = $region52
      $region51: #{encoder_rnn_forward.2} parent=47 // pred_region
        _
      $region52: #{encoder_rnn_forward.2} parent=47 // pred_fallthru
        _
      // Predicated region
      $region53: #{encoder_rnn_forward.2} parent=47 // pred_check
        %p1630 = pneg %p237
      $region54: #{encoder_rnn_forward.2} parent=47 // pred_check_branch
        %1632 = sbr.rel (%p1630) target = $region56
      $region55: #{encoder_rnn_forward.2} parent=47 // pred_region
        _
      $region56: #{encoder_rnn_forward.2} parent=47 // pred_fallthru
        _
      // Predicated region
      $region57: #{encoder_rnn_forward.2} parent=47 // pred_check
        %p1633 = pneg %p263
      $region58: #{encoder_rnn_forward.2} parent=47 // pred_check_branch
        %1635 = sbr.rel (%p1633) target = $region60
      $region59: #{encoder_rnn_forward.2} parent=47 // pred_region
        _
      $region60: #{encoder_rnn_forward.2} parent=47 // pred_fallthru
        _
    $region48: #{encoder_rnn_forward.2} parent=5 // pred_fallthru
      _
    %p1636 = scmp.le.s32.totalorder 2, %s16
    // Predicated region
    $region61: #{encoder_rnn_forward.2} parent=5 // pred_check
      %p1637 = pneg %p1636
    $region62: #{encoder_rnn_forward.2} parent=5 // pred_check_branch
      %1639 = sbr.rel (%p1637) target = $region64
    $region63: #{encoder_rnn_forward.2} parent=5 // pred_region
      %s1640 = ssub.s32 %s16, 2
      // Predicated region
      $region65: #{encoder_rnn_forward.2} parent=63 // pred_check
        %p1641 = pneg %p217
      $region66: #{encoder_rnn_forward.2} parent=63 // pred_check_branch
        %1643 = sbr.rel (%p1641) target = $region68
      $region67: #{encoder_rnn_forward.2} parent=63 // pred_region
        %p1644 = scmp.lt.s32.totalorder %s22, 1
        %s1645 = scalar_select %p1644, %s22, 1
        %s1646 = smul.addr %s1645, 8
        %s1647 = smul.addr %s1646, 4
        %s1648 = scalar_lea.vmem %s7, %s1647
      $region68: #{encoder_rnn_forward.2} parent=63 // pred_fallthru
        _
      // Predicated region
      $region69: #{encoder_rnn_forward.2} parent=63 // pred_check
        %p1649 = pneg %p243
      $region70: #{encoder_rnn_forward.2} parent=63 // pred_check_branch
        %1651 = sbr.rel (%p1649) target = $region72
      $region71: #{encoder_rnn_forward.2} parent=63 // pred_region
        %p1652 = scmp.lt.s32.totalorder %s22, 1
        %s1653 = scalar_select %p1652, %s22, 1
        %s1654 = smul.addr %s1653, 4
        %s1655 = scalar_lea.vmem %s8, %s1654
      $region72: #{encoder_rnn_forward.2} parent=63 // pred_fallthru
        _
      // Predicated region
      $region73: #{encoder_rnn_forward.2} parent=63 // pred_check
        %p1656 = pneg %p269
      $region74: #{encoder_rnn_forward.2} parent=63 // pred_check_branch
        %1658 = sbr.rel (%p1656) target = $region76
      $region75: #{encoder_rnn_forward.2} parent=63 // pred_region
        %p1659 = scmp.lt.s32.totalorder %s22, 1
        %s1660 = scalar_select %p1659, %s22, 1
        %s1661 = smul.addr %s1660, 4
        %s1662 = scalar_lea.vmem %s9, %s1661
      $region76: #{encoder_rnn_forward.2} parent=63 // pred_fallthru
        _
    $region64: #{encoder_rnn_forward.2} parent=5 // pred_fallthru
      _
  $region6: #{encoder_rnn_forward.2} parent=0 // loop_footer
    %s20 = sadd.s32 1, %s16
  $region7: #{encoder_rnn_forward.2} parent=0 // loop_footer_branch
    %15 = sbr.rel target = $region3
  $region8: #{encoder_rnn_forward.2} parent=0 // loop_exit
    _

// kernel: encoder_rnn_forward.3
$region0: #{encoder_rnn_forward.3}
  #allocation0 [shape = 'u32[]', space=smem, size = 0x4, offset = 0x4, fixed_abs, tag = 'smem constant byte address 0x4 - core index']
  #allocation1 [shape = 'u32[144,128]{1,0:T(1,128)}', space=vmem, size = 0x12000, scoped, tag = 'internal scratch']
  #allocation2 [shape = 'f32[8,4,128]{2,1,0:T(4,128)}', space=vmem, size = 0x4000, scoped, tag = 'scratch operand']
  %s0 = inlined_call_operand.vmem [shape: f32[8,4,64], index: 0, kind: input, shape index: {}]
  %s1 = inlined_call_operand.vmem [shape: s32[4,1], index: 1, kind: input, shape index: {}]
  %s2 = inlined_call_operand.vmem [shape: f32[2,64,128], index: 2, kind: input, shape index: {}]
  %s3 = inlined_call_operand.vmem [shape: f32[2,32,128], index: 3, kind: input, shape index: {}]
  %s4 = inlined_call_operand.vmem [shape: f32[2,1,128], index: 4, kind: input, shape index: {}]
  %s5 = inlined_call_operand.vmem [shape: f32[2,4,32], index: 5, kind: input, shape index: {}]
  %s6 = inlined_call_operand.vmem [shape: f32[2,4,32], index: 6, kind: input, shape index: {}]
  %s7 = inlined_call_operand.vmem [shape: f32[2,8,4,32], index: 7, kind: output, shape index: {0}]
  %s8 = inlined_call_operand.vmem [shape: f32[2,4,32], index: 8, kind: output, shape index: {1}]
  %s9 = inlined_call_operand.vmem [shape: f32[2,4,32], index: 9, kind: output, shape index: {2}]
  %10 = xla_tuple %s7, %s8, %s9
  %s11 = sld [smem:[#allocation0]]
  $region77: #{encoder_rnn_forward.3} parent=0
    _
  %s13 = ssub.s32 1, %s11
  %s14 = scalar_select 0, %s13, %s11
  loop: start=0, step=1, limit=4
  $region2: #{encoder_rnn_forward.3} parent=0 // loop_pre_header
    _
  $region3: #{encoder_rnn_forward.3} parent=0 // loop_header
    %s16 = sphi 0, %s20
    %p17 = scmp.ge.s32.totalorder %s16, 4
    %s24 = sphi 0, %s24
    %s26 = sphi 0, %s24
    %s27 = sphi 0, %s26
    %s41 = sphi 0, %s27
    %s45 = sphi 0, %s45
    %s47 = sphi 0, %s45
    %s48 = sphi 0, %s47
    %s62 = sphi 0, %s48
    %s68 = sphi 0, %s70
    %s71 = sphi 0, %s68
    %s72 = sphi 0, %s71
    %s88 = sphi 0, %s72
    %s94 = sphi 0, %s96
    %s97 = sphi 0, %s94
    %s98 = sphi 0, %s97
    %s114 = sphi 0, %s98
    %s120 = sphi 0, %s122
    %s123 = sphi 0, %s120
    %s124 = sphi 0, %s123
    %s140 = sphi 0, %s124
    %s146 = sphi 0, %s148
    %s149 = sphi 0, %s146
    %s150 = sphi 0, %s149
    %s166 = sphi 0, %s150
    %s172 = sphi 0, %s174
    %s175 = sphi 0, %s172
    %s176 = sphi 0, %s175
    %s192 = sphi 0, %s176
    %s198 = sphi 0, %s200
    %s201 = sphi 0, %s198
    %s202 = sphi 0, %s201
    %s218 = sphi 0, %s202
    %s224 = sphi 0, %s226
    %s227 = sphi 0, %s224
    %s228 = sphi 0, %s227
    %s244 = sphi 0, %s228
    %s250 = sphi 0, %s252
    %s253 = sphi 0, %s250
    %s254 = sphi 0, %s253
    %s270 = sphi 0, %s254
  $region4: #{encoder_rnn_forward.3} parent=0 // loop_header_branch
    %19 = sbr.rel (%p17) target = $region8
  $region5: #{encoder_rnn_forward.3} parent=0 // loop_body
    %s21 = ssub.s32 %s16, 1
    %s22 = ssub.s32 %s16, 2
    %s23 = sadd.s32 %s16, 1
    %s25 = sadd.s32 %s24, 1
    %p28 = scmp.eq.s32.totalorder %s16, 1
    %p29 = scmp.ne.s32.totalorder %s24, %s26
    %p30 = scmp.eq.s32.totalorder %s16, 0
    %p31 = por %p29, %p30
    %p32 = scmp.ne.s32.totalorder %s24, %s26
    %p33 = scmp.eq.s32.totalorder %s21, 1
    %p34 = por %p32, %p33
    %p35 = scmp.ne.s32.totalorder %s26, %s27
    %p36 = scmp.eq.s32.totalorder %s21, 0
    %p37 = por %p35, %p36
    %p38 = scmp.ne.s32.totalorder %s26, %s27
    %p39 = scmp.eq.s32.totalorder %s22, 1
    %p40 = por %p38, %p39
    %p42 = scmp.ne.s32.totalorder %s27, %s41
    %p43 = scmp.eq.s32.totalorder %s22, 0
    %p44 = por %p42, %p43
    %s46 = sadd.s32 %s45, 1
    %p49 = scmp.eq.s32.totalorder %s16, 1
    %p50 = scmp.ne.s32.totalorder %s45, %s47
    %p51 = scmp.eq.s32.totalorder %s16, 0
    %p52 = por %p50, %p51
    %p53 = scmp.ne.s32.totalorder %s45, %s47
    %p54 = scmp.eq.s32.totalorder %s21, 1
    %p55 = por %p53, %p54
    %p56 = scmp.ne.s32.totalorder %s47, %s48
    %p57 = scmp.eq.s32.totalorder %s21, 0
    %p58 = por %p56, %p57
    %p59 = scmp.ne.s32.totalorder %s47, %s48
    %p60 = scmp.eq.s32.totalorder %s22, 1
    %p61 = por %p59, %p60
    %p63 = scmp.ne.s32.totalorder %s48, %s62
    %p64 = scmp.eq.s32.totalorder %s22, 0
    %p65 = por %p63, %p64
    %s66 = ssub.s32 %s16, %s23
    %p67 = scmp.eq.s32.totalorder %s66, 0
    %s69 = sadd.s32 %s68, 1
    %s70 = scalar_select %p67, %s68, %s69
    %p73 = pneg %p67
    %p74 = scmp.eq.s32.totalorder %s16, 1
    %p75 = por %p73, %p74
    %p76 = scmp.ne.s32.totalorder %s68, %s71
    %p77 = scmp.eq.s32.totalorder %s16, 0
    %p78 = por %p76, %p77
    %p79 = scmp.ne.s32.totalorder %s68, %s71
    %p80 = scmp.eq.s32.totalorder %s21, 1
    %p81 = por %p79, %p80
    %p82 = scmp.ne.s32.totalorder %s71, %s72
    %p83 = scmp.eq.s32.totalorder %s21, 0
    %p84 = por %p82, %p83
    %p85 = scmp.ne.s32.totalorder %s71, %s72
    %p86 = scmp.eq.s32.totalorder %s22, 1
    %p87 = por %p85, %p86
    %p89 = scmp.ne.s32.totalorder %s72, %s88
    %p90 = scmp.eq.s32.totalorder %s22, 0
    %p91 = por %p89, %p90
    %s92 = ssub.s32 %s16, %s23
    %p93 = scmp.eq.s32.totalorder %s92, 0
    %s95 = sadd.s32 %s94, 1
    %s96 = scalar_select %p93, %s94, %s95
    %p99 = pneg %p93
    %p100 = scmp.eq.s32.totalorder %s16, 1
    %p101 = por %p99, %p100
    %p102 = scmp.ne.s32.totalorder %s94, %s97
    %p103 = scmp.eq.s32.totalorder %s16, 0
    %p104 = por %p102, %p103
    %p105 = scmp.ne.s32.totalorder %s94, %s97
    %p106 = scmp.eq.s32.totalorder %s21, 1
    %p107 = por %p105, %p106
    %p108 = scmp.ne.s32.totalorder %s97, %s98
    %p109 = scmp.eq.s32.totalorder %s21, 0
    %p110 = por %p108, %p109
    %p111 = scmp.ne.s32.totalorder %s97, %s98
    %p112 = scmp.eq.s32.totalorder %s22, 1
    %p113 = por %p111, %p112
    %p115 = scmp.ne.s32.totalorder %s98, %s114
    %p116 = scmp.eq.s32.totalorder %s22, 0
    %p117 = por %p115, %p116
    %s118 = ssub.s32 %s16, %s23
    %p119 = scmp.eq.s32.totalorder %s118, 0
    %s121 = sadd.s32 %s120, 1
    %s122 = scalar_select %p119, %s120, %s121
    %p125 = pneg %p119
    %p126 = scmp.eq.s32.totalorder %s16, 1
    %p127 = por %p125, %p126
    %p128 = scmp.ne.s32.totalorder %s120, %s123
    %p129 = scmp.eq.s32.totalorder %s16, 0
    %p130 = por %p128, %p129
    %p131 = scmp.ne.s32.totalorder %s120, %s123
    %p132 = scmp.eq.s32.totalorder %s21, 1
    %p133 = por %p131, %p132
    %p134 = scmp.ne.s32.totalorder %s123, %s124
    %p135 = scmp.eq.s32.totalorder %s21, 0
    %p136 = por %p134, %p135
    %p137 = scmp.ne.s32.totalorder %s123, %s124
    %p138 = scmp.eq.s32.totalorder %s22, 1
    %p139 = por %p137, %p138
    %p141 = scmp.ne.s32.totalorder %s124, %s140
    %p142 = scmp.eq.s32.totalorder %s22, 0
    %p143 = por %p141, %p142
    %s144 = ssub.s32 %s16, %s23
    %p145 = scmp.eq.s32.totalorder %s144, 0
    %s147 = sadd.s32 %s146, 1
    %s148 = scalar_select %p145, %s146, %s147
    %p151 = pneg %p145
    %p152 = scmp.eq.s32.totalorder %s16, 1
    %p153 = por %p151, %p152
    %p154 = scmp.ne.s32.totalorder %s146, %s149
    %p155 = scmp.eq.s32.totalorder %s16, 0
    %p156 = por %p154, %p155
    %p157 = scmp.ne.s32.totalorder %s146, %s149
    %p158 = scmp.eq.s32.totalorder %s21, 1
    %p159 = por %p157, %p158
    %p160 = scmp.ne.s32.totalorder %s149, %s150
    %p161 = scmp.eq.s32.totalorder %s21, 0
    %p162 = por %p160, %p161
    %p163 = scmp.ne.s32.totalorder %s149, %s150
    %p164 = scmp.eq.s32.totalorder %s22, 1
    %p165 = por %p163, %p164
    %p167 = scmp.ne.s32.totalorder %s150, %s166
    %p168 = scmp.eq.s32.totalorder %s22, 0
    %p169 = por %p167, %p168
    %s170 = ssub.s32 %s16, %s23
    %p171 = scmp.eq.s32.totalorder %s170, 0
    %s173 = sadd.s32 %s172, 1
    %s174 = scalar_select %p171, %s172, %s173
    %p177 = pneg %p171
    %p178 = scmp.eq.s32.totalorder %s16, 1
    %p179 = por %p177, %p178
    %p180 = scmp.ne.s32.totalorder %s172, %s175
    %p181 = scmp.eq.s32.totalorder %s16, 0
    %p182 = por %p180, %p181
    %p183 = scmp.ne.s32.totalorder %s172, %s175
    %p184 = scmp.eq.s32.totalorder %s21, 1
    %p185 = por %p183, %p184
    %p186 = scmp.ne.s32.totalorder %s175, %s176
    %p187 = scmp.eq.s32.totalorder %s21, 0
    %p188 = por %p186, %p187
    %p189 = scmp.ne.s32.totalorder %s175, %s176
    %p190 = scmp.eq.s32.totalorder %s22, 1
    %p191 = por %p189, %p190
    %p193 = scmp.ne.s32.totalorder %s176, %s192
    %p194 = scmp.eq.s32.totalorder %s22, 0
    %p195 = por %p193, %p194
    %s196 = ssub.s32 %s16, %s23
    %p197 = scmp.eq.s32.totalorder %s196, 0
    %s199 = sadd.s32 %s198, 1
    %s200 = scalar_select %p197, %s198, %s199
    %p203 = pneg %p197
    %p204 = scmp.eq.s32.totalorder %s16, 1
    %p205 = por %p203, %p204
    %p206 = scmp.ne.s32.totalorder %s198, %s201
    %p207 = scmp.eq.s32.totalorder %s16, 0
    %p208 = por %p206, %p207
    %p209 = scmp.ne.s32.totalorder %s198, %s201
    %p210 = scmp.eq.s32.totalorder %s21, 1
    %p211 = por %p209, %p210
    %p212 = scmp.ne.s32.totalorder %s201, %s202
    %p213 = scmp.eq.s32.totalorder %s21, 0
    %p214 = por %p212, %p213
    %p215 = scmp.ne.s32.totalorder %s201, %s202
    %p216 = scmp.eq.s32.totalorder %s22, 1
    %p217 = por %p215, %p216
    %p219 = scmp.ne.s32.totalorder %s202, %s218
    %p220 = scmp.eq.s32.totalorder %s22, 0
    %p221 = por %p219, %p220
    %s222 = ssub.s32 %s16, %s23
    %p223 = scmp.eq.s32.totalorder %s222, 0
    %s225 = sadd.s32 %s224, 1
    %s226 = scalar_select %p223, %s224, %s225
    %p229 = pneg %p223
    %p230 = scmp.eq.s32.totalorder %s16, 1
    %p231 = por %p229, %p230
    %p232 = scmp.ne.s32.totalorder %s224, %s227
    %p233 = scmp.eq.s32.totalorder %s16, 0
    %p234 = por %p232, %p233
    %p235 = scmp.ne.s32.totalorder %s224, %s227
    %p236 = scmp.eq.s32.totalorder %s21, 1
    %p237 = por %p235, %p236
    %p238 = scmp.ne.s32.totalorder %s227, %s228
    %p239 = scmp.eq.s32.totalorder %s21, 0
    %p240 = por %p238, %p239
    %p241 = scmp.ne.s32.totalorder %s227, %s228
    %p242 = scmp.eq.s32.totalorder %s22, 1
    %p243 = por %p241, %p242
    %p245 = scmp.ne.s32.totalorder %s228, %s244
    %p246 = scmp.eq.s32.totalorder %s22, 0
    %p247 = por %p245, %p246
    %s248 = ssub.s32 %s16, %s23
    %p249 = scmp.eq.s32.totalorder %s248, 0
    %s251 = sadd.s32 %s250, 1
    %s252 = scalar_select %p249, %s250, %s251
    %p255 = pneg %p249
    %p256 = scmp.eq.s32.totalorder %s16, 1
    %p257 = por %p255, %p256
    %p258 = scmp.ne.s32.totalorder %s250, %s253
    %p259 = scmp.eq.s32.totalorder %s16, 0
    %p260 = por %p258, %p259
    %p261 = scmp.ne.s32.totalorder %s250, %s253
    %p262 = scmp.eq.s32.totalorder %s21, 1
    %p263 = por %p261, %p262
    %p264 = scmp.ne.s32.totalorder %s253, %s254
    %p265 = scmp.eq.s32.totalorder %s21, 0
    %p266 = por %p264, %p265
    %p267 = scmp.ne.s32.totalorder %s253, %s254
    %p268 = scmp.eq.s32.totalorder %s22, 1
    %p269 = por %p267, %p268
    %p271 = scmp.ne.s32.totalorder %s254, %s270
    %p272 = scmp.eq.s32.totalorder %s22, 0
    %p273 = por %p271, %p272
    %p274 = scmp.le.s32.totalorder 1, %s16
    %p275 = scmp.lt.s32.totalorder %s16, 3
    %p276 = pnand %p274, %p275
    %p277 = pneg %p276
    // Predicated region
    $region9: #{encoder_rnn_forward.3} parent=5 // pred_check
      _
    $region10: #{encoder_rnn_forward.3} parent=5 // pred_check_branch
      %279 = sbr.rel (%p276) target = $region12
    $region11: #{encoder_rnn_forward.3} parent=5 // pred_region
      %s280 = ssub.s32 %s16, 1
      // Predicated region
      $region13: #{encoder_rnn_forward.3} parent=11 // pred_check
        %p281 = pneg %p37
      $region14: #{encoder_rnn_forward.3} parent=11 // pred_check_branch
        %283 = sbr.rel (%p281) target = $region16
      $region15: #{encoder_rnn_forward.3} parent=11 // pred_region
        _
      $region16: #{encoder_rnn_forward.3} parent=11 // pred_fallthru
        _
      // Predicated region
      $region17: #{encoder_rnn_forward.3} parent=11 // pred_check
        %p284 = pneg %p58
      $region18: #{encoder_rnn_forward.3} parent=11 // pred_check_branch
        %286 = sbr.rel (%p284) target = $region20
      $region19: #{encoder_rnn_forward.3} parent=11 // pred_region
        _
      $region20: #{encoder_rnn_forward.3} parent=11 // pred_fallthru
        _
    $region12: #{encoder_rnn_forward.3} parent=5 // pred_fallthru
      _
    %p287 = scmp.lt.s32.totalorder %s16, 2
    // Predicated region
    $region21: #{encoder_rnn_forward.3} parent=5 // pred_check
      %p288 = pneg %p287
    $region22: #{encoder_rnn_forward.3} parent=5 // pred_check_branch
      %290 = sbr.rel (%p288) target = $region24
    $region23: #{encoder_rnn_forward.3} parent=5 // pred_region
      // Predicated region
      $region25: #{encoder_rnn_forward.3} parent=23 // pred_check
        %p291 = pneg %p78
      $region26: #{encoder_rnn_forward.3} parent=23 // pred_check_branch
        %293 = sbr.rel (%p291) target = $region28
      $region27: #{encoder_rnn_forward.3} parent=23 // pred_region
        %p294 = scmp.lt.s32.totalorder %s16, 1
        %s295 = scalar_select %p294, %s16, 1
        %s296 = smul.addr %s295, 8
        %s297 = smul.addr %s296, 8
        %s298 = scalar_lea.vmem %s2, %s297
      $region28: #{encoder_rnn_forward.3} parent=23 // pred_fallthru
        _
      // Predicated region
      $region29: #{encoder_rnn_forward.3} parent=23 // pred_check
        %p299 = pneg %p104
      $region30: #{encoder_rnn_forward.3} parent=23 // pred_check_branch
        %301 = sbr.rel (%p299) target = $region32
      $region31: #{encoder_rnn_forward.3} parent=23 // pred_region
        %p302 = scmp.lt.s32.totalorder %s16, 1
        %s303 = scalar_select %p302, %s16, 1
        %s304 = smul.addr %s303, 4
        %s305 = smul.addr %s304, 8
        %s306 = scalar_lea.vmem %s3, %s305
      $region32: #{encoder_rnn_forward.3} parent=23 // pred_fallthru
        _
      // Predicated region
      $region33: #{encoder_rnn_forward.3} parent=23 // pred_check
        %p307 = pneg %p130
      $region34: #{encoder_rnn_forward.3} parent=23 // pred_check_branch
        %309 = sbr.rel (%p307) target = $region36
      $region35: #{encoder_rnn_forward.3} parent=23 // pred_region
        %p310 = scmp.lt.s32.totalorder %s16, 1
        %s311 = scalar_select %p310, %s16, 1
        %s312 = scalar_lea.vmem %s4, %s311
      $region36: #{encoder_rnn_forward.3} parent=23 // pred_fallthru
        _
      // Predicated region
      $region37: #{encoder_rnn_forward.3} parent=23 // pred_check
        %p313 = pneg %p156
      $region38: #{encoder_rnn_forward.3} parent=23 // pred_check_branch
        %315 = sbr.rel (%p313) target = $region40
      $region39: #{encoder_rnn_forward.3} parent=23 // pred_region
        %p316 = scmp.lt.s32.totalorder %s16, 1
        %s317 = scalar_select %p316, %s16, 1
        %s318 = smul.addr %s317, 4
        %s319 = scalar_lea.vmem %s5, %s318
      $region40: #{encoder_rnn_forward.3} parent=23 // pred_fallthru
        _
      // Predicated region
      $region41: #{encoder_rnn_forward.3} parent=23 // pred_check
        %p320 = pneg %p182
      $region42: #{encoder_rnn_forward.3} parent=23 // pred_check_branch
        %322 = sbr.rel (%p320) target = $region44
      $region43: #{encoder_rnn_forward.3} parent=23 // pred_region
        %p323 = scmp.lt.s32.totalorder %s16, 1
        %s324 = scalar_select %p323, %s16, 1
        %s325 = smul.addr %s324, 4
        %s326 = scalar_lea.vmem %s6, %s325
      $region44: #{encoder_rnn_forward.3} parent=23 // pred_fallthru
        _
    $region24: #{encoder_rnn_forward.3} parent=5 // pred_fallthru
      _
    %p327 = scmp.le.s32.totalorder 1, %s16
    %p328 = scmp.lt.s32.totalorder %s16, 3
    %p329 = pnand %p327, %p328
    %p330 = pneg %p329
    // Predicated region
    $region45: #{encoder_rnn_forward.3} parent=5 // pred_check
      _
    $region46: #{encoder_rnn_forward.3} parent=5 // pred_check_branch
      %332 = sbr.rel (%p329) target = $region48
    $region47: #{encoder_rnn_forward.3} parent=5 // pred_region
      %s333 = ssub.s32 %s16, 1
      %p334 = pneg %p37
      %p335 = pneg %p34
      %p336 = pneg %p58
      %p337 = pneg %p55
      %p338 = scmp.lt.s32.totalorder %s21, 1
      %s339 = scalar_select %p338, %s21, 1
      %s340 = smul.addr %s339, 8
      %s341 = smul.addr %s340, 8
      %s342 = scalar_lea.vmem %s2, %s341
      %p343 = pneg %p84
      %p344 = pneg %p81
      %p345 = scmp.lt.s32.totalorder %s21, 1
      %s346 = scalar_select %p345, %s21, 1
      %s347 = smul.addr %s346, 4
      %s348 = smul.addr %s347, 8
      %s349 = scalar_lea.vmem %s3, %s348
      %p350 = pneg %p110
      %p351 = pneg %p107
      %p352 = scmp.lt.s32.totalorder %s21, 1
      %s353 = scalar_select %p352, %s21, 1
      %s354 = scalar_lea.vmem %s4, %s353
      %p355 = pneg %p136
      %p356 = pneg %p133
      %p357 = scmp.lt.s32.totalorder %s21, 1
      %s358 = scalar_select %p357, %s21, 1
      %s359 = smul.addr %s358, 4
      %s360 = scalar_lea.vmem %s5, %s359
      %p361 = pneg %p162
      %p362 = pneg %p159
      %p363 = scmp.lt.s32.totalorder %s21, 1
      %s364 = scalar_select %p363, %s21, 1
      %s365 = smul.addr %s364, 4
      %s366 = scalar_lea.vmem %s6, %s365
      %p367 = pneg %p188
      %p368 = pneg %p185
      %p369 = pneg %p214
      %p370 = pneg %p211
      %p371 = scmp.lt.s32.totalorder %s21, 1
      %s372 = scalar_select %p371, %s21, 1
      %s373 = smul.addr %s372, 8
      %s374 = smul.addr %s373, 4
      %s375 = scalar_lea.vmem %s7, %s374
      %p376 = pneg %p240
      %p377 = pneg %p237
      %p378 = scmp.lt.s32.totalorder %s21, 1
      %s379 = scalar_select %p378, %s21, 1
      %s380 = smul.addr %s379, 4
      %s381 = scalar_lea.vmem %s8, %s380
      %p382 = pneg %p266
      %p383 = pneg %p263
      %p384 = scmp.lt.s32.totalorder %s21, 1
      %s385 = scalar_select %p384, %s21, 1
      %s386 = smul.addr %s385, 4
      %s387 = scalar_lea.vmem %s9, %s386
      %p388 = scmp.lt.s32.totalorder %s21, 1
      %s389 = scalar_select %p388, %s21, 1
      %s390 = smul.addr %s389, 8
      %s391 = smul.addr %s390, 8
      %s392 = scalar_lea.vmem %s2, %s391
      %p393 = scmp.lt.s32.totalorder %s21, 1
      %s394 = scalar_select %p393, %s21, 1
      %s395 = smul.addr %s394, 4
      %s396 = smul.addr %s395, 8
      %s397 = scalar_lea.vmem %s3, %s396
      %p398 = scmp.lt.s32.totalorder %s21, 1
      %s399 = scalar_select %p398, %s21, 1
      %s400 = scalar_lea.vmem %s4, %s399
      %p401 = scmp.lt.s32.totalorder %s21, 1
      %s402 = scalar_select %p401, %s21, 1
      %s403 = smul.addr %s402, 4
      %s404 = scalar_lea.vmem %s5, %s403
      %p405 = scmp.lt.s32.totalorder %s21, 1
      %s406 = scalar_select %p405, %s21, 1
      %s407 = smul.addr %s406, 4
      %s408 = scalar_lea.vmem %s6, %s407
      %p409 = scmp.lt.s32.totalorder %s21, 1
      %s410 = scalar_select %p409, %s21, 1
      %s411 = smul.addr %s410, 8
      %s412 = smul.addr %s411, 4
      %s413 = scalar_lea.vmem %s7, %s412
      %p414 = scmp.lt.s32.totalorder %s21, 1
      %s415 = scalar_select %p414, %s21, 1
      %s416 = smul.addr %s415, 4
      %s417 = scalar_lea.vmem %s8, %s416
      %p418 = scmp.lt.s32.totalorder %s21, 1
      %s419 = scalar_select %p418, %s21, 1
      %s420 = smul.addr %s419, 4
      %s421 = scalar_lea.vmem %s9, %s420
      %v422 = vld [vmem:[%s1] sm:$0xf]
      %v423 = vld [vmem:[%s392] sm:$0xff]
      %v424 = vld [vmem:[%s392 + $0x8] sm:$0xff]
      %v425 = vld [vmem:[%s392 + $0x10] sm:$0xff]
      %v426 = vld [vmem:[%s392 + $0x18] sm:$0xff]
      %v427 = vld [vmem:[%s392 + $0x20] sm:$0xff]
      %v428 = vld [vmem:[%s392 + $0x28] sm:$0xff]
      %v429 = vld [vmem:[%s392 + $0x30] sm:$0xff]
      %v430 = vld [vmem:[%s392 + $0x38] sm:$0xff]
      %v431 = vld [vmem:[%s397] sm:$0xff]
      %v432 = vld [vmem:[%s397 + $0x8] sm:$0xff]
      %v433 = vld [vmem:[%s397 + $0x10] sm:$0xff]
      %v434 = vld [vmem:[%s397 + $0x18] sm:$0xff]
      %v435 = vld [vmem:[%s400] sm:$0x1]
      %v436 = vld [vmem:[%s0] sm:$0xf]
      %v437 = vld [vmem:[%s0 + $0x4] sm:$0xf]
      %v438 = vld [vmem:[%s0 + $0x8] sm:$0xf]
      %v439 = vld [vmem:[%s0 + $0xc] sm:$0xf]
      %v440 = vld [vmem:[%s0 + $0x10] sm:$0xf]
      %v441 = vld [vmem:[%s0 + $0x14] sm:$0xf]
      %v442 = vld [vmem:[%s0 + $0x18] sm:$0xf]
      %v443 = vld [vmem:[%s0 + $0x1c] sm:$0xf]
      %v445 = vlaneseq
      %v446 = vshrl.u32 %v445, 7
      %v447 = vsub.s32 0, %v446
      %v448 = vrot.slane %v435, %v447
      %v458 = vcombine.low %v436, %v437
      %v459 = vcombine.low %v438, %v439
      %v460 = vcombine.low %v440, %v441
      %v461 = vcombine.low %v442, %v443
      %vm462 = vcmask 523264
      %v463 = vsel %vm462, %v458, 0
      %v465 = vsel %vm462, %v459, 0
      %v467 = vsel %vm462, %v460, 0
      %v469 = vsel %vm462, %v461, 0
      %471 = vmatprep.subr.mxu0 0.0
      %472 = vmatpush1.msra.mxu0 0.0
      %473 = vmatprep.subr.mxu0 0.0
      %474 = vmatpush1.msra.mxu0 0.0
      %475 = vmatprep.subr.mxu0 0.0
      %476 = vmatpush1.msra.mxu0 0.0
      %477 = vmatprep.subr.mxu0 0.0
      %478 = vmatpush1.msra.mxu0 0.0
      %479 = vmatprep.subr.mxu0 0.0
      %480 = vmatpush1.msra.mxu0 0.0
      %481 = vmatprep.subr.mxu0 0.0
      %482 = vmatpush1.msra.mxu0 0.0
      %483 = vmatprep.subr.mxu0 0.0
      %484 = vmatpush1.msra.mxu0 0.0
      %485 = vmatprep.subr.mxu0 0.0
      %486 = vmatpush1.msra.mxu0 0.0
      %487 = vmatprep.subr.mxu0 0.0
      %488 = vmatpush1.msra.mxu0 %v430
      %489 = vmatprep.subr.mxu0 0.0
      %490 = vmatpush1.msra.mxu0 %v429
      %491 = vmatprep.subr.mxu0 0.0
      %492 = vmatpush1.msra.mxu0 %v428
      %493 = vmatprep.subr.mxu0 0.0
      %494 = vmatpush1.msra.mxu0 %v427
      %495 = vmatprep.subr.mxu0 0.0
      %496 = vmatpush1.msra.mxu0 %v426
      %497 = vmatprep.subr.mxu0 0.0
      %498 = vmatpush1.msra.mxu0 %v425
      %499 = vmatprep.subr.mxu0 0.0
      %500 = vmatpush1.msra.mxu0 %v424
      %501 = vmatprep.subr.mxu0 0.0
      %502 = vmatpush1.msra.mxu0 %v423
      %503 = vmatprep.subr.mxu0 0.0
      %504 = vmatpush2.msra.mxu0 0.0
      %505 = vmatprep.subr.mxu0 0.0
      %506 = vmatpush2.msra.mxu0 0.0
      %507 = vmatprep.subr.mxu0 0.0
      %508 = vmatpush2.msra.mxu0 0.0
      %509 = vmatprep.subr.mxu0 0.0
      %510 = vmatpush2.msra.mxu0 0.0
      %511 = vmatprep.subr.mxu0 0.0
      %512 = vmatpush2.msra.mxu0 0.0
      %513 = vmatprep.subr.mxu0 0.0
      %514 = vmatpush2.msra.mxu0 0.0
      %515 = vmatprep.subr.mxu0 0.0
      %516 = vmatpush2.msra.mxu0 0.0
      %517 = vmatprep.subr.mxu0 0.0
      %518 = vmatpush2.msra.mxu0 0.0
      %519 = vmatprep.subr.mxu0 0.0
      %520 = vmatpush2.msra.mxu0 0.0
      %521 = vmatprep.subr.mxu0 0.0
      %522 = vmatpush2.msra.mxu0 0.0
      %523 = vmatprep.subr.mxu0 0.0
      %524 = vmatpush2.msra.mxu0 0.0
      %525 = vmatprep.subr.mxu0 0.0
      %526 = vmatpush2.msra.mxu0 0.0
      %527 = vmatprep.subr.mxu0 0.0
      %528 = vmatpush2.msra.mxu0 0.0
      %529 = vmatprep.subr.mxu0 0.0
      %530 = vmatpush2.msra.mxu0 0.0
      %531 = vmatprep.subr.mxu0 0.0
      %532 = vmatpush2.msra.mxu0 0.0
      %533 = vmatprep.subr.mxu0 0.0
      %534 = vmatpush2.msra.mxu0 0.0
      %535 = vmatprep.mubr.f32.mxu0 0.0
      %536 = vmatmul.mubr.f32.gmra.mxu0 %v463
      %v537 = vpop.f32.mrf.mxu0
      %v538 = vadd.f32 %v448, %v537
      %v539 = vpop.f32.mrf.mxu0
      %540 = vmatprep.mubr.f32.mxu0 0.0
      %541 = vmatmul.mubr.f32.gmra.mxu0 %v465
      %v542 = vpop.f32.mrf.mxu0
      %v543 = vadd.f32 %v448, %v542
      %v544 = vpop.f32.mrf.mxu0
      %545 = vmatprep.mubr.f32.mxu0 0.0
      %546 = vmatmul.mubr.f32.gmra.mxu0 %v467
      %v547 = vpop.f32.mrf.mxu0
      %v548 = vadd.f32 %v448, %v547
      %v549 = vpop.f32.mrf.mxu0
      %550 = vmatprep.mubr.f32.mxu0 0.0
      %551 = vmatmul.mubr.f32.gmra.mxu0 %v469
      %v552 = vpop.f32.mrf.mxu0
      %v553 = vadd.f32 %v448, %v552
      %v554 = vpop.f32.mrf.mxu0
      %555 = vdwg.mxu0
      %v560 = vcombine.high %v538, %v538
      %v561 = vcombine.high %v543, %v543
      %v562 = vcombine.high %v548, %v548
      %v563 = vcombine.high %v553, %v553
      %568 = vst [vmem:[#allocation2] sm:$0xf] %v538
      %569 = vst [vmem:[#allocation2 + $0x4] sm:$0xf] %v560
      %570 = vst [vmem:[#allocation2 + $0x8] sm:$0xf] %v543
      %571 = vst [vmem:[#allocation2 + $0xc] sm:$0xf] %v561
      %572 = vst [vmem:[#allocation2 + $0x10] sm:$0xf] %v548
      %573 = vst [vmem:[#allocation2 + $0x14] sm:$0xf] %v562
      %574 = vst [vmem:[#allocation2 + $0x18] sm:$0xf] %v553
      %575 = vst [vmem:[#allocation2 + $0x1c] sm:$0xf] %v563
      %p576 = scmp.eq.s32.totalorder %s21, 1
      %v577 = vld [vmem:[%s404] sm:$0xf]
      %v578 = vld [vmem:[%s408] sm:$0xf]
      %s579 = scalar_select %p576, 7, 0
      %s580 = smul.u32 %s579, 4
      %s581 = scalar_lea.vmem [#allocation2], %s580
      %v582 = vld [vmem:[%s581] sm:$0xf]
      %vm583 = vcmask 261120
      %v585 = vsel %vm583, %v577, 0
      %587 = vmatprep.subr.mxu0 0.0
      %588 = vmatpush1.msra.mxu0 0.0
      %589 = vmatprep.subr.mxu0 0.0
      %590 = vmatpush1.msra.mxu0 0.0
      %591 = vmatprep.subr.mxu0 0.0
      %592 = vmatpush1.msra.mxu0 0.0
      %593 = vmatprep.subr.mxu0 0.0
      %594 = vmatpush1.msra.mxu0 0.0
      %595 = vmatprep.subr.mxu0 0.0
      %596 = vmatpush1.msra.mxu0 0.0
      %597 = vmatprep.subr.mxu0 0.0
      %598 = vmatpush1.msra.mxu0 0.0
      %599 = vmatprep.subr.mxu0 0.0
      %600 = vmatpush1.msra.mxu0 0.0
      %601 = vmatprep.subr.mxu0 0.0
      %602 = vmatpush1.msra.mxu0 0.0
      %603 = vmatprep.subr.mxu0 0.0
      %604 = vmatpush1.msra.mxu0 0.0
      %605 = vmatprep.subr.mxu0 0.0
      %606 = vmatpush1.msra.mxu0 0.0
      %607 = vmatprep.subr.mxu0 0.0
      %608 = vmatpush1.msra.mxu0 0.0
      %609 = vmatprep.subr.mxu0 0.0
      %610 = vmatpush1.msra.mxu0 0.0
      %611 = vmatprep.subr.mxu0 0.0
      %612 = vmatpush1.msra.mxu0 %v434
      %613 = vmatprep.subr.mxu0 0.0
      %614 = vmatpush1.msra.mxu0 %v433
      %615 = vmatprep.subr.mxu0 0.0
      %616 = vmatpush1.msra.mxu0 %v432
      %617 = vmatprep.subr.mxu0 0.0
      %618 = vmatpush1.msra.mxu0 %v431
      %619 = vmatprep.subr.mxu0 0.0
      %620 = vmatpush2.msra.mxu0 0.0
      %621 = vmatprep.subr.mxu0 0.0
      %622 = vmatpush2.msra.mxu0 0.0
      %623 = vmatprep.subr.mxu0 0.0
      %624 = vmatpush2.msra.mxu0 0.0
      %625 = vmatprep.subr.mxu0 0.0
      %626 = vmatpush2.msra.mxu0 0.0
      %627 = vmatprep.subr.mxu0 0.0
      %628 = vmatpush2.msra.mxu0 0.0
      %629 = vmatprep.subr.mxu0 0.0
      %630 = vmatpush2.msra.mxu0 0.0
      %631 = vmatprep.subr.mxu0 0.0
      %632 = vmatpush2.msra.mxu0 0.0
      %633 = vmatprep.subr.mxu0 0.0
      %634 = vmatpush2.msra.mxu0 0.0
      %635 = vmatprep.subr.mxu0 0.0
      %636 = vmatpush2.msra.mxu0 0.0
      %637 = vmatprep.subr.mxu0 0.0
      %638 = vmatpush2.msra.mxu0 0.0
      %639 = vmatprep.subr.mxu0 0.0
      %640 = vmatpush2.msra.mxu0 0.0
      %641 = vmatprep.subr.mxu0 0.0
      %642 = vmatpush2.msra.mxu0 0.0
      %643 = vmatprep.subr.mxu0 0.0
      %644 = vmatpush2.msra.mxu0 0.0
      %645 = vmatprep.subr.mxu0 0.0
      %646 = vmatpush2.msra.mxu0 0.0
      %647 = vmatprep.subr.mxu0 0.0
      %648 = vmatpush2.msra.mxu0 0.0
      %649 = vmatprep.subr.mxu0 0.0
      %650 = vmatpush2.msra.mxu0 0.0
      %651 = vmatprep.mubr.f32.mxu0 0.0
      %652 = vmatmul.mubr.f32.gmra.mxu0 %v585
      %v653 = vpop.f32.mrf.mxu0
      %v654 = vadd.f32 0.0, %v653
      %v655 = vpop.f32.mrf.mxu0
      %656 = vdwg.mxu0
      %v657 = vadd.f32 %v582, %v654
      %v658 = vxor.u32 %v657, 2147483648
      %v659 = vmul.f32 %v658, 1.442695
      %v660 = vpow.pop %v659
      %v661 = vadd.f32 %v660, 1.0
      %v662 = vrcp.pop %v661
      %v663 = vmul.f32 1.0, %v662
      %v664 = vtanh.pop %v657
      %666 = vrot.lane.b32.xlu0 %v578, 32
      %v667 = vpop.permute.xlu0 %666
      %v669 = vmul.f32 %v663, %v667
      %671 = vrot.lane.b32.xlu0 %v664, 64
      %v672 = vpop.permute.xlu0 %671
      %v674 = vmul.f32 %v663, %v672
      %676 = vrot.lane.b32.xlu0 %v674, 32
      %v677 = vpop.permute.xlu0 %676
      %v679 = vadd.f32 %v669, %v677
      %v680 = vtanh.pop %v679
      %682 = vrot.lane.b32.xlu0 %v680, 64
      %v683 = vpop.permute.xlu0 %682
      %v685 = vmul.f32 %v663, %v683
      %v686 = vstv %s579
      %vm687 = vcmp.lt.s32.totalorder %v686, %v422
      %v688 = vsel %vm687, 1, 0
      %689 = vset.pattern.permute.xlu0 0
      %690 = vperm.xlu0 %689, %v688
      %v691 = vpop.permute.xlu0 %690
      %vm692 = vcmp.eq.s32.totalorder %v691, 1
      %v693 = vsel %vm692, %v679, %v667
      %694 = vrot.lane.b32.xlu0 %v577, 96
      %v695 = vpop.permute.xlu0 %694
      %v697 = vsel %vm692, %v685, %v695
      %699 = vrot.lane.b32.xlu0 %v685, 32
      %v700 = vpop.permute.xlu0 %699
      %s702 = scalar_lea.vmem %s413, %s580
      %vm703 = vcmask 257024
      %704 = vst.msk [vmem:[%s702] sm:$0xf] %vm703, %v700
      %s705 = scalar_select %p576, 6, 1
      %s706 = smul.u32 %s705, 4
      %s707 = scalar_lea.vmem [#allocation2], %s706
      %v708 = vld [vmem:[%s707] sm:$0xf]
      %710 = vrot.lane.b32.xlu0 %v697, 32
      %v711 = vpop.permute.xlu0 %710
      %v712 = vsel %vm583, %v711, 0
      %714 = vmatprep.subr.mxu0 0.0
      %715 = vmatpush1.msra.mxu0 0.0
      %716 = vmatprep.subr.mxu0 0.0
      %717 = vmatpush1.msra.mxu0 0.0
      %718 = vmatprep.subr.mxu0 0.0
      %719 = vmatpush1.msra.mxu0 0.0
      %720 = vmatprep.subr.mxu0 0.0
      %721 = vmatpush1.msra.mxu0 0.0
      %722 = vmatprep.subr.mxu0 0.0
      %723 = vmatpush1.msra.mxu0 0.0
      %724 = vmatprep.subr.mxu0 0.0
      %725 = vmatpush1.msra.mxu0 0.0
      %726 = vmatprep.subr.mxu0 0.0
      %727 = vmatpush1.msra.mxu0 0.0
      %728 = vmatprep.subr.mxu0 0.0
      %729 = vmatpush1.msra.mxu0 0.0
      %730 = vmatprep.subr.mxu0 0.0
      %731 = vmatpush1.msra.mxu0 0.0
      %732 = vmatprep.subr.mxu0 0.0
      %733 = vmatpush1.msra.mxu0 0.0
      %734 = vmatprep.subr.mxu0 0.0
      %735 = vmatpush1.msra.mxu0 0.0
      %736 = vmatprep.subr.mxu0 0.0
      %737 = vmatpush1.msra.mxu0 0.0
      %738 = vmatprep.subr.mxu0 0.0
      %739 = vmatpush1.msra.mxu0 %v434
      %740 = vmatprep.subr.mxu0 0.0
      %741 = vmatpush1.msra.mxu0 %v433
      %742 = vmatprep.subr.mxu0 0.0
      %743 = vmatpush1.msra.mxu0 %v432
      %744 = vmatprep.subr.mxu0 0.0
      %745 = vmatpush1.msra.mxu0 %v431
      %746 = vmatprep.subr.mxu0 0.0
      %747 = vmatpush2.msra.mxu0 0.0
      %748 = vmatprep.subr.mxu0 0.0
      %749 = vmatpush2.msra.mxu0 0.0
      %750 = vmatprep.subr.mxu0 0.0
      %751 = vmatpush2.msra.mxu0 0.0
      %752 = vmatprep.subr.mxu0 0.0
      %753 = vmatpush2.msra.mxu0 0.0
      %754 = vmatprep.subr.mxu0 0.0
      %755 = vmatpush2.msra.mxu0 0.0
      %756 = vmatprep.subr.mxu0 0.0
      %757 = vmatpush2.msra.mxu0 0.0
      %758 = vmatprep.subr.mxu0 0.0
      %759 = vmatpush2.msra.mxu0 0.0
      %760 = vmatprep.subr.mxu0 0.0
      %761 = vmatpush2.msra.mxu0 0.0
      %762 = vmatprep.subr.mxu0 0.0
      %763 = vmatpush2.msra.mxu0 0.0
      %764 = vmatprep.subr.mxu0 0.0
      %765 = vmatpush2.msra.mxu0 0.0
      %766 = vmatprep.subr.mxu0 0.0
      %767 = vmatpush2.msra.mxu0 0.0
      %768 = vmatprep.subr.mxu0 0.0
      %769 = vmatpush2.msra.mxu0 0.0
      %770 = vmatprep.subr.mxu0 0.0
      %771 = vmatpush2.msra.mxu0 0.0
      %772 = vmatprep.subr.mxu0 0.0
      %773 = vmatpush2.msra.mxu0 0.0
      %774 = vmatprep.subr.mxu0 0.0
      %775 = vmatpush2.msra.mxu0 0.0
      %776 = vmatprep.subr.mxu0 0.0
      %777 = vmatpush2.msra.mxu0 0.0
      %778 = vmatprep.mubr.f32.mxu0 0.0
      %779 = vmatmul.mubr.f32.gmra.mxu0 %v712
      %v780 = vpop.f32.mrf.mxu0
      %v781 = vadd.f32 0.0, %v780
      %v782 = vpop.f32.mrf.mxu0
      %783 = vdwg.mxu0
      %v784 = vadd.f32 %v708, %v781
      %v785 = vxor.u32 %v784, 2147483648
      %v786 = vmul.f32 %v785, 1.442695
      %v787 = vpow.pop %v786
      %v788 = vadd.f32 %v787, 1.0
      %v789 = vrcp.pop %v788
      %v790 = vmul.f32 1.0, %v789
      %v791 = vtanh.pop %v784
      %v792 = vmul.f32 %v790, %v693
      %794 = vrot.lane.b32.xlu0 %v791, 64
      %v795 = vpop.permute.xlu0 %794
      %v797 = vmul.f32 %v790, %v795
      %799 = vrot.lane.b32.xlu0 %v797, 32
      %v800 = vpop.permute.xlu0 %799
      %v802 = vadd.f32 %v792, %v800
      %v803 = vtanh.pop %v802
      %805 = vrot.lane.b32.xlu0 %v803, 64
      %v806 = vpop.permute.xlu0 %805
      %v808 = vmul.f32 %v790, %v806
      %v809 = vstv %s705
      %vm810 = vcmp.lt.s32.totalorder %v809, %v422
      %v811 = vsel %vm810, 1, 0
      %812 = vset.pattern.permute.xlu0 0
      %813 = vperm.xlu0 %812, %v811
      %v814 = vpop.permute.xlu0 %813
      %vm815 = vcmp.eq.s32.totalorder %v814, 1
      %v816 = vsel %vm815, %v802, %v693
      %v817 = vsel %vm815, %v808, %v697
      %819 = vrot.lane.b32.xlu0 %v808, 32
      %v820 = vpop.permute.xlu0 %819
      %s822 = scalar_lea.vmem %s413, %s706
      %823 = vst.msk [vmem:[%s822] sm:$0xf] %vm703, %v820
      %s824 = scalar_select %p576, 5, 2
      %s825 = smul.u32 %s824, 4
      %s826 = scalar_lea.vmem [#allocation2], %s825
      %v827 = vld [vmem:[%s826] sm:$0xf]
      %829 = vrot.lane.b32.xlu0 %v817, 32
      %v830 = vpop.permute.xlu0 %829
      %v831 = vsel %vm583, %v830, 0
      %833 = vmatprep.subr.mxu0 0.0
      %834 = vmatpush1.msra.mxu0 0.0
      %835 = vmatprep.subr.mxu0 0.0
      %836 = vmatpush1.msra.mxu0 0.0
      %837 = vmatprep.subr.mxu0 0.0
      %838 = vmatpush1.msra.mxu0 0.0
      %839 = vmatprep.subr.mxu0 0.0
      %840 = vmatpush1.msra.mxu0 0.0
      %841 = vmatprep.subr.mxu0 0.0
      %842 = vmatpush1.msra.mxu0 0.0
      %843 = vmatprep.subr.mxu0 0.0
      %844 = vmatpush1.msra.mxu0 0.0
      %845 = vmatprep.subr.mxu0 0.0
      %846 = vmatpush1.msra.mxu0 0.0
      %847 = vmatprep.subr.mxu0 0.0
      %848 = vmatpush1.msra.mxu0 0.0
      %849 = vmatprep.subr.mxu0 0.0
      %850 = vmatpush1.msra.mxu0 0.0
      %851 = vmatprep.subr.mxu0 0.0
      %852 = vmatpush1.msra.mxu0 0.0
      %853 = vmatprep.subr.mxu0 0.0
      %854 = vmatpush1.msra.mxu0 0.0
      %855 = vmatprep.subr.mxu0 0.0
      %856 = vmatpush1.msra.mxu0 0.0
      %857 = vmatprep.subr.mxu0 0.0
      %858 = vmatpush1.msra.mxu0 %v434
      %859 = vmatprep.subr.mxu0 0.0
      %860 = vmatpush1.msra.mxu0 %v433
      %861 = vmatprep.subr.mxu0 0.0
      %862 = vmatpush1.msra.mxu0 %v432
      %863 = vmatprep.subr.mxu0 0.0
      %864 = vmatpush1.msra.mxu0 %v431
      %865 = vmatprep.subr.mxu0 0.0
      %866 = vmatpush2.msra.mxu0 0.0
      %867 = vmatprep.subr.mxu0 0.0
      %868 = vmatpush2.msra.mxu0 0.0
      %869 = vmatprep.subr.mxu0 0.0
      %870 = vmatpush2.msra.mxu0 0.0
      %871 = vmatprep.subr.mxu0 0.0
      %872 = vmatpush2.msra.mxu0 0.0
      %873 = vmatprep.subr.mxu0 0.0
      %874 = vmatpush2.msra.mxu0 0.0
      %875 = vmatprep.subr.mxu0 0.0
      %876 = vmatpush2.msra.mxu0 0.0
      %877 = vmatprep.subr.mxu0 0.0
      %878 = vmatpush2.msra.mxu0 0.0
      %879 = vmatprep.subr.mxu0 0.0
      %880 = vmatpush2.msra.mxu0 0.0
      %881 = vmatprep.subr.mxu0 0.0
      %882 = vmatpush2.msra.mxu0 0.0
      %883 = vmatprep.subr.mxu0 0.0
      %884 = vmatpush2.msra.mxu0 0.0
      %885 = vmatprep.subr.mxu0 0.0
      %886 = vmatpush2.msra.mxu0 0.0
      %887 = vmatprep.subr.mxu0 0.0
      %888 = vmatpush2.msra.mxu0 0.0
      %889 = vmatprep.subr.mxu0 0.0
      %890 = vmatpush2.msra.mxu0 0.0
      %891 = vmatprep.subr.mxu0 0.0
      %892 = vmatpush2.msra.mxu0 0.0
      %893 = vmatprep.subr.mxu0 0.0
      %894 = vmatpush2.msra.mxu0 0.0
      %895 = vmatprep.subr.mxu0 0.0
      %896 = vmatpush2.msra.mxu0 0.0
      %897 = vmatprep.mubr.f32.mxu0 0.0
      %898 = vmatmul.mubr.f32.gmra.mxu0 %v831
      %v899 = vpop.f32.mrf.mxu0
      %v900 = vadd.f32 0.0, %v899
      %v901 = vpop.f32.mrf.mxu0
      %902 = vdwg.mxu0
      %v903 = vadd.f32 %v827, %v900
      %v904 = vxor.u32 %v903, 2147483648
      %v905 = vmul.f32 %v904, 1.442695
      %v906 = vpow.pop %v905
      %v907 = vadd.f32 %v906, 1.0
      %v908 = vrcp.pop %v907
      %v909 = vmul.f32 1.0, %v908
      %v910 = vtanh.pop %v903
      %v911 = vmul.f32 %v909, %v816
      %913 = vrot.lane.b32.xlu0 %v910, 64
      %v914 = vpop.permute.xlu0 %913
      %v916 = vmul.f32 %v909, %v914
      %918 = vrot.lane.b32.xlu0 %v916, 32
      %v919 = vpop.permute.xlu0 %918
      %v921 = vadd.f32 %v911, %v919
      %v922 = vtanh.pop %v921
      %924 = vrot.lane.b32.xlu0 %v922, 64
      %v925 = vpop.permute.xlu0 %924
      %v927 = vmul.f32 %v909, %v925
      %v928 = vstv %s824
      %vm929 = vcmp.lt.s32.totalorder %v928, %v422
      %v930 = vsel %vm929, 1, 0
      %931 = vset.pattern.permute.xlu0 0
      %932 = vperm.xlu0 %931, %v930
      %v933 = vpop.permute.xlu0 %932
      %vm934 = vcmp.eq.s32.totalorder %v933, 1
      %v935 = vsel %vm934, %v921, %v816
      %v936 = vsel %vm934, %v927, %v817
      %938 = vrot.lane.b32.xlu0 %v927, 32
      %v939 = vpop.permute.xlu0 %938
      %s941 = scalar_lea.vmem %s413, %s825
      %942 = vst.msk [vmem:[%s941] sm:$0xf] %vm703, %v939
      %s943 = scalar_select %p576, 4, 3
      %s944 = smul.u32 %s943, 4
      %s945 = scalar_lea.vmem [#allocation2], %s944
      %v946 = vld [vmem:[%s945] sm:$0xf]
      %948 = vrot.lane.b32.xlu0 %v936, 32
      %v949 = vpop.permute.xlu0 %948
      %v950 = vsel %vm583, %v949, 0
      %952 = vmatprep.subr.mxu0 0.0
      %953 = vmatpush1.msra.mxu0 0.0
      %954 = vmatprep.subr.mxu0 0.0
      %955 = vmatpush1.msra.mxu0 0.0
      %956 = vmatprep.subr.mxu0 0.0
      %957 = vmatpush1.msra.mxu0 0.0
      %958 = vmatprep.subr.mxu0 0.0
      %959 = vmatpush1.msra.mxu0 0.0
      %960 = vmatprep.subr.mxu0 0.0
      %961 = vmatpush1.msra.mxu0 0.0
      %962 = vmatprep.subr.mxu0 0.0
      %963 = vmatpush1.msra.mxu0 0.0
      %964 = vmatprep.subr.mxu0 0.0
      %965 = vmatpush1.msra.mxu0 0.0
      %966 = vmatprep.subr.mxu0 0.0
      %967 = vmatpush1.msra.mxu0 0.0
      %968 = vmatprep.subr.mxu0 0.0
      %969 = vmatpush1.msra.mxu0 0.0
      %970 = vmatprep.subr.mxu0 0.0
      %971 = vmatpush1.msra.mxu0 0.0
      %972 = vmatprep.subr.mxu0 0.0
      %973 = vmatpush1.msra.mxu0 0.0
      %974 = vmatprep.subr.mxu0 0.0
      %975 = vmatpush1.msra.mxu0 0.0
      %976 = vmatprep.subr.mxu0 0.0
      %977 = vmatpush1.msra.mxu0 %v434
      %978 = vmatprep.subr.mxu0 0.0
      %979 = vmatpush1.msra.mxu0 %v433
      %980 = vmatprep.subr.mxu0 0.0
      %981 = vmatpush1.msra.mxu0 %v432
      %982 = vmatprep.subr.mxu0 0.0
      %983 = vmatpush1.msra.mxu0 %v431
      %984 = vmatprep.subr.mxu0 0.0
      %985 = vmatpush2.msra.mxu0 0.0
      %986 = vmatprep.subr.mxu0 0.0
      %987 = vmatpush2.msra.mxu0 0.0
      %988 = vmatprep.subr.mxu0 0.0
      %989 = vmatpush2.msra.mxu0 0.0
      %990 = vmatprep.subr.mxu0 0.0
      %991 = vmatpush2.msra.mxu0 0.0
      %992 = vmatprep.subr.mxu0 0.0
      %993 = vmatpush2.msra.mxu0 0.0
      %994 = vmatprep.subr.mxu0 0.0
      %995 = vmatpush2.msra.mxu0 0.0
      %996 = vmatprep.subr.mxu0 0.0
      %997 = vmatpush2.msra.mxu0 0.0
      %998 = vmatprep.subr.mxu0 0.0
      %999 = vmatpush2.msra.mxu0 0.0
      %1000 = vmatprep.subr.mxu0 0.0
      %1001 = vmatpush2.msra.mxu0 0.0
      %1002 = vmatprep.subr.mxu0 0.0
      %1003 = vmatpush2.msra.mxu0 0.0
      %1004 = vmatprep.subr.mxu0 0.0
      %1005 = vmatpush2.msra.mxu0 0.0
      %1006 = vmatprep.subr.mxu0 0.0
      %1007 = vmatpush2.msra.mxu0 0.0
      %1008 = vmatprep.subr.mxu0 0.0
      %1009 = vmatpush2.msra.mxu0 0.0
      %1010 = vmatprep.subr.mxu0 0.0
      %1011 = vmatpush2.msra.mxu0 0.0
      %1012 = vmatprep.subr.mxu0 0.0
      %1013 = vmatpush2.msra.mxu0 0.0
      %1014 = vmatprep.subr.mxu0 0.0
      %1015 = vmatpush2.msra.mxu0 0.0
      %1016 = vmatprep.mubr.f32.mxu0 0.0
      %1017 = vmatmul.mubr.f32.gmra.mxu0 %v950
      %v1018 = vpop.f32.mrf.mxu0
      %v1019 = vadd.f32 0.0, %v1018
      %v1020 = vpop.f32.mrf.mxu0
      %1021 = vdwg.mxu0
      %v1022 = vadd.f32 %v946, %v1019
      %v1023 = vxor.u32 %v1022, 2147483648
      %v1024 = vmul.f32 %v1023, 1.442695
      %v1025 = vpow.pop %v1024
      %v1026 = vadd.f32 %v1025, 1.0
      %v1027 = vrcp.pop %v1026
      %v1028 = vmul.f32 1.0, %v1027
      %v1029 = vtanh.pop %v1022
      %v1030 = vmul.f32 %v1028, %v935
      %1032 = vrot.lane.b32.xlu0 %v1029, 64
      %v1033 = vpop.permute.xlu0 %1032
      %v1035 = vmul.f32 %v1028, %v1033
      %1037 = vrot.lane.b32.xlu0 %v1035, 32
      %v1038 = vpop.permute.xlu0 %1037
      %v1040 = vadd.f32 %v1030, %v1038
      %v1041 = vtanh.pop %v1040
      %1043 = vrot.lane.b32.xlu0 %v1041, 64
      %v1044 = vpop.permute.xlu0 %1043
      %v1046 = vmul.f32 %v1028, %v1044
      %v1047 = vstv %s943
      %vm1048 = vcmp.lt.s32.totalorder %v1047, %v422
      %v1049 = vsel %vm1048, 1, 0
      %1050 = vset.pattern.permute.xlu0 0
      %1051 = vperm.xlu0 %1050, %v1049
      %v1052 = vpop.permute.xlu0 %1051
      %vm1053 = vcmp.eq.s32.totalorder %v1052, 1
      %v1054 = vsel %vm1053, %v1040, %v935
      %v1055 = vsel %vm1053, %v1046, %v936
      %1057 = vrot.lane.b32.xlu0 %v1046, 32
      %v1058 = vpop.permute.xlu0 %1057
      %s1060 = scalar_lea.vmem %s413, %s944
      %1061 = vst.msk [vmem:[%s1060] sm:$0xf] %vm703, %v1058
      %s1062 = scalar_select %p576, 3, 4
      %s1063 = smul.u32 %s1062, 4
      %s1064 = scalar_lea.vmem [#allocation2], %s1063
      %v1065 = vld [vmem:[%s1064] sm:$0xf]
      %1067 = vrot.lane.b32.xlu0 %v1055, 32
      %v1068 = vpop.permute.xlu0 %1067
      %v1069 = vsel %vm583, %v1068, 0
      %1071 = vmatprep.subr.mxu0 0.0
      %1072 = vmatpush1.msra.mxu0 0.0
      %1073 = vmatprep.subr.mxu0 0.0
      %1074 = vmatpush1.msra.mxu0 0.0
      %1075 = vmatprep.subr.mxu0 0.0
      %1076 = vmatpush1.msra.mxu0 0.0
      %1077 = vmatprep.subr.mxu0 0.0
      %1078 = vmatpush1.msra.mxu0 0.0
      %1079 = vmatprep.subr.mxu0 0.0
      %1080 = vmatpush1.msra.mxu0 0.0
      %1081 = vmatprep.subr.mxu0 0.0
      %1082 = vmatpush1.msra.mxu0 0.0
      %1083 = vmatprep.subr.mxu0 0.0
      %1084 = vmatpush1.msra.mxu0 0.0
      %1085 = vmatprep.subr.mxu0 0.0
      %1086 = vmatpush1.msra.mxu0 0.0
      %1087 = vmatprep.subr.mxu0 0.0
      %1088 = vmatpush1.msra.mxu0 0.0
      %1089 = vmatprep.subr.mxu0 0.0
      %1090 = vmatpush1.msra.mxu0 0.0
      %1091 = vmatprep.subr.mxu0 0.0
      %1092 = vmatpush1.msra.mxu0 0.0
      %1093 = vmatprep.subr.mxu0 0.0
      %1094 = vmatpush1.msra.mxu0 0.0
      %1095 = vmatprep.subr.mxu0 0.0
      %1096 = vmatpush1.msra.mxu0 %v434
      %1097 = vmatprep.subr.mxu0 0.0
      %1098 = vmatpush1.msra.mxu0 %v433
      %1099 = vmatprep.subr.mxu0 0.0
      %1100 = vmatpush1.msra.mxu0 %v432
      %1101 = vmatprep.subr.mxu0 0.0
      %1102 = vmatpush1.msra.mxu0 %v431
      %1103 = vmatprep.subr.mxu0 0.0
      %1104 = vmatpush2.msra.mxu0 0.0
      %1105 = vmatprep.subr.mxu0 0.0
      %1106 = vmatpush2.msra.mxu0 0.0
      %1107 = vmatprep.subr.mxu0 0.0
      %1108 = vmatpush2.msra.mxu0 0.0
      %1109 = vmatprep.subr.mxu0 0.0
      %1110 = vmatpush2.msra.mxu0 0.0
      %1111 = vmatprep.subr.mxu0 0.0
      %1112 = vmatpush2.msra.mxu0 0.0
      %1113 = vmatprep.subr.mxu0 0.0
      %1114 = vmatpush2.msra.mxu0 0.0
      %1115 = vmatprep.subr.mxu0 0.0
      %1116 = vmatpush2.msra.mxu0 0.0
      %1117 = vmatprep.subr.mxu0 0.0
      %1118 = vmatpush2.msra.mxu0 0.0
      %1119 = vmatprep.subr.mxu0 0.0
      %1120 = vmatpush2.msra.mxu0 0.0
      %1121 = vmatprep.subr.mxu0 0.0
      %1122 = vmatpush2.msra.mxu0 0.0
      %1123 = vmatprep.subr.mxu0 0.0
      %1124 = vmatpush2.msra.mxu0 0.0
      %1125 = vmatprep.subr.mxu0 0.0
      %1126 = vmatpush2.msra.mxu0 0.0
      %1127 = vmatprep.subr.mxu0 0.0
      %1128 = vmatpush2.msra.mxu0 0.0
      %1129 = vmatprep.subr.mxu0 0.0
      %1130 = vmatpush2.msra.mxu0 0.0
      %1131 = vmatprep.subr.mxu0 0.0
      %1132 = vmatpush2.msra.mxu0 0.0
      %1133 = vmatprep.subr.mxu0 0.0
      %1134 = vmatpush2.msra.mxu0 0.0
      %1135 = vmatprep.mubr.f32.mxu0 0.0
      %1136 = vmatmul.mubr.f32.gmra.mxu0 %v1069
      %v1137 = vpop.f32.mrf.mxu0
      %v1138 = vadd.f32 0.0, %v1137
      %v1139 = vpop.f32.mrf.mxu0
      %1140 = vdwg.mxu0
      %v1141 = vadd.f32 %v1065, %v1138
      %v1142 = vxor.u32 %v1141, 2147483648
      %v1143 = vmul.f32 %v1142, 1.442695
      %v1144 = vpow.pop %v1143
      %v1145 = vadd.f32 %v1144, 1.0
      %v1146 = vrcp.pop %v1145
      %v1147 = vmul.f32 1.0, %v1146
      %v1148 = vtanh.pop %v1141
      %v1149 = vmul.f32 %v1147, %v1054
      %1151 = vrot.lane.b32.xlu0 %v1148, 64
      %v1152 = vpop.permute.xlu0 %1151
      %v1154 = vmul.f32 %v1147, %v1152
      %1156 = vrot.lane.b32.xlu0 %v1154, 32
      %v1157 = vpop.permute.xlu0 %1156
      %v1159 = vadd.f32 %v1149, %v1157
      %v1160 = vtanh.pop %v1159
      %1162 = vrot.lane.b32.xlu0 %v1160, 64
      %v1163 = vpop.permute.xlu0 %1162
      %v1165 = vmul.f32 %v1147, %v1163
      %v1166 = vstv %s1062
      %vm1167 = vcmp.lt.s32.totalorder %v1166, %v422
      %v1168 = vsel %vm1167, 1, 0
      %1169 = vset.pattern.permute.xlu0 0
      %1170 = vperm.xlu0 %1169, %v1168
      %v1171 = vpop.permute.xlu0 %1170
      %vm1172 = vcmp.eq.s32.totalorder %v1171, 1
      %v1173 = vsel %vm1172, %v1159, %v1054
      %v1174 = vsel %vm1172, %v1165, %v1055
      %1176 = vrot.lane.b32.xlu0 %v1165, 32
      %v1177 = vpop.permute.xlu0 %1176
      %s1179 = scalar_lea.vmem %s413, %s1063
      %1180 = vst.msk [vmem:[%s1179] sm:$0xf] %vm703, %v1177
      %s1181 = scalar_select %p576, 2, 5
      %s1182 = smul.u32 %s1181, 4
      %s1183 = scalar_lea.vmem [#allocation2], %s1182
      %v1184 = vld [vmem:[%s1183] sm:$0xf]
      %1186 = vrot.lane.b32.xlu0 %v1174, 32
      %v1187 = vpop.permute.xlu0 %1186
      %v1188 = vsel %vm583, %v1187, 0
      %1190 = vmatprep.subr.mxu0 0.0
      %1191 = vmatpush1.msra.mxu0 0.0
      %1192 = vmatprep.subr.mxu0 0.0
      %1193 = vmatpush1.msra.mxu0 0.0
      %1194 = vmatprep.subr.mxu0 0.0
      %1195 = vmatpush1.msra.mxu0 0.0
      %1196 = vmatprep.subr.mxu0 0.0
      %1197 = vmatpush1.msra.mxu0 0.0
      %1198 = vmatprep.subr.mxu0 0.0
      %1199 = vmatpush1.msra.mxu0 0.0
      %1200 = vmatprep.subr.mxu0 0.0
      %1201 = vmatpush1.msra.mxu0 0.0
      %1202 = vmatprep.subr.mxu0 0.0
      %1203 = vmatpush1.msra.mxu0 0.0
      %1204 = vmatprep.subr.mxu0 0.0
      %1205 = vmatpush1.msra.mxu0 0.0
      %1206 = vmatprep.subr.mxu0 0.0
      %1207 = vmatpush1.msra.mxu0 0.0
      %1208 = vmatprep.subr.mxu0 0.0
      %1209 = vmatpush1.msra.mxu0 0.0
      %1210 = vmatprep.subr.mxu0 0.0
      %1211 = vmatpush1.msra.mxu0 0.0
      %1212 = vmatprep.subr.mxu0 0.0
      %1213 = vmatpush1.msra.mxu0 0.0
      %1214 = vmatprep.subr.mxu0 0.0
      %1215 = vmatpush1.msra.mxu0 %v434
      %1216 = vmatprep.subr.mxu0 0.0
      %1217 = vmatpush1.msra.mxu0 %v433
      %1218 = vmatprep.subr.mxu0 0.0
      %1219 = vmatpush1.msra.mxu0 %v432
      %1220 = vmatprep.subr.mxu0 0.0
      %1221 = vmatpush1.msra.mxu0 %v431
      %1222 = vmatprep.subr.mxu0 0.0
      %1223 = vmatpush2.msra.mxu0 0.0
      %1224 = vmatprep.subr.mxu0 0.0
      %1225 = vmatpush2.msra.mxu0 0.0
      %1226 = vmatprep.subr.mxu0 0.0
      %1227 = vmatpush2.msra.mxu0 0.0
      %1228 = vmatprep.subr.mxu0 0.0
      %1229 = vmatpush2.msra.mxu0 0.0
      %1230 = vmatprep.subr.mxu0 0.0
      %1231 = vmatpush2.msra.mxu0 0.0
      %1232 = vmatprep.subr.mxu0 0.0
      %1233 = vmatpush2.msra.mxu0 0.0
      %1234 = vmatprep.subr.mxu0 0.0
      %1235 = vmatpush2.msra.mxu0 0.0
      %1236 = vmatprep.subr.mxu0 0.0
      %1237 = vmatpush2.msra.mxu0 0.0
      %1238 = vmatprep.subr.mxu0 0.0
      %1239 = vmatpush2.msra.mxu0 0.0
      %1240 = vmatprep.subr.mxu0 0.0
      %1241 = vmatpush2.msra.mxu0 0.0
      %1242 = vmatprep.subr.mxu0 0.0
      %1243 = vmatpush2.msra.mxu0 0.0
      %1244 = vmatprep.subr.mxu0 0.0
      %1245 = vmatpush2.msra.mxu0 0.0
      %1246 = vmatprep.subr.mxu0 0.0
      %1247 = vmatpush2.msra.mxu0 0.0
      %1248 = vmatprep.subr.mxu0 0.0
      %1249 = vmatpush2.msra.mxu0 0.0
      %1250 = vmatprep.subr.mxu0 0.0
      %1251 = vmatpush2.msra.mxu0 0.0
      %1252 = vmatprep.subr.mxu0 0.0
      %1253 = vmatpush2.msra.mxu0 0.0
      %1254 = vmatprep.mubr.f32.mxu0 0.0
      %1255 = vmatmul.mubr.f32.gmra.mxu0 %v1188
      %v1256 = vpop.f32.mrf.mxu0
      %v1257 = vadd.f32 0.0, %v1256
      %v1258 = vpop.f32.mrf.mxu0
      %1259 = vdwg.mxu0
      %v1260 = vadd.f32 %v1184, %v1257
      %v1261 = vxor.u32 %v1260, 2147483648
      %v1262 = vmul.f32 %v1261, 1.442695
      %v1263 = vpow.pop %v1262
      %v1264 = vadd.f32 %v1263, 1.0
      %v1265 = vrcp.pop %v1264
      %v1266 = vmul.f32 1.0, %v1265
      %v1267 = vtanh.pop %v1260
      %v1268 = vmul.f32 %v1266, %v1173
      %1270 = vrot.lane.b32.xlu0 %v1267, 64
      %v1271 = vpop.permute.xlu0 %1270
      %v1273 = vmul.f32 %v1266, %v1271
      %1275 = vrot.lane.b32.xlu0 %v1273, 32
      %v1276 = vpop.permute.xlu0 %1275
      %v1278 = vadd.f32 %v1268, %v1276
      %v1279 = vtanh.pop %v1278
      %1281 = vrot.lane.b32.xlu0 %v1279, 64
      %v1282 = vpop.permute.xlu0 %1281
      %v1284 = vmul.f32 %v1266, %v1282
      %v1285 = vstv %s1181
      %vm1286 = vcmp.lt.s32.totalorder %v1285, %v422
      %v1287 = vsel %vm1286, 1, 0
      %1288 = vset.pattern.permute.xlu0 0
      %1289 = vperm.xlu0 %1288, %v1287
      %v1290 = vpop.permute.xlu0 %1289
      %vm1291 = vcmp.eq.s32.totalorder %v1290, 1
      %v1292 = vsel %vm1291, %v1278, %v1173
      %v1293 = vsel %vm1291, %v1284, %v1174
      %1295 = vrot.lane.b32.xlu0 %v1284, 32
      %v1296 = vpop.permute.xlu0 %1295
      %s1298 = scalar_lea.vmem %s413, %s1182
      %1299 = vst.msk [vmem:[%s1298] sm:$0xf] %vm703, %v1296
      %s1300 = scalar_select %p576, 1, 6
      %s1301 = smul.u32 %s1300, 4
      %s1302 = scalar_lea.vmem [#allocation2], %s1301
      %v1303 = vld [vmem:[%s1302] sm:$0xf]
      %1305 = vrot.lane.b32.xlu0 %v1293, 32
      %v1306 = vpop.permute.xlu0 %1305
      %v1307 = vsel %vm583, %v1306, 0
      %1309 = vmatprep.subr.mxu0 0.0
      %1310 = vmatpush1.msra.mxu0 0.0
      %1311 = vmatprep.subr.mxu0 0.0
      %1312 = vmatpush1.msra.mxu0 0.0
      %1313 = vmatprep.subr.mxu0 0.0
      %1314 = vmatpush1.msra.mxu0 0.0
      %1315 = vmatprep.subr.mxu0 0.0
      %1316 = vmatpush1.msra.mxu0 0.0
      %1317 = vmatprep.subr.mxu0 0.0
      %1318 = vmatpush1.msra.mxu0 0.0
      %1319 = vmatprep.subr.mxu0 0.0
      %1320 = vmatpush1.msra.mxu0 0.0
      %1321 = vmatprep.subr.mxu0 0.0
      %1322 = vmatpush1.msra.mxu0 0.0
      %1323 = vmatprep.subr.mxu0 0.0
      %1324 = vmatpush1.msra.mxu0 0.0
      %1325 = vmatprep.subr.mxu0 0.0
      %1326 = vmatpush1.msra.mxu0 0.0
      %1327 = vmatprep.subr.mxu0 0.0
      %1328 = vmatpush1.msra.mxu0 0.0
      %1329 = vmatprep.subr.mxu0 0.0
      %1330 = vmatpush1.msra.mxu0 0.0
      %1331 = vmatprep.subr.mxu0 0.0
      %1332 = vmatpush1.msra.mxu0 0.0
      %1333 = vmatprep.subr.mxu0 0.0
      %1334 = vmatpush1.msra.mxu0 %v434
      %1335 = vmatprep.subr.mxu0 0.0
      %1336 = vmatpush1.msra.mxu0 %v433
      %1337 = vmatprep.subr.mxu0 0.0
      %1338 = vmatpush1.msra.mxu0 %v432
      %1339 = vmatprep.subr.mxu0 0.0
      %1340 = vmatpush1.msra.mxu0 %v431
      %1341 = vmatprep.subr.mxu0 0.0
      %1342 = vmatpush2.msra.mxu0 0.0
      %1343 = vmatprep.subr.mxu0 0.0
      %1344 = vmatpush2.msra.mxu0 0.0
      %1345 = vmatprep.subr.mxu0 0.0
      %1346 = vmatpush2.msra.mxu0 0.0
      %1347 = vmatprep.subr.mxu0 0.0
      %1348 = vmatpush2.msra.mxu0 0.0
      %1349 = vmatprep.subr.mxu0 0.0
      %1350 = vmatpush2.msra.mxu0 0.0
      %1351 = vmatprep.subr.mxu0 0.0
      %1352 = vmatpush2.msra.mxu0 0.0
      %1353 = vmatprep.subr.mxu0 0.0
      %1354 = vmatpush2.msra.mxu0 0.0
      %1355 = vmatprep.subr.mxu0 0.0
      %1356 = vmatpush2.msra.mxu0 0.0
      %1357 = vmatprep.subr.mxu0 0.0
      %1358 = vmatpush2.msra.mxu0 0.0
      %1359 = vmatprep.subr.mxu0 0.0
      %1360 = vmatpush2.msra.mxu0 0.0
      %1361 = vmatprep.subr.mxu0 0.0
      %1362 = vmatpush2.msra.mxu0 0.0
      %1363 = vmatprep.subr.mxu0 0.0
      %1364 = vmatpush2.msra.mxu0 0.0
      %1365 = vmatprep.subr.mxu0 0.0
      %1366 = vmatpush2.msra.mxu0 0.0
      %1367 = vmatprep.subr.mxu0 0.0
      %1368 = vmatpush2.msra.mxu0 0.0
      %1369 = vmatprep.subr.mxu0 0.0
      %1370 = vmatpush2.msra.mxu0 0.0
      %1371 = vmatprep.subr.mxu0 0.0
      %1372 = vmatpush2.msra.mxu0 0.0
      %1373 = vmatprep.mubr.f32.mxu0 0.0
      %1374 = vmatmul.mubr.f32.gmra.mxu0 %v1307
      %v1375 = vpop.f32.mrf.mxu0
      %v1376 = vadd.f32 0.0, %v1375
      %v1377 = vpop.f32.mrf.mxu0
      %1378 = vdwg.mxu0
      %v1379 = vadd.f32 %v1303, %v1376
      %v1380 = vxor.u32 %v1379, 2147483648
      %v1381 = vmul.f32 %v1380, 1.442695
      %v1382 = vpow.pop %v1381
      %v1383 = vadd.f32 %v1382, 1.0
      %v1384 = vrcp.pop %v1383
      %v1385 = vmul.f32 1.0, %v1384
      %v1386 = vtanh.pop %v1379
      %v1387 = vmul.f32 %v1385, %v1292
      %1389 = vrot.lane.b32.xlu0 %v1386, 64
      %v1390 = vpop.permute.xlu0 %1389
      %v1392 = vmul.f32 %v1385, %v1390
      %1394 = vrot.lane.b32.xlu0 %v1392, 32
      %v1395 = vpop.permute.xlu0 %1394
      %v1397 = vadd.f32 %v1387, %v1395
      %v1398 = vtanh.pop %v1397
      %1400 = vrot.lane.b32.xlu0 %v1398, 64
      %v1401 = vpop.permute.xlu0 %1400
      %v1403 = vmul.f32 %v1385, %v1401
      %v1404 = vstv %s1300
      %vm1405 = vcmp.lt.s32.totalorder %v1404, %v422
      %v1406 = vsel %vm1405, 1, 0
      %1407 = vset.pattern.permute.xlu0 0
      %1408 = vperm.xlu0 %1407, %v1406
      %v1409 = vpop.permute.xlu0 %1408
      %vm1410 = vcmp.eq.s32.totalorder %v1409, 1
      %v1411 = vsel %vm1410, %v1397, %v1292
      %v1412 = vsel %vm1410, %v1403, %v1293
      %1414 = vrot.lane.b32.xlu0 %v1403, 32
      %v1415 = vpop.permute.xlu0 %1414
      %s1417 = scalar_lea.vmem %s413, %s1301
      %1418 = vst.msk [vmem:[%s1417] sm:$0xf] %vm703, %v1415
      %s1419 = scalar_select %p576, 0, 7
      %s1420 = smul.u32 %s1419, 4
      %s1421 = scalar_lea.vmem [#allocation2], %s1420
      %v1422 = vld [vmem:[%s1421] sm:$0xf]
      %1424 = vrot.lane.b32.xlu0 %v1412, 32
      %v1425 = vpop.permute.xlu0 %1424
      %v1426 = vsel %vm583, %v1425, 0
      %1428 = vmatprep.subr.mxu0 0.0
      %1429 = vmatpush1.msra.mxu0 0.0
      %1430 = vmatprep.subr.mxu0 0.0
      %1431 = vmatpush1.msra.mxu0 0.0
      %1432 = vmatprep.subr.mxu0 0.0
      %1433 = vmatpush1.msra.mxu0 0.0
      %1434 = vmatprep.subr.mxu0 0.0
      %1435 = vmatpush1.msra.mxu0 0.0
      %1436 = vmatprep.subr.mxu0 0.0
      %1437 = vmatpush1.msra.mxu0 0.0
      %1438 = vmatprep.subr.mxu0 0.0
      %1439 = vmatpush1.msra.mxu0 0.0
      %1440 = vmatprep.subr.mxu0 0.0
      %1441 = vmatpush1.msra.mxu0 0.0
      %1442 = vmatprep.subr.mxu0 0.0
      %1443 = vmatpush1.msra.mxu0 0.0
      %1444 = vmatprep.subr.mxu0 0.0
      %1445 = vmatpush1.msra.mxu0 0.0
      %1446 = vmatprep.subr.mxu0 0.0
      %1447 = vmatpush1.msra.mxu0 0.0
      %1448 = vmatprep.subr.mxu0 0.0
      %1449 = vmatpush1.msra.mxu0 0.0
      %1450 = vmatprep.subr.mxu0 0.0
      %1451 = vmatpush1.msra.mxu0 0.0
      %1452 = vmatprep.subr.mxu0 0.0
      %1453 = vmatpush1.msra.mxu0 %v434
      %1454 = vmatprep.subr.mxu0 0.0
      %1455 = vmatpush1.msra.mxu0 %v433
      %1456 = vmatprep.subr.mxu0 0.0
      %1457 = vmatpush1.msra.mxu0 %v432
      %1458 = vmatprep.subr.mxu0 0.0
      %1459 = vmatpush1.msra.mxu0 %v431
      %1460 = vmatprep.subr.mxu0 0.0
      %1461 = vmatpush2.msra.mxu0 0.0
      %1462 = vmatprep.subr.mxu0 0.0
      %1463 = vmatpush2.msra.mxu0 0.0
      %1464 = vmatprep.subr.mxu0 0.0
      %1465 = vmatpush2.msra.mxu0 0.0
      %1466 = vmatprep.subr.mxu0 0.0
      %1467 = vmatpush2.msra.mxu0 0.0
      %1468 = vmatprep.subr.mxu0 0.0
      %1469 = vmatpush2.msra.mxu0 0.0
      %1470 = vmatprep.subr.mxu0 0.0
      %1471 = vmatpush2.msra.mxu0 0.0
      %1472 = vmatprep.subr.mxu0 0.0
      %1473 = vmatpush2.msra.mxu0 0.0
      %1474 = vmatprep.subr.mxu0 0.0
      %1475 = vmatpush2.msra.mxu0 0.0
      %1476 = vmatprep.subr.mxu0 0.0
      %1477 = vmatpush2.msra.mxu0 0.0
      %1478 = vmatprep.subr.mxu0 0.0
      %1479 = vmatpush2.msra.mxu0 0.0
      %1480 = vmatprep.subr.mxu0 0.0
      %1481 = vmatpush2.msra.mxu0 0.0
      %1482 = vmatprep.subr.mxu0 0.0
      %1483 = vmatpush2.msra.mxu0 0.0
      %1484 = vmatprep.subr.mxu0 0.0
      %1485 = vmatpush2.msra.mxu0 0.0
      %1486 = vmatprep.subr.mxu0 0.0
      %1487 = vmatpush2.msra.mxu0 0.0
      %1488 = vmatprep.subr.mxu0 0.0
      %1489 = vmatpush2.msra.mxu0 0.0
      %1490 = vmatprep.subr.mxu0 0.0
      %1491 = vmatpush2.msra.mxu0 0.0
      %1492 = vmatprep.mubr.f32.mxu0 0.0
      %1493 = vmatmul.mubr.f32.gmra.mxu0 %v1426
      %v1494 = vpop.f32.mrf.mxu0
      %v1495 = vadd.f32 0.0, %v1494
      %v1496 = vpop.f32.mrf.mxu0
      %1497 = vdwg.mxu0
      %v1498 = vadd.f32 %v1422, %v1495
      %v1499 = vxor.u32 %v1498, 2147483648
      %v1500 = vmul.f32 %v1499, 1.442695
      %v1501 = vpow.pop %v1500
      %v1502 = vadd.f32 %v1501, 1.0
      %v1503 = vrcp.pop %v1502
      %v1504 = vmul.f32 1.0, %v1503
      %v1505 = vtanh.pop %v1498
      %v1506 = vmul.f32 %v1504, %v1411
      %1508 = vrot.lane.b32.xlu0 %v1505, 64
      %v1509 = vpop.permute.xlu0 %1508
      %v1511 = vmul.f32 %v1504, %v1509
      %1513 = vrot.lane.b32.xlu0 %v1511, 32
      %v1514 = vpop.permute.xlu0 %1513
      %v1516 = vadd.f32 %v1506, %v1514
      %v1517 = vtanh.pop %v1516
      %1519 = vrot.lane.b32.xlu0 %v1517, 64
      %v1520 = vpop.permute.xlu0 %1519
      %v1522 = vmul.f32 %v1504, %v1520
      %v1523 = vstv %s1419
      %vm1524 = vcmp.lt.s32.totalorder %v1523, %v422
      %v1525 = vsel %vm1524, 1, 0
      %1526 = vset.pattern.permute.xlu0 0
      %1527 = vperm.xlu0 %1526, %v1525
      %v1528 = vpop.permute.xlu0 %1527
      %vm1529 = vcmp.eq.s32.totalorder %v1528, 1
      %v1530 = vsel %vm1529, %v1516, %v1411
      %v1531 = vsel %vm1529, %v1522, %v1412
      %1533 = vrot.lane.b32.xlu0 %v1522, 32
      %v1534 = vpop.permute.xlu0 %1533
      %s1536 = scalar_lea.vmem %s413, %s1420
      %1537 = vst.msk [vmem:[%s1536] sm:$0xf] %vm703, %v1534
      %vm1538 = vcmp.gt.s32.totalorder %v422, 0
      %vm1539 = vcmp.gt.s32.totalorder %v422, 1
      %vm1540 = vcmp.gt.s32.totalorder %v422, 2
      %vm1541 = vcmp.gt.s32.totalorder %v422, 3
      %vm1542 = vcmp.gt.s32.totalorder %v422, 4
      %vm1543 = vcmp.gt.s32.totalorder %v422, 5
      %vm1544 = vcmp.gt.s32.totalorder %v422, 6
      %vm1545 = vcmp.gt.s32.totalorder %v422, 7
      %v1546 = vld [vmem:[%s413] sm:$0xf]
      %v1547 = vld [vmem:[%s413 + $0x4] sm:$0xf]
      %v1548 = vld [vmem:[%s413 + $0x8] sm:$0xf]
      %v1549 = vld [vmem:[%s413 + $0xc] sm:$0xf]
      %v1550 = vld [vmem:[%s413 + $0x10] sm:$0xf]
      %v1551 = vld [vmem:[%s413 + $0x14] sm:$0xf]
      %v1552 = vld [vmem:[%s413 + $0x18] sm:$0xf]
      %v1553 = vld [vmem:[%s413 + $0x1c] sm:$0xf]
      %v1554 = vsel %vm1538, 1, 0
      %v1555 = vsel %vm1539, 1, 0
      %v1556 = vsel %vm1540, 1, 0
      %v1557 = vsel %vm1541, 1, 0
      %v1558 = vsel %vm1542, 1, 0
      %v1559 = vsel %vm1543, 1, 0
      %v1560 = vsel %vm1544, 1, 0
      %v1561 = vsel %vm1545, 1, 0
      %1562 = vset.pattern.permute.xlu0 0
      %1563 = vperm.xlu0 %1562, %v1554
      %v1564 = vpop.permute.xlu0 %1563
      %1565 = vset.pattern.permute.xlu0 0
      %1566 = vperm.xlu0 %1565, %v1555
      %v1567 = vpop.permute.xlu0 %1566
      %1568 = vset.pattern.permute.xlu0 0
      %1569 = vperm.xlu0 %1568, %v1556
      %v1570 = vpop.permute.xlu0 %1569
      %1571 = vset.pattern.permute.xlu0 0
      %1572 = vperm.xlu0 %1571, %v1557
      %v1573 = vpop.permute.xlu0 %1572
      %1574 = vset.pattern.permute.xlu0 0
      %1575 = vperm.xlu0 %1574, %v1558
      %v1576 = vpop.permute.xlu0 %1575
      %1577 = vset.pattern.permute.xlu0 0
      %1578 = vperm.xlu0 %1577, %v1559
      %v1579 = vpop.permute.xlu0 %1578
      %1580 = vset.pattern.permute.xlu0 0
      %1581 = vperm.xlu0 %1580, %v1560
      %v1582 = vpop.permute.xlu0 %1581
      %1583 = vset.pattern.permute.xlu0 0
      %1584 = vperm.xlu0 %1583, %v1561
      %v1585 = vpop.permute.xlu0 %1584
      %vm1586 = vcmp.eq.s32.totalorder %v1564, 1
      %vm1587 = vcmp.eq.s32.totalorder %v1567, 1
      %vm1588 = vcmp.eq.s32.totalorder %v1570, 1
      %vm1589 = vcmp.eq.s32.totalorder %v1573, 1
      %vm1590 = vcmp.eq.s32.totalorder %v1576, 1
      %vm1591 = vcmp.eq.s32.totalorder %v1579, 1
      %vm1592 = vcmp.eq.s32.totalorder %v1582, 1
      %vm1593 = vcmp.eq.s32.totalorder %v1585, 1
      %v1594 = vsel %vm1586, %v1546, 0.0
      %v1595 = vsel %vm1587, %v1547, 0.0
      %v1596 = vsel %vm1588, %v1548, 0.0
      %v1597 = vsel %vm1589, %v1549, 0.0
      %v1598 = vsel %vm1590, %v1550, 0.0
      %v1599 = vsel %vm1591, %v1551, 0.0
      %v1600 = vsel %vm1592, %v1552, 0.0
      %v1601 = vsel %vm1593, %v1553, 0.0
      %1602 = vst.msk [vmem:[%s413] sm:$0xf] %vm703, %v1594
      %1603 = vst.msk [vmem:[%s413 + $0x4] sm:$0xf] %vm703, %v1595
      %1604 = vst.msk [vmem:[%s413 + $0x8] sm:$0xf] %vm703, %v1596
      %1605 = vst.msk [vmem:[%s413 + $0xc] sm:$0xf] %vm703, %v1597
      %1606 = vst.msk [vmem:[%s413 + $0x10] sm:$0xf] %vm703, %v1598
      %1607 = vst.msk [vmem:[%s413 + $0x14] sm:$0xf] %vm703, %v1599
      %1608 = vst.msk [vmem:[%s413 + $0x18] sm:$0xf] %vm703, %v1600
      %1609 = vst.msk [vmem:[%s413 + $0x1c] sm:$0xf] %vm703, %v1601
      %1611 = vrot.lane.b32.xlu0 %v1531, 32
      %v1612 = vpop.permute.xlu0 %1611
      %1614 = vst.msk [vmem:[%s417] sm:$0xf] %vm703, %v1612
      %1616 = vrot.lane.b32.xlu0 %v1530, 96
      %v1617 = vpop.permute.xlu0 %1616
      %1619 = vst.msk [vmem:[%s421] sm:$0xf] %vm703, %v1617
      %p1620 = scmp.lt.s32.totalorder %s21, 1
      %s1621 = scalar_select %p1620, %s21, 1
      %s1622 = smul.addr %s1621, 8
      %s1623 = smul.addr %s1622, 4
      %s1624 = scalar_lea.vmem %s7, %s1623
      %p1625 = scmp.lt.s32.totalorder %s21, 1
      %s1626 = scalar_select %p1625, %s21, 1
      %s1627 = smul.addr %s1626, 4
      %s1628 = scalar_lea.vmem %s8, %s1627
      %p1629 = scmp.lt.s32.totalorder %s21, 1
      %s1630 = scalar_select %p1629, %s21, 1
      %s1631 = smul.addr %s1630, 4
      %s1632 = scalar_lea.vmem %s9, %s1631
      // Predicated region
      $region49: #{encoder_rnn_forward.3} parent=47 // pred_check
        %p1633 = pneg %p211
      $region50: #{encoder_rnn_forward.3} parent=47 // pred_check_branch
        %1635 = sbr.rel (%p1633) target = $region52
      $region51: #{encoder_rnn_forward.3} parent=47 // pred_region
        _
      $region52: #{encoder_rnn_forward.3} parent=47 // pred_fallthru
        _
      // Predicated region
      $region53: #{encoder_rnn_forward.3} parent=47 // pred_check
        %p1636 = pneg %p237
      $region54: #{encoder_rnn_forward.3} parent=47 // pred_check_branch
        %1638 = sbr.rel (%p1636) target = $region56
      $region55: #{encoder_rnn_forward.3} parent=47 // pred_region
        _
      $region56: #{encoder_rnn_forward.3} parent=47 // pred_fallthru
        _
      // Predicated region
      $region57: #{encoder_rnn_forward.3} parent=47 // pred_check
        %p1639 = pneg %p263
      $region58: #{encoder_rnn_forward.3} parent=47 // pred_check_branch
        %1641 = sbr.rel (%p1639) target = $region60
      $region59: #{encoder_rnn_forward.3} parent=47 // pred_region
        _
      $region60: #{encoder_rnn_forward.3} parent=47 // pred_fallthru
        _
    $region48: #{encoder_rnn_forward.3} parent=5 // pred_fallthru
      _
    %p1642 = scmp.le.s32.totalorder 2, %s16
    // Predicated region
    $region61: #{encoder_rnn_forward.3} parent=5 // pred_check
      %p1643 = pneg %p1642
    $region62: #{encoder_rnn_forward.3} parent=5 // pred_check_branch
      %1645 = sbr.rel (%p1643) target = $region64
    $region63: #{encoder_rnn_forward.3} parent=5 // pred_region
      %s1646 = ssub.s32 %s16, 2
      // Predicated region
      $region65: #{encoder_rnn_forward.3} parent=63 // pred_check
        %p1647 = pneg %p217
      $region66: #{encoder_rnn_forward.3} parent=63 // pred_check_branch
        %1649 = sbr.rel (%p1647) target = $region68
      $region67: #{encoder_rnn_forward.3} parent=63 // pred_region
        %p1650 = scmp.lt.s32.totalorder %s22, 1
        %s1651 = scalar_select %p1650, %s22, 1
        %s1652 = smul.addr %s1651, 8
        %s1653 = smul.addr %s1652, 4
        %s1654 = scalar_lea.vmem %s7, %s1653
      $region68: #{encoder_rnn_forward.3} parent=63 // pred_fallthru
        _
      // Predicated region
      $region69: #{encoder_rnn_forward.3} parent=63 // pred_check
        %p1655 = pneg %p243
      $region70: #{encoder_rnn_forward.3} parent=63 // pred_check_branch
        %1657 = sbr.rel (%p1655) target = $region72
      $region71: #{encoder_rnn_forward.3} parent=63 // pred_region
        %p1658 = scmp.lt.s32.totalorder %s22, 1
        %s1659 = scalar_select %p1658, %s22, 1
        %s1660 = smul.addr %s1659, 4
        %s1661 = scalar_lea.vmem %s8, %s1660
      $region72: #{encoder_rnn_forward.3} parent=63 // pred_fallthru
        _
      // Predicated region
      $region73: #{encoder_rnn_forward.3} parent=63 // pred_check
        %p1662 = pneg %p269
      $region74: #{encoder_rnn_forward.3} parent=63 // pred_check_branch
        %1664 = sbr.rel (%p1662) target = $region76
      $region75: #{encoder_rnn_forward.3} parent=63 // pred_region
        %p1665 = scmp.lt.s32.totalorder %s22, 1
        %s1666 = scalar_select %p1665, %s22, 1
        %s1667 = smul.addr %s1666, 4
        %s1668 = scalar_lea.vmem %s9, %s1667
      $region76: #{encoder_rnn_forward.3} parent=63 // pred_fallthru
        _
    $region64: #{encoder_rnn_forward.3} parent=5 // pred_fallthru
      _
  $region6: #{encoder_rnn_forward.3} parent=0 // loop_footer
    %s20 = sadd.s32 1, %s16
  $region7: #{encoder_rnn_forward.3} parent=0 // loop_footer_branch
    %15 = sbr.rel target = $region3
  $region8: #{encoder_rnn_forward.3} parent=0 // loop_exit
    _

</llo_original>
